<compile_context>
chip_gen: v5e
topology: v5e:2x2
jax: 0.10.0
libtpu: 0.0.40
codegen_flags: <defaults>
</compile_context>

<pallas_src>
import functools
import jax
import jax.numpy as jnp
from jax.experimental import pallas as pl
from jax.experimental.pallas import tpu as pltpu


# ----------------------------- helpers ---------------------------------------

def make_divisible(v, divisor, min_val=None):
    if min_val is None:
        min_val = divisor
    new_v = max(min_val, int(v + divisor / 2) // divisor * divisor)
    if new_v < 0.9 * v:
        new_v += divisor
    return new_v


def _act(x, act):
    if act == "relu":
        return jnp.maximum(x, 0.0)
    elif act == "h_swish":
        return x * jnp.clip(x + 3.0, 0.0, 6.0) / 6.0
    elif act == "none":
        return x
    raise ValueError(act)


# ------------------------------ fused kernel ----------------------------------

def _mbconv_kernel(*refs, K, stride, pad, H, W, Ho, Wo, act, use_se, expand):
    it = iter(refs)
    x_ref = next(it)                                    # (1, Hp, Wp, Cin) padded
    if expand:
        w_ib_ref, b_ib_ref = next(it), next(it)         # (Cin, C), (1, C)
    w_dw_ref, b_dw_ref = next(it), next(it)             # (K, K, C), (1, C)
    if use_se:
        w_se1_ref, b_se1_ref = next(it), next(it)       # (C, Cmid), (1, Cmid)
        w_se2_ref, b_se2_ref = next(it), next(it)       # (Cmid, C), (1, C)
    w_pl_ref, b_pl_ref = next(it), next(it)             # (C, Cout), (1, Cout)
    o_ref = next(it)                                    # (1, Ho, Wo, Cout)
    exp_ref = next(it) if expand else None              # VMEM (Hp, Wp, C)

    _, Hp, Wp, Cin = x_ref.shape
    C = w_dw_ref.shape[-1]

    # 1) expansion 1x1 conv + folded BN + act, written already-padded into the
    #    VMEM scratch (row-by-row (Wp, Cin) @ (Cin, C) matmuls).
    if expand:
        w_ib = w_ib_ref[...]
        b_ib = b_ib_ref[...]
        # mask that zeroes the left/right padding columns of interior rows
        col = jax.lax.broadcasted_iota(jnp.int32, (Wp, C), 0)
        colmask = ((col >= pad) & (col < pad + W)).astype(jnp.float32)
        zero_row = jnp.zeros((Wp, C), jnp.float32)
        for h in range(Hp):
            if h < pad or h >= pad + H:
                exp_ref[h] = zero_row                   # top/bottom padding rows
            else:
                r = jnp.dot(x_ref[0, h], w_ib,
                            preferred_element_type=jnp.float32) + b_ib
                exp_ref[h] = _act(r, act) * colmask
        xp = exp_ref[...]                               # (Hp, Wp, C)
    else:
        xp = x_ref[0].astype(jnp.float32)               # (Hp, Wp, Cin), C == Cin

    # 2) depthwise KxK conv + folded BN + act (per-tap VPU FMAs; weight loads
    #    and bias broadcast hoisted out of the tap loop).
    w_dw = w_dw_ref[...]
    b_dw = b_dw_ref[...].reshape(1, 1, C)
    acc = jnp.zeros((Ho, Wo, C), jnp.float32)
    for kh in range(K):
        for kw in range(K):
            patch = jax.lax.slice(
                xp, (kh, kw, 0),
                (kh + (Ho - 1) * stride + 1, kw + (Wo - 1) * stride + 1, C),
                (stride, stride, 1))
            acc = acc + patch * w_dw[kh, kw:kw + 1, :].reshape(1, 1, C)
    a = _act(acc + b_dw, act)                           # (Ho, Wo, C)

    # 3) squeeze-excite on the VMEM-resident activation.
    if use_se:
        pooled = jnp.mean(jnp.mean(a, axis=0), axis=0, keepdims=True)   # (1, C)
        h1 = jnp.dot(pooled, w_se1_ref[...],
                     preferred_element_type=jnp.float32) + b_se1_ref[...]
        h1 = jnp.maximum(h1, 0.0)
        h2 = jnp.dot(h1, w_se2_ref[...],
                     preferred_element_type=jnp.float32) + b_se2_ref[...]
        scale = jnp.clip(h2 + 3.0, 0.0, 6.0) / 6.0                      # (1, C)
        a = a * scale.reshape(1, 1, C)

    # 4) projection 1x1 conv + folded BN (no act): row-by-row MXU matmuls.
    w_pl = w_pl_ref[...]
    b_pl = b_pl_ref[...]
    for h in range(Ho):
        row = jnp.dot(a[h], w_pl, preferred_element_type=jnp.float32) + b_pl
        o_ref[0, h] = row.astype(o_ref.dtype)


# ----------------------------- forward pass -----------------------------------

def mbconv_forward(x_nchw, P, *, kernel_size, stride, expand_ratio, act, use_se):
    x = jnp.transpose(x_nchw, (0, 2, 3, 1)).astype(jnp.float32)   # NCHW -> NHWC
    N, H, W, Cin = x.shape
    K = kernel_size
    pad = K // 2
    Hp, Wp = H + 2 * pad, W + 2 * pad
    Ho = (Hp - K) // stride + 1
    Wo = (Wp - K) // stride + 1
    expand = expand_ratio != 1
    C = P["w_dw"].shape[-1]
    Cout = P["w_pl"].shape[-1]

    # pad only the small Cin-channel raw input; the (much larger) expanded
    # activation is padded inside the kernel and never leaves VMEM.
    xpad = jnp.pad(x, ((0, 0), (pad, pad), (pad, pad), (0, 0)))

    def _const2(a):
        return pl.BlockSpec(a.shape, lambda n: (0, 0))

    def _const3(a):
        return pl.BlockSpec(a.shape, lambda n: (0, 0, 0))

    args = [xpad]
    in_specs = [pl.BlockSpec((1, Hp, Wp, Cin), lambda n: (n, 0, 0, 0))]
    if expand:
        b_ib = P["b_ib"].reshape(1, -1)
        args += [P["w_ib"], b_ib]
        in_specs += [_const2(P["w_ib"]), _const2(b_ib)]
    b_dw = P["b_dw"].reshape(1, -1)
    args += [P["w_dw"], b_dw]
    in_specs += [_const3(P["w_dw"]), _const2(b_dw)]
    if use_se:
        b_se1 = P["b_se1"].reshape(1, -1)
        b_se2 = P["b_se2"].reshape(1, -1)
        args += [P["w_se1"], b_se1, P["w_se2"], b_se2]
        in_specs += [_const2(P["w_se1"]), _const2(b_se1),
                     _const2(P["w_se2"]), _const2(b_se2)]
    b_pl = P["b_pl"].reshape(1, -1)
    args += [P["w_pl"], b_pl]
    in_specs += [_const2(P["w_pl"]), _const2(b_pl)]

    scratch = [pltpu.VMEM((Hp, Wp, C), jnp.float32)] if expand else []

    kernel = functools.partial(
        _mbconv_kernel, K=K, stride=stride, pad=pad, H=H, W=W, Ho=Ho, Wo=Wo,
        act=act, use_se=use_se, expand=expand)

    y = pl.pallas_call(
        kernel,
        out_shape=jax.ShapeDtypeStruct((N, Ho, Wo, Cout), jnp.float32),
        grid=(N,),
        in_specs=in_specs,
        out_specs=pl.BlockSpec((1, Ho, Wo, Cout), lambda n: (n, 0, 0, 0)),
        scratch_shapes=scratch,
        compiler_params=pltpu.CompilerParams(
            dimension_semantics=("parallel",)),
    )(*args)
    return jnp.transpose(y, (0, 3, 1, 2))                          # NHWC -> NCHW


# ------------------------- parameter construction ----------------------------

def fold_bn(weight, gamma, beta, mean, var, eps=1e-5):
    """Fold eval-mode BN into conv (weight laid out as (..., Cout))."""
    scale = gamma / jnp.sqrt(var + eps)
    w = weight * scale.reshape((1,) * (weight.ndim - 1) + (-1,))
    b = beta - mean * scale
    return w, b


def init_params(key, in_channels, out_channels, kernel_size, expand_ratio,
                use_se):
    feature_dim = round(in_channels * expand_ratio)
    num_mid = make_divisible(feature_dim // 4, divisor=8)
    ks = jax.random.split(key, 16)

    def bn(k, c):
        k1, k2, k3, k4 = jax.random.split(k, 4)
        gamma = jax.random.uniform(k1, (c,), jnp.float32, 0.5, 1.5)
        beta = 0.1 * jax.random.normal(k2, (c,), jnp.float32)
        mean = 0.1 * jax.random.normal(k3, (c,), jnp.float32)
        var = jax.random.uniform(k4, (c,), jnp.float32, 0.5, 1.5)
        return gamma, beta, mean, var

    P = {}
    # inverted bottleneck: 1x1 conv (Cin -> feature_dim), no bias, + BN
    w_ib = 0.1 * jax.random.normal(ks[0], (in_channels, feature_dim), jnp.float32)
    P["w_ib"], P["b_ib"] = fold_bn(w_ib, *bn(ks[1], feature_dim))
    # depthwise conv: (K, K, feature_dim), no bias, + BN
    w_dw = 0.1 * jax.random.normal(ks[2], (kernel_size, kernel_size, feature_dim),
                                   jnp.float32)
    P["w_dw"], P["b_dw"] = fold_bn(w_dw, *bn(ks[3], feature_dim))
    # SE module (has real biases, no BN)
    if use_se:
        P["w_se1"] = 0.1 * jax.random.normal(ks[4], (feature_dim, num_mid),
                                             jnp.float32)
        P["b_se1"] = 0.1 * jax.random.normal(ks[5], (num_mid,), jnp.float32)
        P["w_se2"] = 0.1 * jax.random.normal(ks[6], (num_mid, feature_dim),
                                             jnp.float32)
        P["b_se2"] = 0.1 * jax.random.normal(ks[7], (feature_dim,), jnp.float32)
    # point linear: 1x1 conv (feature_dim -> Cout), no bias, + BN (no act)
    w_pl = 0.1 * jax.random.normal(ks[8], (feature_dim, out_channels), jnp.float32)
    P["w_pl"], P["b_pl"] = fold_bn(w_pl, *bn(ks[9], out_channels))
    return P, feature_dim, num_mid


# ----------------------- pure-JAX reference (for checking) -------------------

def ref_forward(x_nchw, P, *, kernel_size, stride, expand_ratio, act, use_se):
    x = jnp.transpose(x_nchw, (0, 2, 3, 1)).astype(jnp.float32)
    if expand_ratio != 1:
        x = _act(jnp.einsum("nhwc,cd->nhwd", x, P["w_ib"]) + P["b_ib"], act)
    pad = kernel_size // 2
    xp = jnp.pad(x, ((0, 0), (pad, pad), (pad, pad), (0, 0)))
    N, Hp, Wp, C = xp.shape
    K = kernel_size
    Ho = (Hp - K) // stride + 1
    Wo = (Wp - K) // stride + 1
    acc = jnp.zeros((N, Ho, Wo, C), jnp.float32)
    for kh in range(K):
        for kw in range(K):
            acc = acc + xp[:, kh:kh + (Ho - 1) * stride + 1:stride,
                           kw:kw + (Wo - 1) * stride + 1:stride, :] * P["w_dw"][kh, kw]
    x = _act(acc + P["b_dw"], act)
    if use_se:
        y = x.mean(axis=(1, 2))
        y = jnp.maximum(y @ P["w_se1"] + P["b_se1"], 0.0)
        y = y @ P["w_se2"] + P["b_se2"]
        scale = jnp.clip(y + 3.0, 0.0, 6.0) / 6.0
        x = x * scale[:, None, None, :]
    y = jnp.einsum("nhwc,cd->nhwd", x, P["w_pl"]) + P["b_pl"]
    return jnp.transpose(y, (0, 3, 1, 2))


# ---------------------------------- main --------------------------------------

if __name__ == "__main__":
    # MBConvLayer(in_channels=8, out_channels=16, kernel_size=3, stride=1,
    #             expand_ratio=6, act_func='relu', use_se=True)
    in_channels, out_channels = 8, 16
    kernel_size, stride, expand_ratio = 3, 1, 6
    act, use_se = "relu", True
    N, H, W = 2, 16, 16

    key = jax.random.PRNGKey(0)
    k_x, k_p = jax.random.split(key)
    x = jax.random.normal(k_x, (N, in_channels, H, W), jnp.float32)   # NCHW
    P, feature_dim, num_mid = init_params(
        k_p, in_channels, out_channels, kernel_size, expand_ratio, use_se)

    out = mbconv_forward(x, P, kernel_size=kernel_size, stride=stride,
                         expand_ratio=expand_ratio, act=act, use_se=use_se)
    out = jax.block_until_ready(out)

    ref = ref_forward(x, P, kernel_size=kernel_size, stride=stride,
                      expand_ratio=expand_ratio, act=act, use_se=use_se)
    assert out.shape == (N, out_channels, H // stride, W // stride)
    assert jnp.allclose(out, ref, rtol=1e-3, atol=1e-3), "mismatch vs reference"

    print("KERNEL_OK")
</pallas_src>

<mosaic_0001>
module attributes {stable_mosaic.version = 11 : i64} {
  func.func @_mbconv_kernel(%arg0: i32, %arg1: memref<1x18x18x8xf32, #tpu.memory_space<vmem>>, %arg2: memref<8x48xf32, #tpu.memory_space<vmem>>, %arg3: memref<1x48xf32, #tpu.memory_space<vmem>>, %arg4: memref<3x3x48xf32, #tpu.memory_space<vmem>>, %arg5: memref<1x48xf32, #tpu.memory_space<vmem>>, %arg6: memref<48x16xf32, #tpu.memory_space<vmem>>, %arg7: memref<1x16xf32, #tpu.memory_space<vmem>>, %arg8: memref<16x48xf32, #tpu.memory_space<vmem>>, %arg9: memref<1x48xf32, #tpu.memory_space<vmem>>, %arg10: memref<48x16xf32, #tpu.memory_space<vmem>>, %arg11: memref<1x16xf32, #tpu.memory_space<vmem>>, %arg12: memref<1x16x16x16xf32, #tpu.memory_space<vmem>>, %arg13: memref<18x18x48xf32, #tpu.memory_space<vmem>>) attributes {dimension_semantics = [#tpu.dimension_semantics<parallel>], iteration_bounds = array<i64: 2>, scalar_prefetch = 0 : i64, scratch_operands = 1 : i64, tpu.core_type = #tpu.core_type<tc>, window_params = [{transform_indices = @transform_0, window_bounds = array<i64: 1, 18, 18, 8>}, {pipeline_mode = #tpu.pipeline_mode<synchronous>, transform_indices = @transform_1, window_bounds = array<i64: 8, 48>}, {pipeline_mode = #tpu.pipeline_mode<synchronous>, transform_indices = @transform_2, window_bounds = array<i64: 1, 48>}, {pipeline_mode = #tpu.pipeline_mode<synchronous>, transform_indices = @transform_3, window_bounds = array<i64: 3, 3, 48>}, {pipeline_mode = #tpu.pipeline_mode<synchronous>, transform_indices = @transform_4, window_bounds = array<i64: 1, 48>}, {pipeline_mode = #tpu.pipeline_mode<synchronous>, transform_indices = @transform_5, window_bounds = array<i64: 48, 16>}, {pipeline_mode = #tpu.pipeline_mode<synchronous>, transform_indices = @transform_6, window_bounds = array<i64: 1, 16>}, {pipeline_mode = #tpu.pipeline_mode<synchronous>, transform_indices = @transform_7, window_bounds = array<i64: 16, 48>}, {pipeline_mode = #tpu.pipeline_mode<synchronous>, transform_indices = @transform_8, window_bounds = array<i64: 1, 48>}, {pipeline_mode = #tpu.pipeline_mode<synchronous>, transform_indices = @transform_9, window_bounds = array<i64: 48, 16>}, {pipeline_mode = #tpu.pipeline_mode<synchronous>, transform_indices = @transform_10, window_bounds = array<i64: 1, 16>}, {transform_indices = @transform_11, window_bounds = array<i64: 1, 16, 16, 16>}]} {
    %c0 = arith.constant 0 : index
    %c0_0 = arith.constant 0 : index
    %0 = vector.load %arg2[%c0, %c0_0] : memref<8x48xf32, #tpu.memory_space<vmem>>, vector<8x48xf32>
    %c0_1 = arith.constant 0 : index
    %c0_2 = arith.constant 0 : index
    %1 = vector.load %arg3[%c0_1, %c0_2] : memref<1x48xf32, #tpu.memory_space<vmem>>, vector<1x48xf32>
    %2 = tpu.iota {dimensions = array<i32: 0>} : vector<18x48xi32>
    %c1_i32 = arith.constant 1 : i32
    %3 = vector.broadcast %c1_i32 : i32 to vector<18x48xi32>
    %4 = arith.cmpi sge, %2, %3 : vector<18x48xi32>
    %c17_i32 = arith.constant 17 : i32
    %5 = vector.broadcast %c17_i32 : i32 to vector<18x48xi32>
    %6 = arith.cmpi slt, %2, %5 : vector<18x48xi32>
    %7 = arith.andi %4, %6 : vector<18x48xi1>
    %8 = arith.extui %7 : vector<18x48xi1> to vector<18x48xi32>
    %9 = arith.sitofp %8 : vector<18x48xi32> to vector<18x48xf32>
    %cst = arith.constant 0.000000e+00 : f32
    %10 = vector.broadcast %cst : f32 to vector<18x48xf32>
    %c0_3 = arith.constant 0 : index
    %c0_4 = arith.constant 0 : index
    %c0_5 = arith.constant 0 : index
    %11 = vector.load %arg13[%c0_3, %c0_4, %c0_5] : memref<18x18x48xf32, #tpu.memory_space<vmem>>, vector<1x18x48xf32>
    %12 = vector.shape_cast %11 : vector<1x18x48xf32> to vector<18x48xf32>
    %13 = vector.shape_cast %10 : vector<18x48xf32> to vector<1x18x48xf32>
    tpu.vector_store %arg13[%c0_3, %c0_4, %c0_5], %13 {strides = array<i32>} : memref<18x18x48xf32, #tpu.memory_space<vmem>>, vector<1x18x48xf32>,
    %c0_6 = arith.constant 0 : index
    %c1 = arith.constant 1 : index
    %c0_7 = arith.constant 0 : index
    %c0_8 = arith.constant 0 : index
    %14 = vector.load %arg1[%c0_6, %c1, %c0_7, %c0_8] : memref<1x18x18x8xf32, #tpu.memory_space<vmem>>, vector<1x1x18x8xf32>
    %15 = vector.shape_cast %14 : vector<1x1x18x8xf32> to vector<18x8xf32>
    %cst_9 = arith.constant dense<0.000000e+00> : vector<18x48xf32>
    %16 = tpu.matmul %15, %0, %cst_9 {dimension_numbers = #tpu.dot_dimension_numbers<[1], [0], [0], [1], [0, 0, 1, 1], [], []>} : vector<18x8xf32>, vector<8x48xf32>, vector<18x48xf32> -> vector<18x48xf32>
    %17 = vector.broadcast %1 : vector<1x48xf32> to vector<18x48xf32>
    %18 = arith.addf %16, %17 : vector<18x48xf32>
    %cst_10 = arith.constant 0.000000e+00 : f32
    %19 = vector.broadcast %cst_10 : f32 to vector<18x48xf32>
    %20 = arith.maximumf %18, %19 : vector<18x48xf32>
    %21 = arith.mulf %20, %9 : vector<18x48xf32>
    %c1_11 = arith.constant 1 : index
    %c0_12 = arith.constant 0 : index
    %c0_13 = arith.constant 0 : index
    %22 = vector.load %arg13[%c1_11, %c0_12, %c0_13] : memref<18x18x48xf32, #tpu.memory_space<vmem>>, vector<1x18x48xf32>
    %23 = vector.shape_cast %22 : vector<1x18x48xf32> to vector<18x48xf32>
    %24 = vector.shape_cast %21 : vector<18x48xf32> to vector<1x18x48xf32>
    tpu.vector_store %arg13[%c1_11, %c0_12, %c0_13], %24 {strides = array<i32>} : memref<18x18x48xf32, #tpu.memory_space<vmem>>, vector<1x18x48xf32>,
    %c0_14 = arith.constant 0 : index
    %c2 = arith.constant 2 : index
    %c0_15 = arith.constant 0 : index
    %c0_16 = arith.constant 0 : index
    %25 = vector.load %arg1[%c0_14, %c2, %c0_15, %c0_16] : memref<1x18x18x8xf32, #tpu.memory_space<vmem>>, vector<1x1x18x8xf32>
    %26 = vector.shape_cast %25 : vector<1x1x18x8xf32> to vector<18x8xf32>
    %cst_17 = arith.constant dense<0.000000e+00> : vector<18x48xf32>
    %27 = tpu.matmul %26, %0, %cst_17 {dimension_numbers = #tpu.dot_dimension_numbers<[1], [0], [0], [1], [0, 0, 1, 1], [], []>} : vector<18x8xf32>, vector<8x48xf32>, vector<18x48xf32> -> vector<18x48xf32>
    %28 = vector.broadcast %1 : vector<1x48xf32> to vector<18x48xf32>
    %29 = arith.addf %27, %28 : vector<18x48xf32>
    %cst_18 = arith.constant 0.000000e+00 : f32
    %30 = vector.broadcast %cst_18 : f32 to vector<18x48xf32>
    %31 = arith.maximumf %29, %30 : vector<18x48xf32>
    %32 = arith.mulf %31, %9 : vector<18x48xf32>
    %c2_19 = arith.constant 2 : index
    %c0_20 = arith.constant 0 : index
    %c0_21 = arith.constant 0 : index
    %33 = vector.load %arg13[%c2_19, %c0_20, %c0_21] : memref<18x18x48xf32, #tpu.memory_space<vmem>>, vector<1x18x48xf32>
    %34 = vector.shape_cast %33 : vector<1x18x48xf32> to vector<18x48xf32>
    %35 = vector.shape_cast %32 : vector<18x48xf32> to vector<1x18x48xf32>
    tpu.vector_store %arg13[%c2_19, %c0_20, %c0_21], %35 {strides = array<i32>} : memref<18x18x48xf32, #tpu.memory_space<vmem>>, vector<1x18x48xf32>,
    %c0_22 = arith.constant 0 : index
    %c3 = arith.constant 3 : index
    %c0_23 = arith.constant 0 : index
    %c0_24 = arith.constant 0 : index
    %36 = vector.load %arg1[%c0_22, %c3, %c0_23, %c0_24] : memref<1x18x18x8xf32, #tpu.memory_space<vmem>>, vector<1x1x18x8xf32>
    %37 = vector.shape_cast %36 : vector<1x1x18x8xf32> to vector<18x8xf32>
    %cst_25 = arith.constant dense<0.000000e+00> : vector<18x48xf32>
    %38 = tpu.matmul %37, %0, %cst_25 {dimension_numbers = #tpu.dot_dimension_numbers<[1], [0], [0], [1], [0, 0, 1, 1], [], []>} : vector<18x8xf32>, vector<8x48xf32>, vector<18x48xf32> -> vector<18x48xf32>
    %39 = vector.broadcast %1 : vector<1x48xf32> to vector<18x48xf32>
    %40 = arith.addf %38, %39 : vector<18x48xf32>
    %cst_26 = arith.constant 0.000000e+00 : f32
    %41 = vector.broadcast %cst_26 : f32 to vector<18x48xf32>
    %42 = arith.maximumf %40, %41 : vector<18x48xf32>
    %43 = arith.mulf %42, %9 : vector<18x48xf32>
    %c3_27 = arith.constant 3 : index
    %c0_28 = arith.constant 0 : index
    %c0_29 = arith.constant 0 : index
    %44 = vector.load %arg13[%c3_27, %c0_28, %c0_29] : memref<18x18x48xf32, #tpu.memory_space<vmem>>, vector<1x18x48xf32>
    %45 = vector.shape_cast %44 : vector<1x18x48xf32> to vector<18x48xf32>
    %46 = vector.shape_cast %43 : vector<18x48xf32> to vector<1x18x48xf32>
    tpu.vector_store %arg13[%c3_27, %c0_28, %c0_29], %46 {strides = array<i32>} : memref<18x18x48xf32, #tpu.memory_space<vmem>>, vector<1x18x48xf32>,
    %c0_30 = arith.constant 0 : index
    %c4 = arith.constant 4 : index
    %c0_31 = arith.constant 0 : index
    %c0_32 = arith.constant 0 : index
    %47 = vector.load %arg1[%c0_30, %c4, %c0_31, %c0_32] : memref<1x18x18x8xf32, #tpu.memory_space<vmem>>, vector<1x1x18x8xf32>
    %48 = vector.shape_cast %47 : vector<1x1x18x8xf32> to vector<18x8xf32>
    %cst_33 = arith.constant dense<0.000000e+00> : vector<18x48xf32>
    %49 = tpu.matmul %48, %0, %cst_33 {dimension_numbers = #tpu.dot_dimension_numbers<[1], [0], [0], [1], [0, 0, 1, 1], [], []>} : vector<18x8xf32>, vector<8x48xf32>, vector<18x48xf32> -> vector<18x48xf32>
    %50 = vector.broadcast %1 : vector<1x48xf32> to vector<18x48xf32>
    %51 = arith.addf %49, %50 : vector<18x48xf32>
    %cst_34 = arith.constant 0.000000e+00 : f32
    %52 = vector.broadcast %cst_34 : f32 to vector<18x48xf32>
    %53 = arith.maximumf %51, %52 : vector<18x48xf32>
    %54 = arith.mulf %53, %9 : vector<18x48xf32>
    %c4_35 = arith.constant 4 : index
    %c0_36 = arith.constant 0 : index
    %c0_37 = arith.constant 0 : index
    %55 = vector.load %arg13[%c4_35, %c0_36, %c0_37] : memref<18x18x48xf32, #tpu.memory_space<vmem>>, vector<1x18x48xf32>
    %56 = vector.shape_cast %55 : vector<1x18x48xf32> to vector<18x48xf32>
    %57 = vector.shape_cast %54 : vector<18x48xf32> to vector<1x18x48xf32>
    tpu.vector_store %arg13[%c4_35, %c0_36, %c0_37], %57 {strides = array<i32>} : memref<18x18x48xf32, #tpu.memory_space<vmem>>, vector<1x18x48xf32>,
    %c0_38 = arith.constant 0 : index
    %c5 = arith.constant 5 : index
    %c0_39 = arith.constant 0 : index
    %c0_40 = arith.constant 0 : index
    %58 = vector.load %arg1[%c0_38, %c5, %c0_39, %c0_40] : memref<1x18x18x8xf32, #tpu.memory_space<vmem>>, vector<1x1x18x8xf32>
    %59 = vector.shape_cast %58 : vector<1x1x18x8xf32> to vector<18x8xf32>
    %cst_41 = arith.constant dense<0.000000e+00> : vector<18x48xf32>
    %60 = tpu.matmul %59, %0, %cst_41 {dimension_numbers = #tpu.dot_dimension_numbers<[1], [0], [0], [1], [0, 0, 1, 1], [], []>} : vector<18x8xf32>, vector<8x48xf32>, vector<18x48xf32> -> vector<18x48xf32>
    %61 = vector.broadcast %1 : vector<1x48xf32> to vector<18x48xf32>
    %62 = arith.addf %60, %61 : vector<18x48xf32>
    %cst_42 = arith.constant 0.000000e+00 : f32
    %63 = vector.broadcast %cst_42 : f32 to vector<18x48xf32>
    %64 = arith.maximumf %62, %63 : vector<18x48xf32>
    %65 = arith.mulf %64, %9 : vector<18x48xf32>
    %c5_43 = arith.constant 5 : index
    %c0_44 = arith.constant 0 : index
    %c0_45 = arith.constant 0 : index
    %66 = vector.load %arg13[%c5_43, %c0_44, %c0_45] : memref<18x18x48xf32, #tpu.memory_space<vmem>>, vector<1x18x48xf32>
    %67 = vector.shape_cast %66 : vector<1x18x48xf32> to vector<18x48xf32>
    %68 = vector.shape_cast %65 : vector<18x48xf32> to vector<1x18x48xf32>
    tpu.vector_store %arg13[%c5_43, %c0_44, %c0_45], %68 {strides = array<i32>} : memref<18x18x48xf32, #tpu.memory_space<vmem>>, vector<1x18x48xf32>,
    %c0_46 = arith.constant 0 : index
    %c6 = arith.constant 6 : index
    %c0_47 = arith.constant 0 : index
    %c0_48 = arith.constant 0 : index
    %69 = vector.load %arg1[%c0_46, %c6, %c0_47, %c0_48] : memref<1x18x18x8xf32, #tpu.memory_space<vmem>>, vector<1x1x18x8xf32>
    %70 = vector.shape_cast %69 : vector<1x1x18x8xf32> to vector<18x8xf32>
    %cst_49 = arith.constant dense<0.000000e+00> : vector<18x48xf32>
    %71 = tpu.matmul %70, %0, %cst_49 {dimension_numbers = #tpu.dot_dimension_numbers<[1], [0], [0], [1], [0, 0, 1, 1], [], []>} : vector<18x8xf32>, vector<8x48xf32>, vector<18x48xf32> -> vector<18x48xf32>
    %72 = vector.broadcast %1 : vector<1x48xf32> to vector<18x48xf32>
    %73 = arith.addf %71, %72 : vector<18x48xf32>
    %cst_50 = arith.constant 0.000000e+00 : f32
    %74 = vector.broadcast %cst_50 : f32 to vector<18x48xf32>
    %75 = arith.maximumf %73, %74 : vector<18x48xf32>
    %76 = arith.mulf %75, %9 : vector<18x48xf32>
    %c6_51 = arith.constant 6 : index
    %c0_52 = arith.constant 0 : index
    %c0_53 = arith.constant 0 : index
    %77 = vector.load %arg13[%c6_51, %c0_52, %c0_53] : memref<18x18x48xf32, #tpu.memory_space<vmem>>, vector<1x18x48xf32>
    %78 = vector.shape_cast %77 : vector<1x18x48xf32> to vector<18x48xf32>
    %79 = vector.shape_cast %76 : vector<18x48xf32> to vector<1x18x48xf32>
    tpu.vector_store %arg13[%c6_51, %c0_52, %c0_53], %79 {strides = array<i32>} : memref<18x18x48xf32, #tpu.memory_space<vmem>>, vector<1x18x48xf32>,
    %c0_54 = arith.constant 0 : index
    %c7 = arith.constant 7 : index
    %c0_55 = arith.constant 0 : index
    %c0_56 = arith.constant 0 : index
    %80 = vector.load %arg1[%c0_54, %c7, %c0_55, %c0_56] : memref<1x18x18x8xf32, #tpu.memory_space<vmem>>, vector<1x1x18x8xf32>
    %81 = vector.shape_cast %80 : vector<1x1x18x8xf32> to vector<18x8xf32>
    %cst_57 = arith.constant dense<0.000000e+00> : vector<18x48xf32>
    %82 = tpu.matmul %81, %0, %cst_57 {dimension_numbers = #tpu.dot_dimension_numbers<[1], [0], [0], [1], [0, 0, 1, 1], [], []>} : vector<18x8xf32>, vector<8x48xf32>, vector<18x48xf32> -> vector<18x48xf32>
    %83 = vector.broadcast %1 : vector<1x48xf32> to vector<18x48xf32>
    %84 = arith.addf %82, %83 : vector<18x48xf32>
    %cst_58 = arith.constant 0.000000e+00 : f32
    %85 = vector.broadcast %cst_58 : f32 to vector<18x48xf32>
    %86 = arith.maximumf %84, %85 : vector<18x48xf32>
    %87 = arith.mulf %86, %9 : vector<18x48xf32>
    %c7_59 = arith.constant 7 : index
    %c0_60 = arith.constant 0 : index
    %c0_61 = arith.constant 0 : index
    %88 = vector.load %arg13[%c7_59, %c0_60, %c0_61] : memref<18x18x48xf32, #tpu.memory_space<vmem>>, vector<1x18x48xf32>
    %89 = vector.shape_cast %88 : vector<1x18x48xf32> to vector<18x48xf32>
    %90 = vector.shape_cast %87 : vector<18x48xf32> to vector<1x18x48xf32>
    tpu.vector_store %arg13[%c7_59, %c0_60, %c0_61], %90 {strides = array<i32>} : memref<18x18x48xf32, #tpu.memory_space<vmem>>, vector<1x18x48xf32>,
    %c0_62 = arith.constant 0 : index
    %c8 = arith.constant 8 : index
    %c0_63 = arith.constant 0 : index
    %c0_64 = arith.constant 0 : index
    %91 = vector.load %arg1[%c0_62, %c8, %c0_63, %c0_64] : memref<1x18x18x8xf32, #tpu.memory_space<vmem>>, vector<1x1x18x8xf32>
    %92 = vector.shape_cast %91 : vector<1x1x18x8xf32> to vector<18x8xf32>
    %cst_65 = arith.constant dense<0.000000e+00> : vector<18x48xf32>
    %93 = tpu.matmul %92, %0, %cst_65 {dimension_numbers = #tpu.dot_dimension_numbers<[1], [0], [0], [1], [0, 0, 1, 1], [], []>} : vector<18x8xf32>, vector<8x48xf32>, vector<18x48xf32> -> vector<18x48xf32>
    %94 = vector.broadcast %1 : vector<1x48xf32> to vector<18x48xf32>
    %95 = arith.addf %93, %94 : vector<18x48xf32>
    %cst_66 = arith.constant 0.000000e+00 : f32
    %96 = vector.broadcast %cst_66 : f32 to vector<18x48xf32>
    %97 = arith.maximumf %95, %96 : vector<18x48xf32>
    %98 = arith.mulf %97, %9 : vector<18x48xf32>
    %c8_67 = arith.constant 8 : index
    %c0_68 = arith.constant 0 : index
    %c0_69 = arith.constant 0 : index
    %99 = vector.load %arg13[%c8_67, %c0_68, %c0_69] : memref<18x18x48xf32, #tpu.memory_space<vmem>>, vector<1x18x48xf32>
    %100 = vector.shape_cast %99 : vector<1x18x48xf32> to vector<18x48xf32>
    %101 = vector.shape_cast %98 : vector<18x48xf32> to vector<1x18x48xf32>
    tpu.vector_store %arg13[%c8_67, %c0_68, %c0_69], %101 {strides = array<i32>} : memref<18x18x48xf32, #tpu.memory_space<vmem>>, vector<1x18x48xf32>,
    %c0_70 = arith.constant 0 : index
    %c9 = arith.constant 9 : index
    %c0_71 = arith.constant 0 : index
    %c0_72 = arith.constant 0 : index
    %102 = vector.load %arg1[%c0_70, %c9, %c0_71, %c0_72] : memref<1x18x18x8xf32, #tpu.memory_space<vmem>>, vector<1x1x18x8xf32>
    %103 = vector.shape_cast %102 : vector<1x1x18x8xf32> to vector<18x8xf32>
    %cst_73 = arith.constant dense<0.000000e+00> : vector<18x48xf32>
    %104 = tpu.matmul %103, %0, %cst_73 {dimension_numbers = #tpu.dot_dimension_numbers<[1], [0], [0], [1], [0, 0, 1, 1], [], []>} : vector<18x8xf32>, vector<8x48xf32>, vector<18x48xf32> -> vector<18x48xf32>
    %105 = vector.broadcast %1 : vector<1x48xf32> to vector<18x48xf32>
    %106 = arith.addf %104, %105 : vector<18x48xf32>
    %cst_74 = arith.constant 0.000000e+00 : f32
    %107 = vector.broadcast %cst_74 : f32 to vector<18x48xf32>
    %108 = arith.maximumf %106, %107 : vector<18x48xf32>
    %109 = arith.mulf %108, %9 : vector<18x48xf32>
    %c9_75 = arith.constant 9 : index
    %c0_76 = arith.constant 0 : index
    %c0_77 = arith.constant 0 : index
    %110 = vector.load %arg13[%c9_75, %c0_76, %c0_77] : memref<18x18x48xf32, #tpu.memory_space<vmem>>, vector<1x18x48xf32>
    %111 = vector.shape_cast %110 : vector<1x18x48xf32> to vector<18x48xf32>
    %112 = vector.shape_cast %109 : vector<18x48xf32> to vector<1x18x48xf32>
    tpu.vector_store %arg13[%c9_75, %c0_76, %c0_77], %112 {strides = array<i32>} : memref<18x18x48xf32, #tpu.memory_space<vmem>>, vector<1x18x48xf32>,
    %c0_78 = arith.constant 0 : index
    %c10 = arith.constant 10 : index
    %c0_79 = arith.constant 0 : index
    %c0_80 = arith.constant 0 : index
    %113 = vector.load %arg1[%c0_78, %c10, %c0_79, %c0_80] : memref<1x18x18x8xf32, #tpu.memory_space<vmem>>, vector<1x1x18x8xf32>
    %114 = vector.shape_cast %113 : vector<1x1x18x8xf32> to vector<18x8xf32>
    %cst_81 = arith.constant dense<0.000000e+00> : vector<18x48xf32>
    %115 = tpu.matmul %114, %0, %cst_81 {dimension_numbers = #tpu.dot_dimension_numbers<[1], [0], [0], [1], [0, 0, 1, 1], [], []>} : vector<18x8xf32>, vector<8x48xf32>, vector<18x48xf32> -> vector<18x48xf32>
    %116 = vector.broadcast %1 : vector<1x48xf32> to vector<18x48xf32>
    %117 = arith.addf %115, %116 : vector<18x48xf32>
    %cst_82 = arith.constant 0.000000e+00 : f32
    %118 = vector.broadcast %cst_82 : f32 to vector<18x48xf32>
    %119 = arith.maximumf %117, %118 : vector<18x48xf32>
    %120 = arith.mulf %119, %9 : vector<18x48xf32>
    %c10_83 = arith.constant 10 : index
    %c0_84 = arith.constant 0 : index
    %c0_85 = arith.constant 0 : index
    %121 = vector.load %arg13[%c10_83, %c0_84, %c0_85] : memref<18x18x48xf32, #tpu.memory_space<vmem>>, vector<1x18x48xf32>
    %122 = vector.shape_cast %121 : vector<1x18x48xf32> to vector<18x48xf32>
    %123 = vector.shape_cast %120 : vector<18x48xf32> to vector<1x18x48xf32>
    tpu.vector_store %arg13[%c10_83, %c0_84, %c0_85], %123 {strides = array<i32>} : memref<18x18x48xf32, #tpu.memory_space<vmem>>, vector<1x18x48xf32>,
    %c0_86 = arith.constant 0 : index
    %c11 = arith.constant 11 : index
    %c0_87 = arith.constant 0 : index
    %c0_88 = arith.constant 0 : index
    %124 = vector.load %arg1[%c0_86, %c11, %c0_87, %c0_88] : memref<1x18x18x8xf32, #tpu.memory_space<vmem>>, vector<1x1x18x8xf32>
    %125 = vector.shape_cast %124 : vector<1x1x18x8xf32> to vector<18x8xf32>
    %cst_89 = arith.constant dense<0.000000e+00> : vector<18x48xf32>
    %126 = tpu.matmul %125, %0, %cst_89 {dimension_numbers = #tpu.dot_dimension_numbers<[1], [0], [0], [1], [0, 0, 1, 1], [], []>} : vector<18x8xf32>, vector<8x48xf32>, vector<18x48xf32> -> vector<18x48xf32>
    %127 = vector.broadcast %1 : vector<1x48xf32> to vector<18x48xf32>
    %128 = arith.addf %126, %127 : vector<18x48xf32>
    %cst_90 = arith.constant 0.000000e+00 : f32
    %129 = vector.broadcast %cst_90 : f32 to vector<18x48xf32>
    %130 = arith.maximumf %128, %129 : vector<18x48xf32>
    %131 = arith.mulf %130, %9 : vector<18x48xf32>
    %c11_91 = arith.constant 11 : index
    %c0_92 = arith.constant 0 : index
    %c0_93 = arith.constant 0 : index
    %132 = vector.load %arg13[%c11_91, %c0_92, %c0_93] : memref<18x18x48xf32, #tpu.memory_space<vmem>>, vector<1x18x48xf32>
    %133 = vector.shape_cast %132 : vector<1x18x48xf32> to vector<18x48xf32>
    %134 = vector.shape_cast %131 : vector<18x48xf32> to vector<1x18x48xf32>
    tpu.vector_store %arg13[%c11_91, %c0_92, %c0_93], %134 {strides = array<i32>} : memref<18x18x48xf32, #tpu.memory_space<vmem>>, vector<1x18x48xf32>,
    %c0_94 = arith.constant 0 : index
    %c12 = arith.constant 12 : index
    %c0_95 = arith.constant 0 : index
    %c0_96 = arith.constant 0 : index
    %135 = vector.load %arg1[%c0_94, %c12, %c0_95, %c0_96] : memref<1x18x18x8xf32, #tpu.memory_space<vmem>>, vector<1x1x18x8xf32>
    %136 = vector.shape_cast %135 : vector<1x1x18x8xf32> to vector<18x8xf32>
    %cst_97 = arith.constant dense<0.000000e+00> : vector<18x48xf32>
    %137 = tpu.matmul %136, %0, %cst_97 {dimension_numbers = #tpu.dot_dimension_numbers<[1], [0], [0], [1], [0, 0, 1, 1], [], []>} : vector<18x8xf32>, vector<8x48xf32>, vector<18x48xf32> -> vector<18x48xf32>
    %138 = vector.broadcast %1 : vector<1x48xf32> to vector<18x48xf32>
    %139 = arith.addf %137, %138 : vector<18x48xf32>
    %cst_98 = arith.constant 0.000000e+00 : f32
    %140 = vector.broadcast %cst_98 : f32 to vector<18x48xf32>
    %141 = arith.maximumf %139, %140 : vector<18x48xf32>
    %142 = arith.mulf %141, %9 : vector<18x48xf32>
    %c12_99 = arith.constant 12 : index
    %c0_100 = arith.constant 0 : index
    %c0_101 = arith.constant 0 : index
    %143 = vector.load %arg13[%c12_99, %c0_100, %c0_101] : memref<18x18x48xf32, #tpu.memory_space<vmem>>, vector<1x18x48xf32>
    %144 = vector.shape_cast %143 : vector<1x18x48xf32> to vector<18x48xf32>
    %145 = vector.shape_cast %142 : vector<18x48xf32> to vector<1x18x48xf32>
    tpu.vector_store %arg13[%c12_99, %c0_100, %c0_101], %145 {strides = array<i32>} : memref<18x18x48xf32, #tpu.memory_space<vmem>>, vector<1x18x48xf32>,
    %c0_102 = arith.constant 0 : index
    %c13 = arith.constant 13 : index
    %c0_103 = arith.constant 0 : index
    %c0_104 = arith.constant 0 : index
    %146 = vector.load %arg1[%c0_102, %c13, %c0_103, %c0_104] : memref<1x18x18x8xf32, #tpu.memory_space<vmem>>, vector<1x1x18x8xf32>
    %147 = vector.shape_cast %146 : vector<1x1x18x8xf32> to vector<18x8xf32>
    %cst_105 = arith.constant dense<0.000000e+00> : vector<18x48xf32>
    %148 = tpu.matmul %147, %0, %cst_105 {dimension_numbers = #tpu.dot_dimension_numbers<[1], [0], [0], [1], [0, 0, 1, 1], [], []>} : vector<18x8xf32>, vector<8x48xf32>, vector<18x48xf32> -> vector<18x48xf32>
    %149 = vector.broadcast %1 : vector<1x48xf32> to vector<18x48xf32>
    %150 = arith.addf %148, %149 : vector<18x48xf32>
    %cst_106 = arith.constant 0.000000e+00 : f32
    %151 = vector.broadcast %cst_106 : f32 to vector<18x48xf32>
    %152 = arith.maximumf %150, %151 : vector<18x48xf32>
    %153 = arith.mulf %152, %9 : vector<18x48xf32>
    %c13_107 = arith.constant 13 : index
    %c0_108 = arith.constant 0 : index
    %c0_109 = arith.constant 0 : index
    %154 = vector.load %arg13[%c13_107, %c0_108, %c0_109] : memref<18x18x48xf32, #tpu.memory_space<vmem>>, vector<1x18x48xf32>
    %155 = vector.shape_cast %154 : vector<1x18x48xf32> to vector<18x48xf32>
    %156 = vector.shape_cast %153 : vector<18x48xf32> to vector<1x18x48xf32>
    tpu.vector_store %arg13[%c13_107, %c0_108, %c0_109], %156 {strides = array<i32>} : memref<18x18x48xf32, #tpu.memory_space<vmem>>, vector<1x18x48xf32>,
    %c0_110 = arith.constant 0 : index
    %c14 = arith.constant 14 : index
    %c0_111 = arith.constant 0 : index
    %c0_112 = arith.constant 0 : index
    %157 = vector.load %arg1[%c0_110, %c14, %c0_111, %c0_112] : memref<1x18x18x8xf32, #tpu.memory_space<vmem>>, vector<1x1x18x8xf32>
    %158 = vector.shape_cast %157 : vector<1x1x18x8xf32> to vector<18x8xf32>
    %cst_113 = arith.constant dense<0.000000e+00> : vector<18x48xf32>
    %159 = tpu.matmul %158, %0, %cst_113 {dimension_numbers = #tpu.dot_dimension_numbers<[1], [0], [0], [1], [0, 0, 1, 1], [], []>} : vector<18x8xf32>, vector<8x48xf32>, vector<18x48xf32> -> vector<18x48xf32>
    %160 = vector.broadcast %1 : vector<1x48xf32> to vector<18x48xf32>
    %161 = arith.addf %159, %160 : vector<18x48xf32>
    %cst_114 = arith.constant 0.000000e+00 : f32
    %162 = vector.broadcast %cst_114 : f32 to vector<18x48xf32>
    %163 = arith.maximumf %161, %162 : vector<18x48xf32>
    %164 = arith.mulf %163, %9 : vector<18x48xf32>
    %c14_115 = arith.constant 14 : index
    %c0_116 = arith.constant 0 : index
    %c0_117 = arith.constant 0 : index
    %165 = vector.load %arg13[%c14_115, %c0_116, %c0_117] : memref<18x18x48xf32, #tpu.memory_space<vmem>>, vector<1x18x48xf32>
    %166 = vector.shape_cast %165 : vector<1x18x48xf32> to vector<18x48xf32>
    %167 = vector.shape_cast %164 : vector<18x48xf32> to vector<1x18x48xf32>
    tpu.vector_store %arg13[%c14_115, %c0_116, %c0_117], %167 {strides = array<i32>} : memref<18x18x48xf32, #tpu.memory_space<vmem>>, vector<1x18x48xf32>,
    %c0_118 = arith.constant 0 : index
    %c15 = arith.constant 15 : index
    %c0_119 = arith.constant 0 : index
    %c0_120 = arith.constant 0 : index
    %168 = vector.load %arg1[%c0_118, %c15, %c0_119, %c0_120] : memref<1x18x18x8xf32, #tpu.memory_space<vmem>>, vector<1x1x18x8xf32>
    %169 = vector.shape_cast %168 : vector<1x1x18x8xf32> to vector<18x8xf32>
    %cst_121 = arith.constant dense<0.000000e+00> : vector<18x48xf32>
    %170 = tpu.matmul %169, %0, %cst_121 {dimension_numbers = #tpu.dot_dimension_numbers<[1], [0], [0], [1], [0, 0, 1, 1], [], []>} : vector<18x8xf32>, vector<8x48xf32>, vector<18x48xf32> -> vector<18x48xf32>
    %171 = vector.broadcast %1 : vector<1x48xf32> to vector<18x48xf32>
    %172 = arith.addf %170, %171 : vector<18x48xf32>
    %cst_122 = arith.constant 0.000000e+00 : f32
    %173 = vector.broadcast %cst_122 : f32 to vector<18x48xf32>
    %174 = arith.maximumf %172, %173 : vector<18x48xf32>
    %175 = arith.mulf %174, %9 : vector<18x48xf32>
    %c15_123 = arith.constant 15 : index
    %c0_124 = arith.constant 0 : index
    %c0_125 = arith.constant 0 : index
    %176 = vector.load %arg13[%c15_123, %c0_124, %c0_125] : memref<18x18x48xf32, #tpu.memory_space<vmem>>, vector<1x18x48xf32>
    %177 = vector.shape_cast %176 : vector<1x18x48xf32> to vector<18x48xf32>
    %178 = vector.shape_cast %175 : vector<18x48xf32> to vector<1x18x48xf32>
    tpu.vector_store %arg13[%c15_123, %c0_124, %c0_125], %178 {strides = array<i32>} : memref<18x18x48xf32, #tpu.memory_space<vmem>>, vector<1x18x48xf32>,
    %c0_126 = arith.constant 0 : index
    %c16 = arith.constant 16 : index
    %c0_127 = arith.constant 0 : index
    %c0_128 = arith.constant 0 : index
    %179 = vector.load %arg1[%c0_126, %c16, %c0_127, %c0_128] : memref<1x18x18x8xf32, #tpu.memory_space<vmem>>, vector<1x1x18x8xf32>
    %180 = vector.shape_cast %179 : vector<1x1x18x8xf32> to vector<18x8xf32>
    %cst_129 = arith.constant dense<0.000000e+00> : vector<18x48xf32>
    %181 = tpu.matmul %180, %0, %cst_129 {dimension_numbers = #tpu.dot_dimension_numbers<[1], [0], [0], [1], [0, 0, 1, 1], [], []>} : vector<18x8xf32>, vector<8x48xf32>, vector<18x48xf32> -> vector<18x48xf32>
    %182 = vector.broadcast %1 : vector<1x48xf32> to vector<18x48xf32>
    %183 = arith.addf %181, %182 : vector<18x48xf32>
    %cst_130 = arith.constant 0.000000e+00 : f32
    %184 = vector.broadcast %cst_130 : f32 to vector<18x48xf32>
    %185 = arith.maximumf %183, %184 : vector<18x48xf32>
    %186 = arith.mulf %185, %9 : vector<18x48xf32>
    %c16_131 = arith.constant 16 : index
    %c0_132 = arith.constant 0 : index
    %c0_133 = arith.constant 0 : index
    %187 = vector.load %arg13[%c16_131, %c0_132, %c0_133] : memref<18x18x48xf32, #tpu.memory_space<vmem>>, vector<1x18x48xf32>
    %188 = vector.shape_cast %187 : vector<1x18x48xf32> to vector<18x48xf32>
    %189 = vector.shape_cast %186 : vector<18x48xf32> to vector<1x18x48xf32>
    tpu.vector_store %arg13[%c16_131, %c0_132, %c0_133], %189 {strides = array<i32>} : memref<18x18x48xf32, #tpu.memory_space<vmem>>, vector<1x18x48xf32>,
    %c17 = arith.constant 17 : index
    %c0_134 = arith.constant 0 : index
    %c0_135 = arith.constant 0 : index
    %190 = vector.load %arg13[%c17, %c0_134, %c0_135] : memref<18x18x48xf32, #tpu.memory_space<vmem>>, vector<1x18x48xf32>
    %191 = vector.shape_cast %190 : vector<1x18x48xf32> to vector<18x48xf32>
    %192 = vector.shape_cast %10 : vector<18x48xf32> to vector<1x18x48xf32>
    tpu.vector_store %arg13[%c17, %c0_134, %c0_135], %192 {strides = array<i32>} : memref<18x18x48xf32, #tpu.memory_space<vmem>>, vector<1x18x48xf32>,
    %c0_136 = arith.constant 0 : index
    %c0_137 = arith.constant 0 : index
    %c0_138 = arith.constant 0 : index
    %193 = vector.load %arg13[%c0_136, %c0_137, %c0_138] : memref<18x18x48xf32, #tpu.memory_space<vmem>>, vector<18x18x48xf32>
    %c0_139 = arith.constant 0 : index
    %c0_140 = arith.constant 0 : index
    %c0_141 = arith.constant 0 : index
    %194 = vector.load %arg4[%c0_139, %c0_140, %c0_141] : memref<3x3x48xf32, #tpu.memory_space<vmem>>, vector<3x3x48xf32>
    %c0_142 = arith.constant 0 : index
    %c0_143 = arith.constant 0 : index
    %195 = vector.load %arg5[%c0_142, %c0_143] : memref<1x48xf32, #tpu.memory_space<vmem>>, vector<1x48xf32>
    %196 = vector.shape_cast %195 : vector<1x48xf32> to vector<1x1x48xf32>
    %cst_144 = arith.constant 0.000000e+00 : f32
    %197 = vector.broadcast %cst_144 : f32 to vector<16x16x48xf32>
    %198 = vector.extract_strided_slice %193 {offsets = [0, 0, 0], sizes = [16, 16, 48], strides = [1, 1, 1]} : vector<18x18x48xf32> to vector<16x16x48xf32>
    %199 = vector.extract_strided_slice %194 {offsets = [0, 0, 0], sizes = [1, 1, 48], strides = [1, 1, 1]} : vector<3x3x48xf32> to vector<1x1x48xf32>
    %200 = vector.shape_cast %199 : vector<1x1x48xf32> to vector<1x48xf32>
    %201 = vector.shape_cast %200 : vector<1x48xf32> to vector<1x1x48xf32>
    %202 = vector.broadcast %201 : vector<1x1x48xf32> to vector<16x16x48xf32>
    %203 = arith.mulf %198, %202 : vector<16x16x48xf32>
    %204 = arith.addf %197, %203 : vector<16x16x48xf32>
    %205 = vector.extract_strided_slice %193 {offsets = [0, 1, 0], sizes = [16, 16, 48], strides = [1, 1, 1]} : vector<18x18x48xf32> to vector<16x16x48xf32>
    %206 = vector.extract_strided_slice %194 {offsets = [0, 1, 0], sizes = [1, 1, 48], strides = [1, 1, 1]} : vector<3x3x48xf32> to vector<1x1x48xf32>
    %207 = vector.shape_cast %206 : vector<1x1x48xf32> to vector<1x48xf32>
    %208 = vector.shape_cast %207 : vector<1x48xf32> to vector<1x1x48xf32>
    %209 = vector.broadcast %208 : vector<1x1x48xf32> to vector<16x16x48xf32>
    %210 = arith.mulf %205, %209 : vector<16x16x48xf32>
    %211 = arith.addf %204, %210 : vector<16x16x48xf32>
    %212 = vector.extract_strided_slice %193 {offsets = [0, 2, 0], sizes = [16, 16, 48], strides = [1, 1, 1]} : vector<18x18x48xf32> to vector<16x16x48xf32>
    %213 = vector.extract_strided_slice %194 {offsets = [0, 2, 0], sizes = [1, 1, 48], strides = [1, 1, 1]} : vector<3x3x48xf32> to vector<1x1x48xf32>
    %214 = vector.shape_cast %213 : vector<1x1x48xf32> to vector<1x48xf32>
    %215 = vector.shape_cast %214 : vector<1x48xf32> to vector<1x1x48xf32>
    %216 = vector.broadcast %215 : vector<1x1x48xf32> to vector<16x16x48xf32>
    %217 = arith.mulf %212, %216 : vector<16x16x48xf32>
    %218 = arith.addf %211, %217 : vector<16x16x48xf32>
    %219 = vector.extract_strided_slice %193 {offsets = [1, 0, 0], sizes = [16, 16, 48], strides = [1, 1, 1]} : vector<18x18x48xf32> to vector<16x16x48xf32>
    %220 = vector.extract_strided_slice %194 {offsets = [1, 0, 0], sizes = [1, 1, 48], strides = [1, 1, 1]} : vector<3x3x48xf32> to vector<1x1x48xf32>
    %221 = vector.shape_cast %220 : vector<1x1x48xf32> to vector<1x48xf32>
    %222 = vector.shape_cast %221 : vector<1x48xf32> to vector<1x1x48xf32>
    %223 = vector.broadcast %222 : vector<1x1x48xf32> to vector<16x16x48xf32>
    %224 = arith.mulf %219, %223 : vector<16x16x48xf32>
    %225 = arith.addf %218, %224 : vector<16x16x48xf32>
    %226 = vector.extract_strided_slice %193 {offsets = [1, 1, 0], sizes = [16, 16, 48], strides = [1, 1, 1]} : vector<18x18x48xf32> to vector<16x16x48xf32>
    %227 = vector.extract_strided_slice %194 {offsets = [1, 1, 0], sizes = [1, 1, 48], strides = [1, 1, 1]} : vector<3x3x48xf32> to vector<1x1x48xf32>
    %228 = vector.shape_cast %227 : vector<1x1x48xf32> to vector<1x48xf32>
    %229 = vector.shape_cast %228 : vector<1x48xf32> to vector<1x1x48xf32>
    %230 = vector.broadcast %229 : vector<1x1x48xf32> to vector<16x16x48xf32>
    %231 = arith.mulf %226, %230 : vector<16x16x48xf32>
    %232 = arith.addf %225, %231 : vector<16x16x48xf32>
    %233 = vector.extract_strided_slice %193 {offsets = [1, 2, 0], sizes = [16, 16, 48], strides = [1, 1, 1]} : vector<18x18x48xf32> to vector<16x16x48xf32>
    %234 = vector.extract_strided_slice %194 {offsets = [1, 2, 0], sizes = [1, 1, 48], strides = [1, 1, 1]} : vector<3x3x48xf32> to vector<1x1x48xf32>
    %235 = vector.shape_cast %234 : vector<1x1x48xf32> to vector<1x48xf32>
    %236 = vector.shape_cast %235 : vector<1x48xf32> to vector<1x1x48xf32>
    %237 = vector.broadcast %236 : vector<1x1x48xf32> to vector<16x16x48xf32>
    %238 = arith.mulf %233, %237 : vector<16x16x48xf32>
    %239 = arith.addf %232, %238 : vector<16x16x48xf32>
    %240 = vector.extract_strided_slice %193 {offsets = [2, 0, 0], sizes = [16, 16, 48], strides = [1, 1, 1]} : vector<18x18x48xf32> to vector<16x16x48xf32>
    %241 = vector.extract_strided_slice %194 {offsets = [2, 0, 0], sizes = [1, 1, 48], strides = [1, 1, 1]} : vector<3x3x48xf32> to vector<1x1x48xf32>
    %242 = vector.shape_cast %241 : vector<1x1x48xf32> to vector<1x48xf32>
    %243 = vector.shape_cast %242 : vector<1x48xf32> to vector<1x1x48xf32>
    %244 = vector.broadcast %243 : vector<1x1x48xf32> to vector<16x16x48xf32>
    %245 = arith.mulf %240, %244 : vector<16x16x48xf32>
    %246 = arith.addf %239, %245 : vector<16x16x48xf32>
    %247 = vector.extract_strided_slice %193 {offsets = [2, 1, 0], sizes = [16, 16, 48], strides = [1, 1, 1]} : vector<18x18x48xf32> to vector<16x16x48xf32>
    %248 = vector.extract_strided_slice %194 {offsets = [2, 1, 0], sizes = [1, 1, 48], strides = [1, 1, 1]} : vector<3x3x48xf32> to vector<1x1x48xf32>
    %249 = vector.shape_cast %248 : vector<1x1x48xf32> to vector<1x48xf32>
    %250 = vector.shape_cast %249 : vector<1x48xf32> to vector<1x1x48xf32>
    %251 = vector.broadcast %250 : vector<1x1x48xf32> to vector<16x16x48xf32>
    %252 = arith.mulf %247, %251 : vector<16x16x48xf32>
    %253 = arith.addf %246, %252 : vector<16x16x48xf32>
    %254 = vector.extract_strided_slice %193 {offsets = [2, 2, 0], sizes = [16, 16, 48], strides = [1, 1, 1]} : vector<18x18x48xf32> to vector<16x16x48xf32>
    %255 = vector.extract_strided_slice %194 {offsets = [2, 2, 0], sizes = [1, 1, 48], strides = [1, 1, 1]} : vector<3x3x48xf32> to vector<1x1x48xf32>
    %256 = vector.shape_cast %255 : vector<1x1x48xf32> to vector<1x48xf32>
    %257 = vector.shape_cast %256 : vector<1x48xf32> to vector<1x1x48xf32>
    %258 = vector.broadcast %257 : vector<1x1x48xf32> to vector<16x16x48xf32>
    %259 = arith.mulf %254, %258 : vector<16x16x48xf32>
    %260 = arith.addf %253, %259 : vector<16x16x48xf32>
    %261 = vector.broadcast %196 : vector<1x1x48xf32> to vector<16x16x48xf32>
    %262 = arith.addf %260, %261 : vector<16x16x48xf32>
    %cst_145 = arith.constant 0.000000e+00 : f32
    %263 = vector.broadcast %cst_145 : f32 to vector<16x16x48xf32>
    %264 = arith.maximumf %262, %263 : vector<16x16x48xf32>
    %cst_146 = arith.constant dense<0.000000e+00> : vector<16x48xf32>
    %265 = vector.multi_reduction <add>, %264, %cst_146 [0] : vector<16x16x48xf32> to vector<16x48xf32>
    %cst_147 = arith.constant 1.600000e+01 : f32
    %266 = vector.broadcast %cst_147 : f32 to vector<16x48xf32>
    %267 = arith.divf %265, %266 : vector<16x48xf32>
    %cst_148 = arith.constant dense<0.000000e+00> : vector<48xf32>
    %268 = vector.multi_reduction <add>, %267, %cst_148 [0] : vector<16x48xf32> to vector<48xf32>
    %269 = vector.shape_cast %268 : vector<48xf32> to vector<1x48xf32>
    %cst_149 = arith.constant 1.600000e+01 : f32
    %270 = vector.broadcast %cst_149 : f32 to vector<1x48xf32>
    %271 = arith.divf %269, %270 : vector<1x48xf32>
    %c0_150 = arith.constant 0 : index
    %c0_151 = arith.constant 0 : index
    %272 = vector.load %arg6[%c0_150, %c0_151] : memref<48x16xf32, #tpu.memory_space<vmem>>, vector<48x16xf32>
    %cst_152 = arith.constant dense<0.000000e+00> : vector<1x16xf32>
    %273 = tpu.matmul %271, %272, %cst_152 {dimension_numbers = #tpu.dot_dimension_numbers<[1], [0], [0], [1], [0, 0, 1, 1], [], []>} : vector<1x48xf32>, vector<48x16xf32>, vector<1x16xf32> -> vector<1x16xf32>
    %c0_153 = arith.constant 0 : index
    %c0_154 = arith.constant 0 : index
    %274 = vector.load %arg7[%c0_153, %c0_154] : memref<1x16xf32, #tpu.memory_space<vmem>>, vector<1x16xf32>
    %275 = arith.addf %273, %274 : vector<1x16xf32>
    %cst_155 = arith.constant 0.000000e+00 : f32
    %276 = vector.broadcast %cst_155 : f32 to vector<1x16xf32>
    %277 = arith.maximumf %275, %276 : vector<1x16xf32>
    %c0_156 = arith.constant 0 : index
    %c0_157 = arith.constant 0 : index
    %278 = vector.load %arg8[%c0_156, %c0_157] : memref<16x48xf32, #tpu.memory_space<vmem>>, vector<16x48xf32>
    %cst_158 = arith.constant dense<0.000000e+00> : vector<1x48xf32>
    %279 = tpu.matmul %277, %278, %cst_158 {dimension_numbers = #tpu.dot_dimension_numbers<[1], [0], [0], [1], [0, 0, 1, 1], [], []>} : vector<1x16xf32>, vector<16x48xf32>, vector<1x48xf32> -> vector<1x48xf32>
    %c0_159 = arith.constant 0 : index
    %c0_160 = arith.constant 0 : index
    %280 = vector.load %arg9[%c0_159, %c0_160] : memref<1x48xf32, #tpu.memory_space<vmem>>, vector<1x48xf32>
    %281 = arith.addf %279, %280 : vector<1x48xf32>
    %cst_161 = arith.constant 3.000000e+00 : f32
    %282 = vector.broadcast %cst_161 : f32 to vector<1x48xf32>
    %283 = arith.addf %281, %282 : vector<1x48xf32>
    %cst_162 = arith.constant 0.000000e+00 : f32
    %cst_163 = arith.constant 6.000000e+00 : f32
    %284 = vector.broadcast %cst_162 : f32 to vector<1x48xf32>
    %285 = arith.maximumf %284, %283 : vector<1x48xf32>
    %286 = vector.broadcast %cst_163 : f32 to vector<1x48xf32>
    %287 = arith.minimumf %286, %285 : vector<1x48xf32>
    %cst_164 = arith.constant 6.000000e+00 : f32
    %288 = vector.broadcast %cst_164 : f32 to vector<1x48xf32>
    %289 = arith.divf %287, %288 : vector<1x48xf32>
    %290 = vector.shape_cast %289 : vector<1x48xf32> to vector<1x1x48xf32>
    %291 = vector.broadcast %290 : vector<1x1x48xf32> to vector<16x16x48xf32>
    %292 = arith.mulf %264, %291 : vector<16x16x48xf32>
    %c0_165 = arith.constant 0 : index
    %c0_166 = arith.constant 0 : index
    %293 = vector.load %arg10[%c0_165, %c0_166] : memref<48x16xf32, #tpu.memory_space<vmem>>, vector<48x16xf32>
    %c0_167 = arith.constant 0 : index
    %c0_168 = arith.constant 0 : index
    %294 = vector.load %arg11[%c0_167, %c0_168] : memref<1x16xf32, #tpu.memory_space<vmem>>, vector<1x16xf32>
    %295 = vector.extract_strided_slice %292 {offsets = [0, 0, 0], sizes = [1, 16, 48], strides = [1, 1, 1]} : vector<16x16x48xf32> to vector<1x16x48xf32>
    %296 = vector.shape_cast %295 : vector<1x16x48xf32> to vector<16x48xf32>
    %cst_169 = arith.constant dense<0.000000e+00> : vector<16x16xf32>
    %297 = tpu.matmul %296, %293, %cst_169 {dimension_numbers = #tpu.dot_dimension_numbers<[1], [0], [0], [1], [0, 0, 1, 1], [], []>} : vector<16x48xf32>, vector<48x16xf32>, vector<16x16xf32> -> vector<16x16xf32>
    %298 = vector.broadcast %294 : vector<1x16xf32> to vector<16x16xf32>
    %299 = arith.addf %297, %298 : vector<16x16xf32>
    %c0_170 = arith.constant 0 : index
    %c0_171 = arith.constant 0 : index
    %c0_172 = arith.constant 0 : index
    %c0_173 = arith.constant 0 : index
    %300 = vector.load %arg12[%c0_170, %c0_171, %c0_172, %c0_173] : memref<1x16x16x16xf32, #tpu.memory_space<vmem>>, vector<1x1x16x16xf32>
    %301 = vector.shape_cast %300 : vector<1x1x16x16xf32> to vector<16x16xf32>
    %302 = vector.shape_cast %299 : vector<16x16xf32> to vector<1x1x16x16xf32>
    tpu.vector_store %arg12[%c0_170, %c0_171, %c0_172, %c0_173], %302 {strides = array<i32>} : memref<1x16x16x16xf32, #tpu.memory_space<vmem>>, vector<1x1x16x16xf32>,
    %303 = vector.extract_strided_slice %292 {offsets = [1, 0, 0], sizes = [1, 16, 48], strides = [1, 1, 1]} : vector<16x16x48xf32> to vector<1x16x48xf32>
    %304 = vector.shape_cast %303 : vector<1x16x48xf32> to vector<16x48xf32>
    %cst_174 = arith.constant dense<0.000000e+00> : vector<16x16xf32>
    %305 = tpu.matmul %304, %293, %cst_174 {dimension_numbers = #tpu.dot_dimension_numbers<[1], [0], [0], [1], [0, 0, 1, 1], [], []>} : vector<16x48xf32>, vector<48x16xf32>, vector<16x16xf32> -> vector<16x16xf32>
    %306 = vector.broadcast %294 : vector<1x16xf32> to vector<16x16xf32>
    %307 = arith.addf %305, %306 : vector<16x16xf32>
    %c0_175 = arith.constant 0 : index
    %c1_176 = arith.constant 1 : index
    %c0_177 = arith.constant 0 : index
    %c0_178 = arith.constant 0 : index
    %308 = vector.load %arg12[%c0_175, %c1_176, %c0_177, %c0_178] : memref<1x16x16x16xf32, #tpu.memory_space<vmem>>, vector<1x1x16x16xf32>
    %309 = vector.shape_cast %308 : vector<1x1x16x16xf32> to vector<16x16xf32>
    %310 = vector.shape_cast %307 : vector<16x16xf32> to vector<1x1x16x16xf32>
    tpu.vector_store %arg12[%c0_175, %c1_176, %c0_177, %c0_178], %310 {strides = array<i32>} : memref<1x16x16x16xf32, #tpu.memory_space<vmem>>, vector<1x1x16x16xf32>,
    %311 = vector.extract_strided_slice %292 {offsets = [2, 0, 0], sizes = [1, 16, 48], strides = [1, 1, 1]} : vector<16x16x48xf32> to vector<1x16x48xf32>
    %312 = vector.shape_cast %311 : vector<1x16x48xf32> to vector<16x48xf32>
    %cst_179 = arith.constant dense<0.000000e+00> : vector<16x16xf32>
    %313 = tpu.matmul %312, %293, %cst_179 {dimension_numbers = #tpu.dot_dimension_numbers<[1], [0], [0], [1], [0, 0, 1, 1], [], []>} : vector<16x48xf32>, vector<48x16xf32>, vector<16x16xf32> -> vector<16x16xf32>
    %314 = vector.broadcast %294 : vector<1x16xf32> to vector<16x16xf32>
    %315 = arith.addf %313, %314 : vector<16x16xf32>
    %c0_180 = arith.constant 0 : index
    %c2_181 = arith.constant 2 : index
    %c0_182 = arith.constant 0 : index
    %c0_183 = arith.constant 0 : index
    %316 = vector.load %arg12[%c0_180, %c2_181, %c0_182, %c0_183] : memref<1x16x16x16xf32, #tpu.memory_space<vmem>>, vector<1x1x16x16xf32>
    %317 = vector.shape_cast %316 : vector<1x1x16x16xf32> to vector<16x16xf32>
    %318 = vector.shape_cast %315 : vector<16x16xf32> to vector<1x1x16x16xf32>
    tpu.vector_store %arg12[%c0_180, %c2_181, %c0_182, %c0_183], %318 {strides = array<i32>} : memref<1x16x16x16xf32, #tpu.memory_space<vmem>>, vector<1x1x16x16xf32>,
    %319 = vector.extract_strided_slice %292 {offsets = [3, 0, 0], sizes = [1, 16, 48], strides = [1, 1, 1]} : vector<16x16x48xf32> to vector<1x16x48xf32>
    %320 = vector.shape_cast %319 : vector<1x16x48xf32> to vector<16x48xf32>
    %cst_184 = arith.constant dense<0.000000e+00> : vector<16x16xf32>
    %321 = tpu.matmul %320, %293, %cst_184 {dimension_numbers = #tpu.dot_dimension_numbers<[1], [0], [0], [1], [0, 0, 1, 1], [], []>} : vector<16x48xf32>, vector<48x16xf32>, vector<16x16xf32> -> vector<16x16xf32>
    %322 = vector.broadcast %294 : vector<1x16xf32> to vector<16x16xf32>
    %323 = arith.addf %321, %322 : vector<16x16xf32>
    %c0_185 = arith.constant 0 : index
    %c3_186 = arith.constant 3 : index
    %c0_187 = arith.constant 0 : index
    %c0_188 = arith.constant 0 : index
    %324 = vector.load %arg12[%c0_185, %c3_186, %c0_187, %c0_188] : memref<1x16x16x16xf32, #tpu.memory_space<vmem>>, vector<1x1x16x16xf32>
    %325 = vector.shape_cast %324 : vector<1x1x16x16xf32> to vector<16x16xf32>
    %326 = vector.shape_cast %323 : vector<16x16xf32> to vector<1x1x16x16xf32>
    tpu.vector_store %arg12[%c0_185, %c3_186, %c0_187, %c0_188], %326 {strides = array<i32>} : memref<1x16x16x16xf32, #tpu.memory_space<vmem>>, vector<1x1x16x16xf32>,
    %327 = vector.extract_strided_slice %292 {offsets = [4, 0, 0], sizes = [1, 16, 48], strides = [1, 1, 1]} : vector<16x16x48xf32> to vector<1x16x48xf32>
    %328 = vector.shape_cast %327 : vector<1x16x48xf32> to vector<16x48xf32>
    %cst_189 = arith.constant dense<0.000000e+00> : vector<16x16xf32>
    %329 = tpu.matmul %328, %293, %cst_189 {dimension_numbers = #tpu.dot_dimension_numbers<[1], [0], [0], [1], [0, 0, 1, 1], [], []>} : vector<16x48xf32>, vector<48x16xf32>, vector<16x16xf32> -> vector<16x16xf32>
    %330 = vector.broadcast %294 : vector<1x16xf32> to vector<16x16xf32>
    %331 = arith.addf %329, %330 : vector<16x16xf32>
    %c0_190 = arith.constant 0 : index
    %c4_191 = arith.constant 4 : index
    %c0_192 = arith.constant 0 : index
    %c0_193 = arith.constant 0 : index
    %332 = vector.load %arg12[%c0_190, %c4_191, %c0_192, %c0_193] : memref<1x16x16x16xf32, #tpu.memory_space<vmem>>, vector<1x1x16x16xf32>
    %333 = vector.shape_cast %332 : vector<1x1x16x16xf32> to vector<16x16xf32>
    %334 = vector.shape_cast %331 : vector<16x16xf32> to vector<1x1x16x16xf32>
    tpu.vector_store %arg12[%c0_190, %c4_191, %c0_192, %c0_193], %334 {strides = array<i32>} : memref<1x16x16x16xf32, #tpu.memory_space<vmem>>, vector<1x1x16x16xf32>,
    %335 = vector.extract_strided_slice %292 {offsets = [5, 0, 0], sizes = [1, 16, 48], strides = [1, 1, 1]} : vector<16x16x48xf32> to vector<1x16x48xf32>
    %336 = vector.shape_cast %335 : vector<1x16x48xf32> to vector<16x48xf32>
    %cst_194 = arith.constant dense<0.000000e+00> : vector<16x16xf32>
    %337 = tpu.matmul %336, %293, %cst_194 {dimension_numbers = #tpu.dot_dimension_numbers<[1], [0], [0], [1], [0, 0, 1, 1], [], []>} : vector<16x48xf32>, vector<48x16xf32>, vector<16x16xf32> -> vector<16x16xf32>
    %338 = vector.broadcast %294 : vector<1x16xf32> to vector<16x16xf32>
    %339 = arith.addf %337, %338 : vector<16x16xf32>
    %c0_195 = arith.constant 0 : index
    %c5_196 = arith.constant 5 : index
    %c0_197 = arith.constant 0 : index
    %c0_198 = arith.constant 0 : index
    %340 = vector.load %arg12[%c0_195, %c5_196, %c0_197, %c0_198] : memref<1x16x16x16xf32, #tpu.memory_space<vmem>>, vector<1x1x16x16xf32>
    %341 = vector.shape_cast %340 : vector<1x1x16x16xf32> to vector<16x16xf32>
    %342 = vector.shape_cast %339 : vector<16x16xf32> to vector<1x1x16x16xf32>
    tpu.vector_store %arg12[%c0_195, %c5_196, %c0_197, %c0_198], %342 {strides = array<i32>} : memref<1x16x16x16xf32, #tpu.memory_space<vmem>>, vector<1x1x16x16xf32>,
    %343 = vector.extract_strided_slice %292 {offsets = [6, 0, 0], sizes = [1, 16, 48], strides = [1, 1, 1]} : vector<16x16x48xf32> to vector<1x16x48xf32>
    %344 = vector.shape_cast %343 : vector<1x16x48xf32> to vector<16x48xf32>
    %cst_199 = arith.constant dense<0.000000e+00> : vector<16x16xf32>
    %345 = tpu.matmul %344, %293, %cst_199 {dimension_numbers = #tpu.dot_dimension_numbers<[1], [0], [0], [1], [0, 0, 1, 1], [], []>} : vector<16x48xf32>, vector<48x16xf32>, vector<16x16xf32> -> vector<16x16xf32>
    %346 = vector.broadcast %294 : vector<1x16xf32> to vector<16x16xf32>
    %347 = arith.addf %345, %346 : vector<16x16xf32>
    %c0_200 = arith.constant 0 : index
    %c6_201 = arith.constant 6 : index
    %c0_202 = arith.constant 0 : index
    %c0_203 = arith.constant 0 : index
    %348 = vector.load %arg12[%c0_200, %c6_201, %c0_202, %c0_203] : memref<1x16x16x16xf32, #tpu.memory_space<vmem>>, vector<1x1x16x16xf32>
    %349 = vector.shape_cast %348 : vector<1x1x16x16xf32> to vector<16x16xf32>
    %350 = vector.shape_cast %347 : vector<16x16xf32> to vector<1x1x16x16xf32>
    tpu.vector_store %arg12[%c0_200, %c6_201, %c0_202, %c0_203], %350 {strides = array<i32>} : memref<1x16x16x16xf32, #tpu.memory_space<vmem>>, vector<1x1x16x16xf32>,
    %351 = vector.extract_strided_slice %292 {offsets = [7, 0, 0], sizes = [1, 16, 48], strides = [1, 1, 1]} : vector<16x16x48xf32> to vector<1x16x48xf32>
    %352 = vector.shape_cast %351 : vector<1x16x48xf32> to vector<16x48xf32>
    %cst_204 = arith.constant dense<0.000000e+00> : vector<16x16xf32>
    %353 = tpu.matmul %352, %293, %cst_204 {dimension_numbers = #tpu.dot_dimension_numbers<[1], [0], [0], [1], [0, 0, 1, 1], [], []>} : vector<16x48xf32>, vector<48x16xf32>, vector<16x16xf32> -> vector<16x16xf32>
    %354 = vector.broadcast %294 : vector<1x16xf32> to vector<16x16xf32>
    %355 = arith.addf %353, %354 : vector<16x16xf32>
    %c0_205 = arith.constant 0 : index
    %c7_206 = arith.constant 7 : index
    %c0_207 = arith.constant 0 : index
    %c0_208 = arith.constant 0 : index
    %356 = vector.load %arg12[%c0_205, %c7_206, %c0_207, %c0_208] : memref<1x16x16x16xf32, #tpu.memory_space<vmem>>, vector<1x1x16x16xf32>
    %357 = vector.shape_cast %356 : vector<1x1x16x16xf32> to vector<16x16xf32>
    %358 = vector.shape_cast %355 : vector<16x16xf32> to vector<1x1x16x16xf32>
    tpu.vector_store %arg12[%c0_205, %c7_206, %c0_207, %c0_208], %358 {strides = array<i32>} : memref<1x16x16x16xf32, #tpu.memory_space<vmem>>, vector<1x1x16x16xf32>,
    %359 = vector.extract_strided_slice %292 {offsets = [8, 0, 0], sizes = [1, 16, 48], strides = [1, 1, 1]} : vector<16x16x48xf32> to vector<1x16x48xf32>
    %360 = vector.shape_cast %359 : vector<1x16x48xf32> to vector<16x48xf32>
    %cst_209 = arith.constant dense<0.000000e+00> : vector<16x16xf32>
    %361 = tpu.matmul %360, %293, %cst_209 {dimension_numbers = #tpu.dot_dimension_numbers<[1], [0], [0], [1], [0, 0, 1, 1], [], []>} : vector<16x48xf32>, vector<48x16xf32>, vector<16x16xf32> -> vector<16x16xf32>
    %362 = vector.broadcast %294 : vector<1x16xf32> to vector<16x16xf32>
    %363 = arith.addf %361, %362 : vector<16x16xf32>
    %c0_210 = arith.constant 0 : index
    %c8_211 = arith.constant 8 : index
    %c0_212 = arith.constant 0 : index
    %c0_213 = arith.constant 0 : index
    %364 = vector.load %arg12[%c0_210, %c8_211, %c0_212, %c0_213] : memref<1x16x16x16xf32, #tpu.memory_space<vmem>>, vector<1x1x16x16xf32>
    %365 = vector.shape_cast %364 : vector<1x1x16x16xf32> to vector<16x16xf32>
    %366 = vector.shape_cast %363 : vector<16x16xf32> to vector<1x1x16x16xf32>
    tpu.vector_store %arg12[%c0_210, %c8_211, %c0_212, %c0_213], %366 {strides = array<i32>} : memref<1x16x16x16xf32, #tpu.memory_space<vmem>>, vector<1x1x16x16xf32>,
    %367 = vector.extract_strided_slice %292 {offsets = [9, 0, 0], sizes = [1, 16, 48], strides = [1, 1, 1]} : vector<16x16x48xf32> to vector<1x16x48xf32>
    %368 = vector.shape_cast %367 : vector<1x16x48xf32> to vector<16x48xf32>
    %cst_214 = arith.constant dense<0.000000e+00> : vector<16x16xf32>
    %369 = tpu.matmul %368, %293, %cst_214 {dimension_numbers = #tpu.dot_dimension_numbers<[1], [0], [0], [1], [0, 0, 1, 1], [], []>} : vector<16x48xf32>, vector<48x16xf32>, vector<16x16xf32> -> vector<16x16xf32>
    %370 = vector.broadcast %294 : vector<1x16xf32> to vector<16x16xf32>
    %371 = arith.addf %369, %370 : vector<16x16xf32>
    %c0_215 = arith.constant 0 : index
    %c9_216 = arith.constant 9 : index
    %c0_217 = arith.constant 0 : index
    %c0_218 = arith.constant 0 : index
    %372 = vector.load %arg12[%c0_215, %c9_216, %c0_217, %c0_218] : memref<1x16x16x16xf32, #tpu.memory_space<vmem>>, vector<1x1x16x16xf32>
    %373 = vector.shape_cast %372 : vector<1x1x16x16xf32> to vector<16x16xf32>
    %374 = vector.shape_cast %371 : vector<16x16xf32> to vector<1x1x16x16xf32>
    tpu.vector_store %arg12[%c0_215, %c9_216, %c0_217, %c0_218], %374 {strides = array<i32>} : memref<1x16x16x16xf32, #tpu.memory_space<vmem>>, vector<1x1x16x16xf32>,
    %375 = vector.extract_strided_slice %292 {offsets = [10, 0, 0], sizes = [1, 16, 48], strides = [1, 1, 1]} : vector<16x16x48xf32> to vector<1x16x48xf32>
    %376 = vector.shape_cast %375 : vector<1x16x48xf32> to vector<16x48xf32>
    %cst_219 = arith.constant dense<0.000000e+00> : vector<16x16xf32>
    %377 = tpu.matmul %376, %293, %cst_219 {dimension_numbers = #tpu.dot_dimension_numbers<[1], [0], [0], [1], [0, 0, 1, 1], [], []>} : vector<16x48xf32>, vector<48x16xf32>, vector<16x16xf32> -> vector<16x16xf32>
    %378 = vector.broadcast %294 : vector<1x16xf32> to vector<16x16xf32>
    %379 = arith.addf %377, %378 : vector<16x16xf32>
    %c0_220 = arith.constant 0 : index
    %c10_221 = arith.constant 10 : index
    %c0_222 = arith.constant 0 : index
    %c0_223 = arith.constant 0 : index
    %380 = vector.load %arg12[%c0_220, %c10_221, %c0_222, %c0_223] : memref<1x16x16x16xf32, #tpu.memory_space<vmem>>, vector<1x1x16x16xf32>
    %381 = vector.shape_cast %380 : vector<1x1x16x16xf32> to vector<16x16xf32>
    %382 = vector.shape_cast %379 : vector<16x16xf32> to vector<1x1x16x16xf32>
    tpu.vector_store %arg12[%c0_220, %c10_221, %c0_222, %c0_223], %382 {strides = array<i32>} : memref<1x16x16x16xf32, #tpu.memory_space<vmem>>, vector<1x1x16x16xf32>,
    %383 = vector.extract_strided_slice %292 {offsets = [11, 0, 0], sizes = [1, 16, 48], strides = [1, 1, 1]} : vector<16x16x48xf32> to vector<1x16x48xf32>
    %384 = vector.shape_cast %383 : vector<1x16x48xf32> to vector<16x48xf32>
    %cst_224 = arith.constant dense<0.000000e+00> : vector<16x16xf32>
    %385 = tpu.matmul %384, %293, %cst_224 {dimension_numbers = #tpu.dot_dimension_numbers<[1], [0], [0], [1], [0, 0, 1, 1], [], []>} : vector<16x48xf32>, vector<48x16xf32>, vector<16x16xf32> -> vector<16x16xf32>
    %386 = vector.broadcast %294 : vector<1x16xf32> to vector<16x16xf32>
    %387 = arith.addf %385, %386 : vector<16x16xf32>
    %c0_225 = arith.constant 0 : index
    %c11_226 = arith.constant 11 : index
    %c0_227 = arith.constant 0 : index
    %c0_228 = arith.constant 0 : index
    %388 = vector.load %arg12[%c0_225, %c11_226, %c0_227, %c0_228] : memref<1x16x16x16xf32, #tpu.memory_space<vmem>>, vector<1x1x16x16xf32>
    %389 = vector.shape_cast %388 : vector<1x1x16x16xf32> to vector<16x16xf32>
    %390 = vector.shape_cast %387 : vector<16x16xf32> to vector<1x1x16x16xf32>
    tpu.vector_store %arg12[%c0_225, %c11_226, %c0_227, %c0_228], %390 {strides = array<i32>} : memref<1x16x16x16xf32, #tpu.memory_space<vmem>>, vector<1x1x16x16xf32>,
    %391 = vector.extract_strided_slice %292 {offsets = [12, 0, 0], sizes = [1, 16, 48], strides = [1, 1, 1]} : vector<16x16x48xf32> to vector<1x16x48xf32>
    %392 = vector.shape_cast %391 : vector<1x16x48xf32> to vector<16x48xf32>
    %cst_229 = arith.constant dense<0.000000e+00> : vector<16x16xf32>
    %393 = tpu.matmul %392, %293, %cst_229 {dimension_numbers = #tpu.dot_dimension_numbers<[1], [0], [0], [1], [0, 0, 1, 1], [], []>} : vector<16x48xf32>, vector<48x16xf32>, vector<16x16xf32> -> vector<16x16xf32>
    %394 = vector.broadcast %294 : vector<1x16xf32> to vector<16x16xf32>
    %395 = arith.addf %393, %394 : vector<16x16xf32>
    %c0_230 = arith.constant 0 : index
    %c12_231 = arith.constant 12 : index
    %c0_232 = arith.constant 0 : index
    %c0_233 = arith.constant 0 : index
    %396 = vector.load %arg12[%c0_230, %c12_231, %c0_232, %c0_233] : memref<1x16x16x16xf32, #tpu.memory_space<vmem>>, vector<1x1x16x16xf32>
    %397 = vector.shape_cast %396 : vector<1x1x16x16xf32> to vector<16x16xf32>
    %398 = vector.shape_cast %395 : vector<16x16xf32> to vector<1x1x16x16xf32>
    tpu.vector_store %arg12[%c0_230, %c12_231, %c0_232, %c0_233], %398 {strides = array<i32>} : memref<1x16x16x16xf32, #tpu.memory_space<vmem>>, vector<1x1x16x16xf32>,
    %399 = vector.extract_strided_slice %292 {offsets = [13, 0, 0], sizes = [1, 16, 48], strides = [1, 1, 1]} : vector<16x16x48xf32> to vector<1x16x48xf32>
    %400 = vector.shape_cast %399 : vector<1x16x48xf32> to vector<16x48xf32>
    %cst_234 = arith.constant dense<0.000000e+00> : vector<16x16xf32>
    %401 = tpu.matmul %400, %293, %cst_234 {dimension_numbers = #tpu.dot_dimension_numbers<[1], [0], [0], [1], [0, 0, 1, 1], [], []>} : vector<16x48xf32>, vector<48x16xf32>, vector<16x16xf32> -> vector<16x16xf32>
    %402 = vector.broadcast %294 : vector<1x16xf32> to vector<16x16xf32>
    %403 = arith.addf %401, %402 : vector<16x16xf32>
    %c0_235 = arith.constant 0 : index
    %c13_236 = arith.constant 13 : index
    %c0_237 = arith.constant 0 : index
    %c0_238 = arith.constant 0 : index
    %404 = vector.load %arg12[%c0_235, %c13_236, %c0_237, %c0_238] : memref<1x16x16x16xf32, #tpu.memory_space<vmem>>, vector<1x1x16x16xf32>
    %405 = vector.shape_cast %404 : vector<1x1x16x16xf32> to vector<16x16xf32>
    %406 = vector.shape_cast %403 : vector<16x16xf32> to vector<1x1x16x16xf32>
    tpu.vector_store %arg12[%c0_235, %c13_236, %c0_237, %c0_238], %406 {strides = array<i32>} : memref<1x16x16x16xf32, #tpu.memory_space<vmem>>, vector<1x1x16x16xf32>,
    %407 = vector.extract_strided_slice %292 {offsets = [14, 0, 0], sizes = [1, 16, 48], strides = [1, 1, 1]} : vector<16x16x48xf32> to vector<1x16x48xf32>
    %408 = vector.shape_cast %407 : vector<1x16x48xf32> to vector<16x48xf32>
    %cst_239 = arith.constant dense<0.000000e+00> : vector<16x16xf32>
    %409 = tpu.matmul %408, %293, %cst_239 {dimension_numbers = #tpu.dot_dimension_numbers<[1], [0], [0], [1], [0, 0, 1, 1], [], []>} : vector<16x48xf32>, vector<48x16xf32>, vector<16x16xf32> -> vector<16x16xf32>
    %410 = vector.broadcast %294 : vector<1x16xf32> to vector<16x16xf32>
    %411 = arith.addf %409, %410 : vector<16x16xf32>
    %c0_240 = arith.constant 0 : index
    %c14_241 = arith.constant 14 : index
    %c0_242 = arith.constant 0 : index
    %c0_243 = arith.constant 0 : index
    %412 = vector.load %arg12[%c0_240, %c14_241, %c0_242, %c0_243] : memref<1x16x16x16xf32, #tpu.memory_space<vmem>>, vector<1x1x16x16xf32>
    %413 = vector.shape_cast %412 : vector<1x1x16x16xf32> to vector<16x16xf32>
    %414 = vector.shape_cast %411 : vector<16x16xf32> to vector<1x1x16x16xf32>
    tpu.vector_store %arg12[%c0_240, %c14_241, %c0_242, %c0_243], %414 {strides = array<i32>} : memref<1x16x16x16xf32, #tpu.memory_space<vmem>>, vector<1x1x16x16xf32>,
    %415 = vector.extract_strided_slice %292 {offsets = [15, 0, 0], sizes = [1, 16, 48], strides = [1, 1, 1]} : vector<16x16x48xf32> to vector<1x16x48xf32>
    %416 = vector.shape_cast %415 : vector<1x16x48xf32> to vector<16x48xf32>
    %cst_244 = arith.constant dense<0.000000e+00> : vector<16x16xf32>
    %417 = tpu.matmul %416, %293, %cst_244 {dimension_numbers = #tpu.dot_dimension_numbers<[1], [0], [0], [1], [0, 0, 1, 1], [], []>} : vector<16x48xf32>, vector<48x16xf32>, vector<16x16xf32> -> vector<16x16xf32>
    %418 = vector.broadcast %294 : vector<1x16xf32> to vector<16x16xf32>
    %419 = arith.addf %417, %418 : vector<16x16xf32>
    %c0_245 = arith.constant 0 : index
    %c15_246 = arith.constant 15 : index
    %c0_247 = arith.constant 0 : index
    %c0_248 = arith.constant 0 : index
    %420 = vector.load %arg12[%c0_245, %c15_246, %c0_247, %c0_248] : memref<1x16x16x16xf32, #tpu.memory_space<vmem>>, vector<1x1x16x16xf32>
    %421 = vector.shape_cast %420 : vector<1x1x16x16xf32> to vector<16x16xf32>
    %422 = vector.shape_cast %419 : vector<16x16xf32> to vector<1x1x16x16xf32>
    tpu.vector_store %arg12[%c0_245, %c15_246, %c0_247, %c0_248], %422 {strides = array<i32>} : memref<1x16x16x16xf32, #tpu.memory_space<vmem>>, vector<1x1x16x16xf32>,
    return
  }
  func.func @transform_0(%arg0: i32) -> (i32, i32, i32, i32) {
    %c0_i32 = arith.constant 0 : i32
    %c0_i32_0 = arith.constant 0 : i32
    %c0_i32_1 = arith.constant 0 : i32
    %c0_i32_2 = arith.constant 0 : i32
    return %arg0, %c0_i32, %c0_i32_0, %c0_i32_1 : i32, i32, i32, i32
  }
  func.func @transform_1(%arg0: i32) -> (i32, i32) {
    %c0_i32 = arith.constant 0 : i32
    %c0_i32_0 = arith.constant 0 : i32
    %c0_i32_1 = arith.constant 0 : i32
    return %c0_i32, %c0_i32_0 : i32, i32
  }
  func.func @transform_2(%arg0: i32) -> (i32, i32) {
    %c0_i32 = arith.constant 0 : i32
    %c0_i32_0 = arith.constant 0 : i32
    %c0_i32_1 = arith.constant 0 : i32
    return %c0_i32, %c0_i32_0 : i32, i32
  }
  func.func @transform_3(%arg0: i32) -> (i32, i32, i32) {
    %c0_i32 = arith.constant 0 : i32
    %c0_i32_0 = arith.constant 0 : i32
    %c0_i32_1 = arith.constant 0 : i32
    %c0_i32_2 = arith.constant 0 : i32
    return %c0_i32, %c0_i32_0, %c0_i32_1 : i32, i32, i32
  }
  func.func @transform_4(%arg0: i32) -> (i32, i32) {
    %c0_i32 = arith.constant 0 : i32
    %c0_i32_0 = arith.constant 0 : i32
    %c0_i32_1 = arith.constant 0 : i32
    return %c0_i32, %c0_i32_0 : i32, i32
  }
  func.func @transform_5(%arg0: i32) -> (i32, i32) {
    %c0_i32 = arith.constant 0 : i32
    %c0_i32_0 = arith.constant 0 : i32
    %c0_i32_1 = arith.constant 0 : i32
    return %c0_i32, %c0_i32_0 : i32, i32
  }
  func.func @transform_6(%arg0: i32) -> (i32, i32) {
    %c0_i32 = arith.constant 0 : i32
    %c0_i32_0 = arith.constant 0 : i32
    %c0_i32_1 = arith.constant 0 : i32
    return %c0_i32, %c0_i32_0 : i32, i32
  }
  func.func @transform_7(%arg0: i32) -> (i32, i32) {
    %c0_i32 = arith.constant 0 : i32
    %c0_i32_0 = arith.constant 0 : i32
    %c0_i32_1 = arith.constant 0 : i32
    return %c0_i32, %c0_i32_0 : i32, i32
  }
  func.func @transform_8(%arg0: i32) -> (i32, i32) {
    %c0_i32 = arith.constant 0 : i32
    %c0_i32_0 = arith.constant 0 : i32
    %c0_i32_1 = arith.constant 0 : i32
    return %c0_i32, %c0_i32_0 : i32, i32
  }
  func.func @transform_9(%arg0: i32) -> (i32, i32) {
    %c0_i32 = arith.constant 0 : i32
    %c0_i32_0 = arith.constant 0 : i32
    %c0_i32_1 = arith.constant 0 : i32
    return %c0_i32, %c0_i32_0 : i32, i32
  }
  func.func @transform_10(%arg0: i32) -> (i32, i32) {
    %c0_i32 = arith.constant 0 : i32
    %c0_i32_0 = arith.constant 0 : i32
    %c0_i32_1 = arith.constant 0 : i32
    return %c0_i32, %c0_i32_0 : i32, i32
  }
  func.func @transform_11(%arg0: i32) -> (i32, i32, i32, i32) {
    %c0_i32 = arith.constant 0 : i32
    %c0_i32_0 = arith.constant 0 : i32
    %c0_i32_1 = arith.constant 0 : i32
    %c0_i32_2 = arith.constant 0 : i32
    return %arg0, %c0_i32, %c0_i32_0, %c0_i32_1 : i32, i32, i32, i32
  }
}

</mosaic_0001>

<llo_original>
// kernel: tpu_custom_call.1
$region0: #{tpu_custom_call.1}
  #allocation0 [shape = 'u32[]', space=smem, size = 0x4, offset = 0x4, fixed_abs, tag = 'smem constant byte address 0x4 - core index']
  #allocation1 [shape = 'u32[72,128]{1,0:T(1,128)}', space=vmem, size = 0x9000, scoped, tag = 'internal scratch']
  #allocation2 [shape = 'f32[18,18,48]{2,1,0:T(8,128)}', space=vmem, size = 0x36000, scoped, tag = 'scratch operand']
  %s0 = inlined_call_operand.vmem [shape: f32[2,18,18,8], index: 0, kind: input, shape index: {}]
  %s1 = inlined_call_operand.vmem [shape: f32[8,48], index: 1, kind: input, shape index: {}]
  %s2 = inlined_call_operand.vmem [shape: f32[1,48], index: 2, kind: input, shape index: {}]
  %s3 = inlined_call_operand.vmem [shape: f32[3,3,48], index: 3, kind: input, shape index: {}]
  %s4 = inlined_call_operand.vmem [shape: f32[1,48], index: 4, kind: input, shape index: {}]
  %s5 = inlined_call_operand.vmem [shape: f32[48,16], index: 5, kind: input, shape index: {}]
  %s6 = inlined_call_operand.vmem [shape: f32[1,16], index: 6, kind: input, shape index: {}]
  %s7 = inlined_call_operand.vmem [shape: f32[16,48], index: 7, kind: input, shape index: {}]
  %s8 = inlined_call_operand.vmem [shape: f32[1,48], index: 8, kind: input, shape index: {}]
  %s9 = inlined_call_operand.vmem [shape: f32[48,16], index: 9, kind: input, shape index: {}]
  %s10 = inlined_call_operand.vmem [shape: f32[1,16], index: 10, kind: input, shape index: {}]
  %s11 = inlined_call_operand.hbm [shape: f32[2,16,16,16], index: 11, kind: output, shape index: {}]
  %s12 = sld [smem:[#allocation0]]
  $region77: #{tpu_custom_call.1} parent=0
    _
  %s14 = ssub.s32 1, %s12
  %s15 = scalar_select 0, %s14, %s12
  $region1: #{tpu_custom_call.1} parent=0
    #allocation3 [shape = 'u8[262144]{0}', space=vmem, size = 0x40000, scoped, tag = 'output window, operand 0']
    #allocation4 [shape = 's32[2]{0}', space=sflag, size = 0x8, scoped, tag = 'scoped memory for tpu_custom_call.1']
    %16 = vsyncpa [#allocation4], 0
    %s17 = scalar_lea.sflag [#allocation4], 1
    %18 = vsyncpa %s17, 0
    loop: start=0, step=1, limit=4
    $region2: #{tpu_custom_call.1} parent=1 // loop_pre_header
      _
    $region3: #{tpu_custom_call.1} parent=1 // loop_header
      %s20 = sphi 0, %s24
      %p21 = scmp.ge.s32.totalorder %s20, 4
      %s30 = sphi 0, %s32
      %s33 = sphi 0, %s30
      %s34 = sphi 0, %s33
      %s50 = sphi 0, %s34
      %s54 = sphi 0, %s54
      %s56 = sphi 0, %s54
      %s57 = sphi 0, %s56
      %s71 = sphi 0, %s57
      %s75 = sphi 0, %s75
      %s77 = sphi 0, %s75
      %s78 = sphi 0, %s77
      %s92 = sphi 0, %s78
      %s96 = sphi 0, %s96
      %s98 = sphi 0, %s96
      %s99 = sphi 0, %s98
      %s113 = sphi 0, %s99
      %s117 = sphi 0, %s117
      %s119 = sphi 0, %s117
      %s120 = sphi 0, %s119
      %s134 = sphi 0, %s120
      %s138 = sphi 0, %s138
      %s140 = sphi 0, %s138
      %s141 = sphi 0, %s140
      %s155 = sphi 0, %s141
      %s159 = sphi 0, %s159
      %s161 = sphi 0, %s159
      %s162 = sphi 0, %s161
      %s176 = sphi 0, %s162
      %s180 = sphi 0, %s180
      %s182 = sphi 0, %s180
      %s183 = sphi 0, %s182
      %s197 = sphi 0, %s183
      %s201 = sphi 0, %s201
      %s203 = sphi 0, %s201
      %s204 = sphi 0, %s203
      %s218 = sphi 0, %s204
      %s222 = sphi 0, %s222
      %s224 = sphi 0, %s222
      %s225 = sphi 0, %s224
      %s239 = sphi 0, %s225
      %s243 = sphi 0, %s243
      %s245 = sphi 0, %s243
      %s246 = sphi 0, %s245
      %s260 = sphi 0, %s246
      %s266 = sphi 0, %s268
      %s269 = sphi 0, %s266
      %s270 = sphi 0, %s269
      %s286 = sphi 0, %s270
    $region4: #{tpu_custom_call.1} parent=1 // loop_header_branch
      %23 = sbr.rel (%p21) target = $region8
    $region5: #{tpu_custom_call.1} parent=1 // loop_body
      %s25 = ssub.s32 %s20, 1
      %s26 = ssub.s32 %s20, 2
      %s27 = sadd.s32 %s20, 1
      %s28 = ssub.s32 %s20, %s27
      %p29 = scmp.eq.s32.totalorder %s28, 0
      %s31 = sadd.s32 %s30, 1
      %s32 = scalar_select %p29, %s30, %s31
      %p35 = pneg %p29
      %p36 = scmp.eq.s32.totalorder %s20, 1
      %p37 = por %p35, %p36
      %p38 = scmp.ne.s32.totalorder %s30, %s33
      %p39 = scmp.eq.s32.totalorder %s20, 0
      %p40 = por %p38, %p39
      %p41 = scmp.ne.s32.totalorder %s30, %s33
      %p42 = scmp.eq.s32.totalorder %s25, 1
      %p43 = por %p41, %p42
      %p44 = scmp.ne.s32.totalorder %s33, %s34
      %p45 = scmp.eq.s32.totalorder %s25, 0
      %p46 = por %p44, %p45
      %p47 = scmp.ne.s32.totalorder %s33, %s34
      %p48 = scmp.eq.s32.totalorder %s26, 1
      %p49 = por %p47, %p48
      %p51 = scmp.ne.s32.totalorder %s34, %s50
      %p52 = scmp.eq.s32.totalorder %s26, 0
      %p53 = por %p51, %p52
      %s55 = sadd.s32 %s54, 1
      %p58 = scmp.eq.s32.totalorder %s20, 1
      %p59 = scmp.ne.s32.totalorder %s54, %s56
      %p60 = scmp.eq.s32.totalorder %s20, 0
      %p61 = por %p59, %p60
      %p62 = scmp.ne.s32.totalorder %s54, %s56
      %p63 = scmp.eq.s32.totalorder %s25, 1
      %p64 = por %p62, %p63
      %p65 = scmp.ne.s32.totalorder %s56, %s57
      %p66 = scmp.eq.s32.totalorder %s25, 0
      %p67 = por %p65, %p66
      %p68 = scmp.ne.s32.totalorder %s56, %s57
      %p69 = scmp.eq.s32.totalorder %s26, 1
      %p70 = por %p68, %p69
      %p72 = scmp.ne.s32.totalorder %s57, %s71
      %p73 = scmp.eq.s32.totalorder %s26, 0
      %p74 = por %p72, %p73
      %s76 = sadd.s32 %s75, 1
      %p79 = scmp.eq.s32.totalorder %s20, 1
      %p80 = scmp.ne.s32.totalorder %s75, %s77
      %p81 = scmp.eq.s32.totalorder %s20, 0
      %p82 = por %p80, %p81
      %p83 = scmp.ne.s32.totalorder %s75, %s77
      %p84 = scmp.eq.s32.totalorder %s25, 1
      %p85 = por %p83, %p84
      %p86 = scmp.ne.s32.totalorder %s77, %s78
      %p87 = scmp.eq.s32.totalorder %s25, 0
      %p88 = por %p86, %p87
      %p89 = scmp.ne.s32.totalorder %s77, %s78
      %p90 = scmp.eq.s32.totalorder %s26, 1
      %p91 = por %p89, %p90
      %p93 = scmp.ne.s32.totalorder %s78, %s92
      %p94 = scmp.eq.s32.totalorder %s26, 0
      %p95 = por %p93, %p94
      %s97 = sadd.s32 %s96, 1
      %p100 = scmp.eq.s32.totalorder %s20, 1
      %p101 = scmp.ne.s32.totalorder %s96, %s98
      %p102 = scmp.eq.s32.totalorder %s20, 0
      %p103 = por %p101, %p102
      %p104 = scmp.ne.s32.totalorder %s96, %s98
      %p105 = scmp.eq.s32.totalorder %s25, 1
      %p106 = por %p104, %p105
      %p107 = scmp.ne.s32.totalorder %s98, %s99
      %p108 = scmp.eq.s32.totalorder %s25, 0
      %p109 = por %p107, %p108
      %p110 = scmp.ne.s32.totalorder %s98, %s99
      %p111 = scmp.eq.s32.totalorder %s26, 1
      %p112 = por %p110, %p111
      %p114 = scmp.ne.s32.totalorder %s99, %s113
      %p115 = scmp.eq.s32.totalorder %s26, 0
      %p116 = por %p114, %p115
      %s118 = sadd.s32 %s117, 1
      %p121 = scmp.eq.s32.totalorder %s20, 1
      %p122 = scmp.ne.s32.totalorder %s117, %s119
      %p123 = scmp.eq.s32.totalorder %s20, 0
      %p124 = por %p122, %p123
      %p125 = scmp.ne.s32.totalorder %s117, %s119
      %p126 = scmp.eq.s32.totalorder %s25, 1
      %p127 = por %p125, %p126
      %p128 = scmp.ne.s32.totalorder %s119, %s120
      %p129 = scmp.eq.s32.totalorder %s25, 0
      %p130 = por %p128, %p129
      %p131 = scmp.ne.s32.totalorder %s119, %s120
      %p132 = scmp.eq.s32.totalorder %s26, 1
      %p133 = por %p131, %p132
      %p135 = scmp.ne.s32.totalorder %s120, %s134
      %p136 = scmp.eq.s32.totalorder %s26, 0
      %p137 = por %p135, %p136
      %s139 = sadd.s32 %s138, 1
      %p142 = scmp.eq.s32.totalorder %s20, 1
      %p143 = scmp.ne.s32.totalorder %s138, %s140
      %p144 = scmp.eq.s32.totalorder %s20, 0
      %p145 = por %p143, %p144
      %p146 = scmp.ne.s32.totalorder %s138, %s140
      %p147 = scmp.eq.s32.totalorder %s25, 1
      %p148 = por %p146, %p147
      %p149 = scmp.ne.s32.totalorder %s140, %s141
      %p150 = scmp.eq.s32.totalorder %s25, 0
      %p151 = por %p149, %p150
      %p152 = scmp.ne.s32.totalorder %s140, %s141
      %p153 = scmp.eq.s32.totalorder %s26, 1
      %p154 = por %p152, %p153
      %p156 = scmp.ne.s32.totalorder %s141, %s155
      %p157 = scmp.eq.s32.totalorder %s26, 0
      %p158 = por %p156, %p157
      %s160 = sadd.s32 %s159, 1
      %p163 = scmp.eq.s32.totalorder %s20, 1
      %p164 = scmp.ne.s32.totalorder %s159, %s161
      %p165 = scmp.eq.s32.totalorder %s20, 0
      %p166 = por %p164, %p165
      %p167 = scmp.ne.s32.totalorder %s159, %s161
      %p168 = scmp.eq.s32.totalorder %s25, 1
      %p169 = por %p167, %p168
      %p170 = scmp.ne.s32.totalorder %s161, %s162
      %p171 = scmp.eq.s32.totalorder %s25, 0
      %p172 = por %p170, %p171
      %p173 = scmp.ne.s32.totalorder %s161, %s162
      %p174 = scmp.eq.s32.totalorder %s26, 1
      %p175 = por %p173, %p174
      %p177 = scmp.ne.s32.totalorder %s162, %s176
      %p178 = scmp.eq.s32.totalorder %s26, 0
      %p179 = por %p177, %p178
      %s181 = sadd.s32 %s180, 1
      %p184 = scmp.eq.s32.totalorder %s20, 1
      %p185 = scmp.ne.s32.totalorder %s180, %s182
      %p186 = scmp.eq.s32.totalorder %s20, 0
      %p187 = por %p185, %p186
      %p188 = scmp.ne.s32.totalorder %s180, %s182
      %p189 = scmp.eq.s32.totalorder %s25, 1
      %p190 = por %p188, %p189
      %p191 = scmp.ne.s32.totalorder %s182, %s183
      %p192 = scmp.eq.s32.totalorder %s25, 0
      %p193 = por %p191, %p192
      %p194 = scmp.ne.s32.totalorder %s182, %s183
      %p195 = scmp.eq.s32.totalorder %s26, 1
      %p196 = por %p194, %p195
      %p198 = scmp.ne.s32.totalorder %s183, %s197
      %p199 = scmp.eq.s32.totalorder %s26, 0
      %p200 = por %p198, %p199
      %s202 = sadd.s32 %s201, 1
      %p205 = scmp.eq.s32.totalorder %s20, 1
      %p206 = scmp.ne.s32.totalorder %s201, %s203
      %p207 = scmp.eq.s32.totalorder %s20, 0
      %p208 = por %p206, %p207
      %p209 = scmp.ne.s32.totalorder %s201, %s203
      %p210 = scmp.eq.s32.totalorder %s25, 1
      %p211 = por %p209, %p210
      %p212 = scmp.ne.s32.totalorder %s203, %s204
      %p213 = scmp.eq.s32.totalorder %s25, 0
      %p214 = por %p212, %p213
      %p215 = scmp.ne.s32.totalorder %s203, %s204
      %p216 = scmp.eq.s32.totalorder %s26, 1
      %p217 = por %p215, %p216
      %p219 = scmp.ne.s32.totalorder %s204, %s218
      %p220 = scmp.eq.s32.totalorder %s26, 0
      %p221 = por %p219, %p220
      %s223 = sadd.s32 %s222, 1
      %p226 = scmp.eq.s32.totalorder %s20, 1
      %p227 = scmp.ne.s32.totalorder %s222, %s224
      %p228 = scmp.eq.s32.totalorder %s20, 0
      %p229 = por %p227, %p228
      %p230 = scmp.ne.s32.totalorder %s222, %s224
      %p231 = scmp.eq.s32.totalorder %s25, 1
      %p232 = por %p230, %p231
      %p233 = scmp.ne.s32.totalorder %s224, %s225
      %p234 = scmp.eq.s32.totalorder %s25, 0
      %p235 = por %p233, %p234
      %p236 = scmp.ne.s32.totalorder %s224, %s225
      %p237 = scmp.eq.s32.totalorder %s26, 1
      %p238 = por %p236, %p237
      %p240 = scmp.ne.s32.totalorder %s225, %s239
      %p241 = scmp.eq.s32.totalorder %s26, 0
      %p242 = por %p240, %p241
      %s244 = sadd.s32 %s243, 1
      %p247 = scmp.eq.s32.totalorder %s20, 1
      %p248 = scmp.ne.s32.totalorder %s243, %s245
      %p249 = scmp.eq.s32.totalorder %s20, 0
      %p250 = por %p248, %p249
      %p251 = scmp.ne.s32.totalorder %s243, %s245
      %p252 = scmp.eq.s32.totalorder %s25, 1
      %p253 = por %p251, %p252
      %p254 = scmp.ne.s32.totalorder %s245, %s246
      %p255 = scmp.eq.s32.totalorder %s25, 0
      %p256 = por %p254, %p255
      %p257 = scmp.ne.s32.totalorder %s245, %s246
      %p258 = scmp.eq.s32.totalorder %s26, 1
      %p259 = por %p257, %p258
      %p261 = scmp.ne.s32.totalorder %s246, %s260
      %p262 = scmp.eq.s32.totalorder %s26, 0
      %p263 = por %p261, %p262
      %s264 = ssub.s32 %s20, %s27
      %p265 = scmp.eq.s32.totalorder %s264, 0
      %s267 = sadd.s32 %s266, 1
      %s268 = scalar_select %p265, %s266, %s267
      %p271 = pneg %p265
      %p272 = scmp.eq.s32.totalorder %s20, 1
      %p273 = por %p271, %p272
      %p274 = scmp.ne.s32.totalorder %s266, %s269
      %p275 = scmp.eq.s32.totalorder %s20, 0
      %p276 = por %p274, %p275
      %p277 = scmp.ne.s32.totalorder %s266, %s269
      %p278 = scmp.eq.s32.totalorder %s25, 1
      %p279 = por %p277, %p278
      %p280 = scmp.ne.s32.totalorder %s269, %s270
      %p281 = scmp.eq.s32.totalorder %s25, 0
      %p282 = por %p280, %p281
      %p283 = scmp.ne.s32.totalorder %s269, %s270
      %p284 = scmp.eq.s32.totalorder %s26, 1
      %p285 = por %p283, %p284
      %p287 = scmp.ne.s32.totalorder %s270, %s286
      %p288 = scmp.eq.s32.totalorder %s26, 0
      %p289 = por %p287, %p288
      %p290 = scmp.le.s32.totalorder 1, %s20
      %p291 = scmp.lt.s32.totalorder %s20, 3
      %p292 = pnand %p290, %p291
      %p293 = pneg %p292
      // Predicated region
      $region9: #{tpu_custom_call.1} parent=5 // pred_check
        _
      $region10: #{tpu_custom_call.1} parent=5 // pred_check_branch
        %295 = sbr.rel (%p292) target = $region12
      $region11: #{tpu_custom_call.1} parent=5 // pred_region
        %s296 = ssub.s32 %s20, 1
        // Predicated region
        $region13: #{tpu_custom_call.1} parent=11 // pred_check
          %p297 = pneg %p67
        $region14: #{tpu_custom_call.1} parent=11 // pred_check_branch
          %299 = sbr.rel (%p297) target = $region16
        $region15: #{tpu_custom_call.1} parent=11 // pred_region
          _
        $region16: #{tpu_custom_call.1} parent=11 // pred_fallthru
          _
        // Predicated region
        $region17: #{tpu_custom_call.1} parent=11 // pred_check
          %p300 = pneg %p88
        $region18: #{tpu_custom_call.1} parent=11 // pred_check_branch
          %302 = sbr.rel (%p300) target = $region20
        $region19: #{tpu_custom_call.1} parent=11 // pred_region
          _
        $region20: #{tpu_custom_call.1} parent=11 // pred_fallthru
          _
        // Predicated region
        $region21: #{tpu_custom_call.1} parent=11 // pred_check
          %p303 = pneg %p109
        $region22: #{tpu_custom_call.1} parent=11 // pred_check_branch
          %305 = sbr.rel (%p303) target = $region24
        $region23: #{tpu_custom_call.1} parent=11 // pred_region
          _
        $region24: #{tpu_custom_call.1} parent=11 // pred_fallthru
          _
        // Predicated region
        $region25: #{tpu_custom_call.1} parent=11 // pred_check
          %p306 = pneg %p130
        $region26: #{tpu_custom_call.1} parent=11 // pred_check_branch
          %308 = sbr.rel (%p306) target = $region28
        $region27: #{tpu_custom_call.1} parent=11 // pred_region
          _
        $region28: #{tpu_custom_call.1} parent=11 // pred_fallthru
          _
        // Predicated region
        $region29: #{tpu_custom_call.1} parent=11 // pred_check
          %p309 = pneg %p151
        $region30: #{tpu_custom_call.1} parent=11 // pred_check_branch
          %311 = sbr.rel (%p309) target = $region32
        $region31: #{tpu_custom_call.1} parent=11 // pred_region
          _
        $region32: #{tpu_custom_call.1} parent=11 // pred_fallthru
          _
        // Predicated region
        $region33: #{tpu_custom_call.1} parent=11 // pred_check
          %p312 = pneg %p172
        $region34: #{tpu_custom_call.1} parent=11 // pred_check_branch
          %314 = sbr.rel (%p312) target = $region36
        $region35: #{tpu_custom_call.1} parent=11 // pred_region
          _
        $region36: #{tpu_custom_call.1} parent=11 // pred_fallthru
          _
        // Predicated region
        $region37: #{tpu_custom_call.1} parent=11 // pred_check
          %p315 = pneg %p193
        $region38: #{tpu_custom_call.1} parent=11 // pred_check_branch
          %317 = sbr.rel (%p315) target = $region40
        $region39: #{tpu_custom_call.1} parent=11 // pred_region
          _
        $region40: #{tpu_custom_call.1} parent=11 // pred_fallthru
          _
        // Predicated region
        $region41: #{tpu_custom_call.1} parent=11 // pred_check
          %p318 = pneg %p214
        $region42: #{tpu_custom_call.1} parent=11 // pred_check_branch
          %320 = sbr.rel (%p318) target = $region44
        $region43: #{tpu_custom_call.1} parent=11 // pred_region
          _
        $region44: #{tpu_custom_call.1} parent=11 // pred_fallthru
          _
        // Predicated region
        $region45: #{tpu_custom_call.1} parent=11 // pred_check
          %p321 = pneg %p235
        $region46: #{tpu_custom_call.1} parent=11 // pred_check_branch
          %323 = sbr.rel (%p321) target = $region48
        $region47: #{tpu_custom_call.1} parent=11 // pred_region
          _
        $region48: #{tpu_custom_call.1} parent=11 // pred_fallthru
          _
        // Predicated region
        $region49: #{tpu_custom_call.1} parent=11 // pred_check
          %p324 = pneg %p256
        $region50: #{tpu_custom_call.1} parent=11 // pred_check_branch
          %326 = sbr.rel (%p324) target = $region52
        $region51: #{tpu_custom_call.1} parent=11 // pred_region
          _
        $region52: #{tpu_custom_call.1} parent=11 // pred_fallthru
          _
      $region12: #{tpu_custom_call.1} parent=5 // pred_fallthru
        _
      %p327 = scmp.lt.s32.totalorder %s20, 2
      // Predicated region
      $region53: #{tpu_custom_call.1} parent=5 // pred_check
        %p328 = pneg %p327
      $region54: #{tpu_custom_call.1} parent=5 // pred_check_branch
        %330 = sbr.rel (%p328) target = $region56
      $region55: #{tpu_custom_call.1} parent=5 // pred_region
        // Predicated region
        $region57: #{tpu_custom_call.1} parent=55 // pred_check
          %p331 = pneg %p40
        $region58: #{tpu_custom_call.1} parent=55 // pred_check_branch
          %333 = sbr.rel (%p331) target = $region60
        $region59: #{tpu_custom_call.1} parent=55 // pred_region
          %p334 = scmp.lt.s32.totalorder %s20, 1
          %s335 = scalar_select %p334, %s20, 1
          %s336 = smul.addr %s335, 54
          %s337 = smul.addr %s336, 8
          %s338 = scalar_lea.vmem %s0, %s337
        $region60: #{tpu_custom_call.1} parent=55 // pred_fallthru
          _
      $region56: #{tpu_custom_call.1} parent=5 // pred_fallthru
        _
      %p339 = scmp.le.s32.totalorder 1, %s20
      %p340 = scmp.lt.s32.totalorder %s20, 3
      %p341 = pnand %p339, %p340
      %p342 = pneg %p341
      // Predicated region
      $region61: #{tpu_custom_call.1} parent=5 // pred_check
        _
      $region62: #{tpu_custom_call.1} parent=5 // pred_check_branch
        %344 = sbr.rel (%p341) target = $region64
      $region63: #{tpu_custom_call.1} parent=5 // pred_region
        %s345 = ssub.s32 %s20, 1
        %p346 = scmp.lt.s32.totalorder %s25, 1
        %s347 = scalar_select %p346, %s25, 1
        %s348 = smul.addr %s347, 54
        %s349 = smul.addr %s348, 8
        %s350 = scalar_lea.vmem %s0, %s349
        %p351 = pneg %p46
        %p352 = pneg %p43
        %p353 = pneg %p67
        %p354 = pneg %p64
        %p355 = pneg %p88
        %p356 = pneg %p85
        %p357 = pneg %p109
        %p358 = pneg %p106
        %p359 = pneg %p130
        %p360 = pneg %p127
        %p361 = pneg %p151
        %p362 = pneg %p148
        %p363 = pneg %p172
        %p364 = pneg %p169
        %p365 = pneg %p193
        %p366 = pneg %p190
        %p367 = pneg %p214
        %p368 = pneg %p211
        %p369 = pneg %p235
        %p370 = pneg %p232
        %p371 = pneg %p256
        %p372 = pneg %p253
        %p373 = pneg %p282
        %p374 = pneg %p279
        %s375 = sand.u32 %s269, 1
        %s376 = scalar_lea.sflag [#allocation4], %s375
        %s377 = sand.u32 %s269, 1
        %s378 = smul.addr %s377, 256
        %s379 = scalar_lea.vmem [#allocation3], %s378
        %p380 = scmp.lt.s32.totalorder %s25, 1
        %s381 = scalar_select %p380, %s25, 1
        %s382 = smul.addr %s381, 54
        %s383 = smul.addr %s382, 8
        %s384 = scalar_lea.vmem %s0, %s383
        %v385 = vld [vmem:[%s1] sm:$0xff]
        %v386 = vld [vmem:[%s2] sm:$0x1]
        %v387 = vlaneseq
        %v388 = vshrl.u32 %v387, 7
        %v389 = vadd.s32 %v388, 8
        %v390 = vadd.s32 %v388, 16
        %vm391 = vcmp.ge.s32.totalorder %v388, 1
        %vm392 = vcmp.ge.s32.totalorder %v389, 1
        %vm393 = vcmp.ge.s32.totalorder %v390, 1
        %vm394 = vcmp.lt.s32.totalorder %v388, 17
        %vm395 = vcmp.lt.s32.totalorder %v389, 17
        %vm396 = vcmp.lt.s32.totalorder %v390, 17
        %vm397 = vmand %vm391, %vm394
        %vm398 = vmand %vm392, %vm395
        %vm399 = vmand %vm393, %vm396
        %v400 = vsel %vm397, 1, 0
        %v401 = vsel %vm398, 1, 0
        %v402 = vsel %vm399, 1, 0
        %v403 = vcvt.s32.f32 %v400
        %v404 = vcvt.s32.f32 %v401
        %v405 = vcvt.s32.f32 %v402
        %vm406 = vcmask 392192
        %407 = vst.msk [vmem:[#allocation2] sm:$0xff] %vm406, 0.0
        %408 = vst.msk [vmem:[#allocation2 + $0x8] sm:$0xff] %vm406, 0.0
        %vm409 = vcmask 386048
        %410 = vst.msk [vmem:[#allocation2 + $0x10] sm:$0x3] %vm409, 0.0
        %s411 = scalar_lea.vmem %s384, 24
        %v412 = vld [vmem:[%s411] sm:$0xff]
        %v413 = vld [vmem:[%s411 + $0x8] sm:$0xff]
        %v414 = vld [vmem:[%s411 + $0x10] sm:$0x3]
        %v416 = vperm.slane %v386, 0
        %vm418 = vcmask 64512
        %v420 = vsel %vm418, %v412, 0
        %v423 = vsel %vm418, %v413, 0
        %v426 = vsel %vm418, %v414, 0
        %428 = vmatpush.msra.mxu0 0.0
        %429 = vmatpush.msra.mxu0 0.0
        %430 = vmatpush.msra.mxu0 0.0
        %431 = vmatpush.msra.mxu0 0.0
        %432 = vmatpush.msra.mxu0 0.0
        %433 = vmatpush.msra.mxu0 0.0
        %434 = vmatpush.msra.mxu0 0.0
        %435 = vmatpush.msra.mxu0 0.0
        %436 = vmatpush.msra.mxu0 0.0
        %437 = vmatpush.msra.mxu0 0.0
        %438 = vmatpush.msra.mxu0 0.0
        %439 = vmatpush.msra.mxu0 0.0
        %440 = vmatpush.msra.mxu0 0.0
        %441 = vmatpush.msra.mxu0 0.0
        %442 = vmatpush.msra.mxu0 0.0
        %443 = vmatpush.msra.mxu0 %v385
        %444 = vmatmul.f32.gmra.mxu0 %v420
        %v445 = vpop.f32.mrf.mxu0
        %v446 = vadd.f32 %v416, %v445
        %447 = vmatmul.f32.gmra.mxu0 %v423
        %v448 = vpop.f32.mrf.mxu0
        %v449 = vadd.f32 %v416, %v448
        %450 = vmatmul.f32.gmra.mxu0 %v426
        %v451 = vpop.f32.mrf.mxu0
        %v452 = vadd.f32 %v416, %v451
        %453 = vdwg.mxu0
        %v454 = vmax.f32 %v446, 0.0
        %v455 = vmax.f32 %v449, 0.0
        %v456 = vmax.f32 %v452, 0.0
        %v457 = vmul.f32 %v454, %v403
        %v458 = vmul.f32 %v455, %v404
        %v459 = vmul.f32 %v456, %v405
        %s460 = scalar_lea.vmem [#allocation2], 24
        %461 = vst.msk [vmem:[%s460] sm:$0xff] %vm406, %v457
        %462 = vst.msk [vmem:[%s460 + $0x8] sm:$0xff] %vm406, %v458
        %463 = vst.msk [vmem:[%s460 + $0x10] sm:$0x3] %vm409, %v459
        %s464 = scalar_lea.vmem %s384, 48
        %v465 = vld [vmem:[%s464] sm:$0xff]
        %v466 = vld [vmem:[%s464 + $0x8] sm:$0xff]
        %v467 = vld [vmem:[%s464 + $0x10] sm:$0x3]
        %v469 = vsel %vm418, %v465, 0
        %v472 = vsel %vm418, %v466, 0
        %v475 = vsel %vm418, %v467, 0
        %477 = vmatpush.msra.mxu0 0.0
        %478 = vmatpush.msra.mxu0 0.0
        %479 = vmatpush.msra.mxu0 0.0
        %480 = vmatpush.msra.mxu0 0.0
        %481 = vmatpush.msra.mxu0 0.0
        %482 = vmatpush.msra.mxu0 0.0
        %483 = vmatpush.msra.mxu0 0.0
        %484 = vmatpush.msra.mxu0 0.0
        %485 = vmatpush.msra.mxu0 0.0
        %486 = vmatpush.msra.mxu0 0.0
        %487 = vmatpush.msra.mxu0 0.0
        %488 = vmatpush.msra.mxu0 0.0
        %489 = vmatpush.msra.mxu0 0.0
        %490 = vmatpush.msra.mxu0 0.0
        %491 = vmatpush.msra.mxu0 0.0
        %492 = vmatpush.msra.mxu0 %v385
        %493 = vmatmul.f32.gmra.mxu0 %v469
        %v494 = vpop.f32.mrf.mxu0
        %v495 = vadd.f32 %v416, %v494
        %496 = vmatmul.f32.gmra.mxu0 %v472
        %v497 = vpop.f32.mrf.mxu0
        %v498 = vadd.f32 %v416, %v497
        %499 = vmatmul.f32.gmra.mxu0 %v475
        %v500 = vpop.f32.mrf.mxu0
        %v501 = vadd.f32 %v416, %v500
        %502 = vdwg.mxu0
        %v503 = vmax.f32 %v495, 0.0
        %v504 = vmax.f32 %v498, 0.0
        %v505 = vmax.f32 %v501, 0.0
        %v506 = vmul.f32 %v503, %v403
        %v507 = vmul.f32 %v504, %v404
        %v508 = vmul.f32 %v505, %v405
        %s509 = scalar_lea.vmem [#allocation2], 48
        %510 = vst.msk [vmem:[%s509] sm:$0xff] %vm406, %v506
        %511 = vst.msk [vmem:[%s509 + $0x8] sm:$0xff] %vm406, %v507
        %512 = vst.msk [vmem:[%s509 + $0x10] sm:$0x3] %vm409, %v508
        %s513 = scalar_lea.vmem %s384, 72
        %v514 = vld [vmem:[%s513] sm:$0xff]
        %v515 = vld [vmem:[%s513 + $0x8] sm:$0xff]
        %v516 = vld [vmem:[%s513 + $0x10] sm:$0x3]
        %v518 = vsel %vm418, %v514, 0
        %v521 = vsel %vm418, %v515, 0
        %v524 = vsel %vm418, %v516, 0
        %526 = vmatpush.msra.mxu0 0.0
        %527 = vmatpush.msra.mxu0 0.0
        %528 = vmatpush.msra.mxu0 0.0
        %529 = vmatpush.msra.mxu0 0.0
        %530 = vmatpush.msra.mxu0 0.0
        %531 = vmatpush.msra.mxu0 0.0
        %532 = vmatpush.msra.mxu0 0.0
        %533 = vmatpush.msra.mxu0 0.0
        %534 = vmatpush.msra.mxu0 0.0
        %535 = vmatpush.msra.mxu0 0.0
        %536 = vmatpush.msra.mxu0 0.0
        %537 = vmatpush.msra.mxu0 0.0
        %538 = vmatpush.msra.mxu0 0.0
        %539 = vmatpush.msra.mxu0 0.0
        %540 = vmatpush.msra.mxu0 0.0
        %541 = vmatpush.msra.mxu0 %v385
        %542 = vmatmul.f32.gmra.mxu0 %v518
        %v543 = vpop.f32.mrf.mxu0
        %v544 = vadd.f32 %v416, %v543
        %545 = vmatmul.f32.gmra.mxu0 %v521
        %v546 = vpop.f32.mrf.mxu0
        %v547 = vadd.f32 %v416, %v546
        %548 = vmatmul.f32.gmra.mxu0 %v524
        %v549 = vpop.f32.mrf.mxu0
        %v550 = vadd.f32 %v416, %v549
        %551 = vdwg.mxu0
        %v552 = vmax.f32 %v544, 0.0
        %v553 = vmax.f32 %v547, 0.0
        %v554 = vmax.f32 %v550, 0.0
        %v555 = vmul.f32 %v552, %v403
        %v556 = vmul.f32 %v553, %v404
        %v557 = vmul.f32 %v554, %v405
        %s558 = scalar_lea.vmem [#allocation2], 72
        %559 = vst.msk [vmem:[%s558] sm:$0xff] %vm406, %v555
        %560 = vst.msk [vmem:[%s558 + $0x8] sm:$0xff] %vm406, %v556
        %561 = vst.msk [vmem:[%s558 + $0x10] sm:$0x3] %vm409, %v557
        %s562 = scalar_lea.vmem %s384, 96
        %v563 = vld [vmem:[%s562] sm:$0xff]
        %v564 = vld [vmem:[%s562 + $0x8] sm:$0xff]
        %v565 = vld [vmem:[%s562 + $0x10] sm:$0x3]
        %v567 = vsel %vm418, %v563, 0
        %v570 = vsel %vm418, %v564, 0
        %v573 = vsel %vm418, %v565, 0
        %575 = vmatpush.msra.mxu0 0.0
        %576 = vmatpush.msra.mxu0 0.0
        %577 = vmatpush.msra.mxu0 0.0
        %578 = vmatpush.msra.mxu0 0.0
        %579 = vmatpush.msra.mxu0 0.0
        %580 = vmatpush.msra.mxu0 0.0
        %581 = vmatpush.msra.mxu0 0.0
        %582 = vmatpush.msra.mxu0 0.0
        %583 = vmatpush.msra.mxu0 0.0
        %584 = vmatpush.msra.mxu0 0.0
        %585 = vmatpush.msra.mxu0 0.0
        %586 = vmatpush.msra.mxu0 0.0
        %587 = vmatpush.msra.mxu0 0.0
        %588 = vmatpush.msra.mxu0 0.0
        %589 = vmatpush.msra.mxu0 0.0
        %590 = vmatpush.msra.mxu0 %v385
        %591 = vmatmul.f32.gmra.mxu0 %v567
        %v592 = vpop.f32.mrf.mxu0
        %v593 = vadd.f32 %v416, %v592
        %594 = vmatmul.f32.gmra.mxu0 %v570
        %v595 = vpop.f32.mrf.mxu0
        %v596 = vadd.f32 %v416, %v595
        %597 = vmatmul.f32.gmra.mxu0 %v573
        %v598 = vpop.f32.mrf.mxu0
        %v599 = vadd.f32 %v416, %v598
        %600 = vdwg.mxu0
        %v601 = vmax.f32 %v593, 0.0
        %v602 = vmax.f32 %v596, 0.0
        %v603 = vmax.f32 %v599, 0.0
        %v604 = vmul.f32 %v601, %v403
        %v605 = vmul.f32 %v602, %v404
        %v606 = vmul.f32 %v603, %v405
        %s607 = scalar_lea.vmem [#allocation2], 96
        %608 = vst.msk [vmem:[%s607] sm:$0xff] %vm406, %v604
        %609 = vst.msk [vmem:[%s607 + $0x8] sm:$0xff] %vm406, %v605
        %610 = vst.msk [vmem:[%s607 + $0x10] sm:$0x3] %vm409, %v606
        %s611 = scalar_lea.vmem %s384, 120
        %v612 = vld [vmem:[%s611] sm:$0xff]
        %v613 = vld [vmem:[%s611 + $0x8] sm:$0xff]
        %v614 = vld [vmem:[%s611 + $0x10] sm:$0x3]
        %v616 = vsel %vm418, %v612, 0
        %v619 = vsel %vm418, %v613, 0
        %v622 = vsel %vm418, %v614, 0
        %624 = vmatpush.msra.mxu0 0.0
        %625 = vmatpush.msra.mxu0 0.0
        %626 = vmatpush.msra.mxu0 0.0
        %627 = vmatpush.msra.mxu0 0.0
        %628 = vmatpush.msra.mxu0 0.0
        %629 = vmatpush.msra.mxu0 0.0
        %630 = vmatpush.msra.mxu0 0.0
        %631 = vmatpush.msra.mxu0 0.0
        %632 = vmatpush.msra.mxu0 0.0
        %633 = vmatpush.msra.mxu0 0.0
        %634 = vmatpush.msra.mxu0 0.0
        %635 = vmatpush.msra.mxu0 0.0
        %636 = vmatpush.msra.mxu0 0.0
        %637 = vmatpush.msra.mxu0 0.0
        %638 = vmatpush.msra.mxu0 0.0
        %639 = vmatpush.msra.mxu0 %v385
        %640 = vmatmul.f32.gmra.mxu0 %v616
        %v641 = vpop.f32.mrf.mxu0
        %v642 = vadd.f32 %v416, %v641
        %643 = vmatmul.f32.gmra.mxu0 %v619
        %v644 = vpop.f32.mrf.mxu0
        %v645 = vadd.f32 %v416, %v644
        %646 = vmatmul.f32.gmra.mxu0 %v622
        %v647 = vpop.f32.mrf.mxu0
        %v648 = vadd.f32 %v416, %v647
        %649 = vdwg.mxu0
        %v650 = vmax.f32 %v642, 0.0
        %v651 = vmax.f32 %v645, 0.0
        %v652 = vmax.f32 %v648, 0.0
        %v653 = vmul.f32 %v650, %v403
        %v654 = vmul.f32 %v651, %v404
        %v655 = vmul.f32 %v652, %v405
        %s656 = scalar_lea.vmem [#allocation2], 120
        %657 = vst.msk [vmem:[%s656] sm:$0xff] %vm406, %v653
        %658 = vst.msk [vmem:[%s656 + $0x8] sm:$0xff] %vm406, %v654
        %659 = vst.msk [vmem:[%s656 + $0x10] sm:$0x3] %vm409, %v655
        %s660 = scalar_lea.vmem %s384, 144
        %v661 = vld [vmem:[%s660] sm:$0xff]
        %v662 = vld [vmem:[%s660 + $0x8] sm:$0xff]
        %v663 = vld [vmem:[%s660 + $0x10] sm:$0x3]
        %v665 = vsel %vm418, %v661, 0
        %v668 = vsel %vm418, %v662, 0
        %v671 = vsel %vm418, %v663, 0
        %673 = vmatpush.msra.mxu0 0.0
        %674 = vmatpush.msra.mxu0 0.0
        %675 = vmatpush.msra.mxu0 0.0
        %676 = vmatpush.msra.mxu0 0.0
        %677 = vmatpush.msra.mxu0 0.0
        %678 = vmatpush.msra.mxu0 0.0
        %679 = vmatpush.msra.mxu0 0.0
        %680 = vmatpush.msra.mxu0 0.0
        %681 = vmatpush.msra.mxu0 0.0
        %682 = vmatpush.msra.mxu0 0.0
        %683 = vmatpush.msra.mxu0 0.0
        %684 = vmatpush.msra.mxu0 0.0
        %685 = vmatpush.msra.mxu0 0.0
        %686 = vmatpush.msra.mxu0 0.0
        %687 = vmatpush.msra.mxu0 0.0
        %688 = vmatpush.msra.mxu0 %v385
        %689 = vmatmul.f32.gmra.mxu0 %v665
        %v690 = vpop.f32.mrf.mxu0
        %v691 = vadd.f32 %v416, %v690
        %692 = vmatmul.f32.gmra.mxu0 %v668
        %v693 = vpop.f32.mrf.mxu0
        %v694 = vadd.f32 %v416, %v693
        %695 = vmatmul.f32.gmra.mxu0 %v671
        %v696 = vpop.f32.mrf.mxu0
        %v697 = vadd.f32 %v416, %v696
        %698 = vdwg.mxu0
        %v699 = vmax.f32 %v691, 0.0
        %v700 = vmax.f32 %v694, 0.0
        %v701 = vmax.f32 %v697, 0.0
        %v702 = vmul.f32 %v699, %v403
        %v703 = vmul.f32 %v700, %v404
        %v704 = vmul.f32 %v701, %v405
        %s705 = scalar_lea.vmem [#allocation2], 144
        %706 = vst.msk [vmem:[%s705] sm:$0xff] %vm406, %v702
        %707 = vst.msk [vmem:[%s705 + $0x8] sm:$0xff] %vm406, %v703
        %708 = vst.msk [vmem:[%s705 + $0x10] sm:$0x3] %vm409, %v704
        %s709 = scalar_lea.vmem %s384, 168
        %v710 = vld [vmem:[%s709] sm:$0xff]
        %v711 = vld [vmem:[%s709 + $0x8] sm:$0xff]
        %v712 = vld [vmem:[%s709 + $0x10] sm:$0x3]
        %v714 = vsel %vm418, %v710, 0
        %v717 = vsel %vm418, %v711, 0
        %v720 = vsel %vm418, %v712, 0
        %722 = vmatpush.msra.mxu0 0.0
        %723 = vmatpush.msra.mxu0 0.0
        %724 = vmatpush.msra.mxu0 0.0
        %725 = vmatpush.msra.mxu0 0.0
        %726 = vmatpush.msra.mxu0 0.0
        %727 = vmatpush.msra.mxu0 0.0
        %728 = vmatpush.msra.mxu0 0.0
        %729 = vmatpush.msra.mxu0 0.0
        %730 = vmatpush.msra.mxu0 0.0
        %731 = vmatpush.msra.mxu0 0.0
        %732 = vmatpush.msra.mxu0 0.0
        %733 = vmatpush.msra.mxu0 0.0
        %734 = vmatpush.msra.mxu0 0.0
        %735 = vmatpush.msra.mxu0 0.0
        %736 = vmatpush.msra.mxu0 0.0
        %737 = vmatpush.msra.mxu0 %v385
        %738 = vmatmul.f32.gmra.mxu0 %v714
        %v739 = vpop.f32.mrf.mxu0
        %v740 = vadd.f32 %v416, %v739
        %741 = vmatmul.f32.gmra.mxu0 %v717
        %v742 = vpop.f32.mrf.mxu0
        %v743 = vadd.f32 %v416, %v742
        %744 = vmatmul.f32.gmra.mxu0 %v720
        %v745 = vpop.f32.mrf.mxu0
        %v746 = vadd.f32 %v416, %v745
        %747 = vdwg.mxu0
        %v748 = vmax.f32 %v740, 0.0
        %v749 = vmax.f32 %v743, 0.0
        %v750 = vmax.f32 %v746, 0.0
        %v751 = vmul.f32 %v748, %v403
        %v752 = vmul.f32 %v749, %v404
        %v753 = vmul.f32 %v750, %v405
        %s754 = scalar_lea.vmem [#allocation2], 168
        %755 = vst.msk [vmem:[%s754] sm:$0xff] %vm406, %v751
        %756 = vst.msk [vmem:[%s754 + $0x8] sm:$0xff] %vm406, %v752
        %757 = vst.msk [vmem:[%s754 + $0x10] sm:$0x3] %vm409, %v753
        %s758 = scalar_lea.vmem %s384, 192
        %v759 = vld [vmem:[%s758] sm:$0xff]
        %v760 = vld [vmem:[%s758 + $0x8] sm:$0xff]
        %v761 = vld [vmem:[%s758 + $0x10] sm:$0x3]
        %v763 = vsel %vm418, %v759, 0
        %v766 = vsel %vm418, %v760, 0
        %v769 = vsel %vm418, %v761, 0
        %771 = vmatpush.msra.mxu0 0.0
        %772 = vmatpush.msra.mxu0 0.0
        %773 = vmatpush.msra.mxu0 0.0
        %774 = vmatpush.msra.mxu0 0.0
        %775 = vmatpush.msra.mxu0 0.0
        %776 = vmatpush.msra.mxu0 0.0
        %777 = vmatpush.msra.mxu0 0.0
        %778 = vmatpush.msra.mxu0 0.0
        %779 = vmatpush.msra.mxu0 0.0
        %780 = vmatpush.msra.mxu0 0.0
        %781 = vmatpush.msra.mxu0 0.0
        %782 = vmatpush.msra.mxu0 0.0
        %783 = vmatpush.msra.mxu0 0.0
        %784 = vmatpush.msra.mxu0 0.0
        %785 = vmatpush.msra.mxu0 0.0
        %786 = vmatpush.msra.mxu0 %v385
        %787 = vmatmul.f32.gmra.mxu0 %v763
        %v788 = vpop.f32.mrf.mxu0
        %v789 = vadd.f32 %v416, %v788
        %790 = vmatmul.f32.gmra.mxu0 %v766
        %v791 = vpop.f32.mrf.mxu0
        %v792 = vadd.f32 %v416, %v791
        %793 = vmatmul.f32.gmra.mxu0 %v769
        %v794 = vpop.f32.mrf.mxu0
        %v795 = vadd.f32 %v416, %v794
        %796 = vdwg.mxu0
        %v797 = vmax.f32 %v789, 0.0
        %v798 = vmax.f32 %v792, 0.0
        %v799 = vmax.f32 %v795, 0.0
        %v800 = vmul.f32 %v797, %v403
        %v801 = vmul.f32 %v798, %v404
        %v802 = vmul.f32 %v799, %v405
        %s803 = scalar_lea.vmem [#allocation2], 192
        %804 = vst.msk [vmem:[%s803] sm:$0xff] %vm406, %v800
        %805 = vst.msk [vmem:[%s803 + $0x8] sm:$0xff] %vm406, %v801
        %806 = vst.msk [vmem:[%s803 + $0x10] sm:$0x3] %vm409, %v802
        %s807 = scalar_lea.vmem %s384, 216
        %v808 = vld [vmem:[%s807] sm:$0xff]
        %v809 = vld [vmem:[%s807 + $0x8] sm:$0xff]
        %v810 = vld [vmem:[%s807 + $0x10] sm:$0x3]
        %v812 = vsel %vm418, %v808, 0
        %v815 = vsel %vm418, %v809, 0
        %v818 = vsel %vm418, %v810, 0
        %820 = vmatpush.msra.mxu0 0.0
        %821 = vmatpush.msra.mxu0 0.0
        %822 = vmatpush.msra.mxu0 0.0
        %823 = vmatpush.msra.mxu0 0.0
        %824 = vmatpush.msra.mxu0 0.0
        %825 = vmatpush.msra.mxu0 0.0
        %826 = vmatpush.msra.mxu0 0.0
        %827 = vmatpush.msra.mxu0 0.0
        %828 = vmatpush.msra.mxu0 0.0
        %829 = vmatpush.msra.mxu0 0.0
        %830 = vmatpush.msra.mxu0 0.0
        %831 = vmatpush.msra.mxu0 0.0
        %832 = vmatpush.msra.mxu0 0.0
        %833 = vmatpush.msra.mxu0 0.0
        %834 = vmatpush.msra.mxu0 0.0
        %835 = vmatpush.msra.mxu0 %v385
        %836 = vmatmul.f32.gmra.mxu0 %v812
        %v837 = vpop.f32.mrf.mxu0
        %v838 = vadd.f32 %v416, %v837
        %839 = vmatmul.f32.gmra.mxu0 %v815
        %v840 = vpop.f32.mrf.mxu0
        %v841 = vadd.f32 %v416, %v840
        %842 = vmatmul.f32.gmra.mxu0 %v818
        %v843 = vpop.f32.mrf.mxu0
        %v844 = vadd.f32 %v416, %v843
        %845 = vdwg.mxu0
        %v846 = vmax.f32 %v838, 0.0
        %v847 = vmax.f32 %v841, 0.0
        %v848 = vmax.f32 %v844, 0.0
        %v849 = vmul.f32 %v846, %v403
        %v850 = vmul.f32 %v847, %v404
        %v851 = vmul.f32 %v848, %v405
        %s852 = scalar_lea.vmem [#allocation2], 216
        %853 = vst.msk [vmem:[%s852] sm:$0xff] %vm406, %v849
        %854 = vst.msk [vmem:[%s852 + $0x8] sm:$0xff] %vm406, %v850
        %855 = vst.msk [vmem:[%s852 + $0x10] sm:$0x3] %vm409, %v851
        %s856 = scalar_lea.vmem %s384, 240
        %v857 = vld [vmem:[%s856] sm:$0xff]
        %v858 = vld [vmem:[%s856 + $0x8] sm:$0xff]
        %v859 = vld [vmem:[%s856 + $0x10] sm:$0x3]
        %v861 = vsel %vm418, %v857, 0
        %v864 = vsel %vm418, %v858, 0
        %v867 = vsel %vm418, %v859, 0
        %869 = vmatpush.msra.mxu0 0.0
        %870 = vmatpush.msra.mxu0 0.0
        %871 = vmatpush.msra.mxu0 0.0
        %872 = vmatpush.msra.mxu0 0.0
        %873 = vmatpush.msra.mxu0 0.0
        %874 = vmatpush.msra.mxu0 0.0
        %875 = vmatpush.msra.mxu0 0.0
        %876 = vmatpush.msra.mxu0 0.0
        %877 = vmatpush.msra.mxu0 0.0
        %878 = vmatpush.msra.mxu0 0.0
        %879 = vmatpush.msra.mxu0 0.0
        %880 = vmatpush.msra.mxu0 0.0
        %881 = vmatpush.msra.mxu0 0.0
        %882 = vmatpush.msra.mxu0 0.0
        %883 = vmatpush.msra.mxu0 0.0
        %884 = vmatpush.msra.mxu0 %v385
        %885 = vmatmul.f32.gmra.mxu0 %v861
        %v886 = vpop.f32.mrf.mxu0
        %v887 = vadd.f32 %v416, %v886
        %888 = vmatmul.f32.gmra.mxu0 %v864
        %v889 = vpop.f32.mrf.mxu0
        %v890 = vadd.f32 %v416, %v889
        %891 = vmatmul.f32.gmra.mxu0 %v867
        %v892 = vpop.f32.mrf.mxu0
        %v893 = vadd.f32 %v416, %v892
        %894 = vdwg.mxu0
        %v895 = vmax.f32 %v887, 0.0
        %v896 = vmax.f32 %v890, 0.0
        %v897 = vmax.f32 %v893, 0.0
        %v898 = vmul.f32 %v895, %v403
        %v899 = vmul.f32 %v896, %v404
        %v900 = vmul.f32 %v897, %v405
        %s901 = scalar_lea.vmem [#allocation2], 240
        %902 = vst.msk [vmem:[%s901] sm:$0xff] %vm406, %v898
        %903 = vst.msk [vmem:[%s901 + $0x8] sm:$0xff] %vm406, %v899
        %904 = vst.msk [vmem:[%s901 + $0x10] sm:$0x3] %vm409, %v900
        %s905 = scalar_lea.vmem %s384, 264
        %v906 = vld [vmem:[%s905] sm:$0xff]
        %v907 = vld [vmem:[%s905 + $0x8] sm:$0xff]
        %v908 = vld [vmem:[%s905 + $0x10] sm:$0x3]
        %v910 = vsel %vm418, %v906, 0
        %v913 = vsel %vm418, %v907, 0
        %v916 = vsel %vm418, %v908, 0
        %918 = vmatpush.msra.mxu0 0.0
        %919 = vmatpush.msra.mxu0 0.0
        %920 = vmatpush.msra.mxu0 0.0
        %921 = vmatpush.msra.mxu0 0.0
        %922 = vmatpush.msra.mxu0 0.0
        %923 = vmatpush.msra.mxu0 0.0
        %924 = vmatpush.msra.mxu0 0.0
        %925 = vmatpush.msra.mxu0 0.0
        %926 = vmatpush.msra.mxu0 0.0
        %927 = vmatpush.msra.mxu0 0.0
        %928 = vmatpush.msra.mxu0 0.0
        %929 = vmatpush.msra.mxu0 0.0
        %930 = vmatpush.msra.mxu0 0.0
        %931 = vmatpush.msra.mxu0 0.0
        %932 = vmatpush.msra.mxu0 0.0
        %933 = vmatpush.msra.mxu0 %v385
        %934 = vmatmul.f32.gmra.mxu0 %v910
        %v935 = vpop.f32.mrf.mxu0
        %v936 = vadd.f32 %v416, %v935
        %937 = vmatmul.f32.gmra.mxu0 %v913
        %v938 = vpop.f32.mrf.mxu0
        %v939 = vadd.f32 %v416, %v938
        %940 = vmatmul.f32.gmra.mxu0 %v916
        %v941 = vpop.f32.mrf.mxu0
        %v942 = vadd.f32 %v416, %v941
        %943 = vdwg.mxu0
        %v944 = vmax.f32 %v936, 0.0
        %v945 = vmax.f32 %v939, 0.0
        %v946 = vmax.f32 %v942, 0.0
        %v947 = vmul.f32 %v944, %v403
        %v948 = vmul.f32 %v945, %v404
        %v949 = vmul.f32 %v946, %v405
        %s950 = scalar_lea.vmem [#allocation2], 264
        %951 = vst.msk [vmem:[%s950] sm:$0xff] %vm406, %v947
        %952 = vst.msk [vmem:[%s950 + $0x8] sm:$0xff] %vm406, %v948
        %953 = vst.msk [vmem:[%s950 + $0x10] sm:$0x3] %vm409, %v949
        %s954 = scalar_lea.vmem %s384, 288
        %v955 = vld [vmem:[%s954] sm:$0xff]
        %v956 = vld [vmem:[%s954 + $0x8] sm:$0xff]
        %v957 = vld [vmem:[%s954 + $0x10] sm:$0x3]
        %v959 = vsel %vm418, %v955, 0
        %v962 = vsel %vm418, %v956, 0
        %v965 = vsel %vm418, %v957, 0
        %967 = vmatpush.msra.mxu0 0.0
        %968 = vmatpush.msra.mxu0 0.0
        %969 = vmatpush.msra.mxu0 0.0
        %970 = vmatpush.msra.mxu0 0.0
        %971 = vmatpush.msra.mxu0 0.0
        %972 = vmatpush.msra.mxu0 0.0
        %973 = vmatpush.msra.mxu0 0.0
        %974 = vmatpush.msra.mxu0 0.0
        %975 = vmatpush.msra.mxu0 0.0
        %976 = vmatpush.msra.mxu0 0.0
        %977 = vmatpush.msra.mxu0 0.0
        %978 = vmatpush.msra.mxu0 0.0
        %979 = vmatpush.msra.mxu0 0.0
        %980 = vmatpush.msra.mxu0 0.0
        %981 = vmatpush.msra.mxu0 0.0
        %982 = vmatpush.msra.mxu0 %v385
        %983 = vmatmul.f32.gmra.mxu0 %v959
        %v984 = vpop.f32.mrf.mxu0
        %v985 = vadd.f32 %v416, %v984
        %986 = vmatmul.f32.gmra.mxu0 %v962
        %v987 = vpop.f32.mrf.mxu0
        %v988 = vadd.f32 %v416, %v987
        %989 = vmatmul.f32.gmra.mxu0 %v965
        %v990 = vpop.f32.mrf.mxu0
        %v991 = vadd.f32 %v416, %v990
        %992 = vdwg.mxu0
        %v993 = vmax.f32 %v985, 0.0
        %v994 = vmax.f32 %v988, 0.0
        %v995 = vmax.f32 %v991, 0.0
        %v996 = vmul.f32 %v993, %v403
        %v997 = vmul.f32 %v994, %v404
        %v998 = vmul.f32 %v995, %v405
        %s999 = scalar_lea.vmem [#allocation2], 288
        %1000 = vst.msk [vmem:[%s999] sm:$0xff] %vm406, %v996
        %1001 = vst.msk [vmem:[%s999 + $0x8] sm:$0xff] %vm406, %v997
        %1002 = vst.msk [vmem:[%s999 + $0x10] sm:$0x3] %vm409, %v998
        %s1003 = scalar_lea.vmem %s384, 312
        %v1004 = vld [vmem:[%s1003] sm:$0xff]
        %v1005 = vld [vmem:[%s1003 + $0x8] sm:$0xff]
        %v1006 = vld [vmem:[%s1003 + $0x10] sm:$0x3]
        %v1008 = vsel %vm418, %v1004, 0
        %v1011 = vsel %vm418, %v1005, 0
        %v1014 = vsel %vm418, %v1006, 0
        %1016 = vmatpush.msra.mxu0 0.0
        %1017 = vmatpush.msra.mxu0 0.0
        %1018 = vmatpush.msra.mxu0 0.0
        %1019 = vmatpush.msra.mxu0 0.0
        %1020 = vmatpush.msra.mxu0 0.0
        %1021 = vmatpush.msra.mxu0 0.0
        %1022 = vmatpush.msra.mxu0 0.0
        %1023 = vmatpush.msra.mxu0 0.0
        %1024 = vmatpush.msra.mxu0 0.0
        %1025 = vmatpush.msra.mxu0 0.0
        %1026 = vmatpush.msra.mxu0 0.0
        %1027 = vmatpush.msra.mxu0 0.0
        %1028 = vmatpush.msra.mxu0 0.0
        %1029 = vmatpush.msra.mxu0 0.0
        %1030 = vmatpush.msra.mxu0 0.0
        %1031 = vmatpush.msra.mxu0 %v385
        %1032 = vmatmul.f32.gmra.mxu0 %v1008
        %v1033 = vpop.f32.mrf.mxu0
        %v1034 = vadd.f32 %v416, %v1033
        %1035 = vmatmul.f32.gmra.mxu0 %v1011
        %v1036 = vpop.f32.mrf.mxu0
        %v1037 = vadd.f32 %v416, %v1036
        %1038 = vmatmul.f32.gmra.mxu0 %v1014
        %v1039 = vpop.f32.mrf.mxu0
        %v1040 = vadd.f32 %v416, %v1039
        %1041 = vdwg.mxu0
        %v1042 = vmax.f32 %v1034, 0.0
        %v1043 = vmax.f32 %v1037, 0.0
        %v1044 = vmax.f32 %v1040, 0.0
        %v1045 = vmul.f32 %v1042, %v403
        %v1046 = vmul.f32 %v1043, %v404
        %v1047 = vmul.f32 %v1044, %v405
        %s1048 = scalar_lea.vmem [#allocation2], 312
        %1049 = vst.msk [vmem:[%s1048] sm:$0xff] %vm406, %v1045
        %1050 = vst.msk [vmem:[%s1048 + $0x8] sm:$0xff] %vm406, %v1046
        %1051 = vst.msk [vmem:[%s1048 + $0x10] sm:$0x3] %vm409, %v1047
        %s1052 = scalar_lea.vmem %s384, 336
        %v1053 = vld [vmem:[%s1052] sm:$0xff]
        %v1054 = vld [vmem:[%s1052 + $0x8] sm:$0xff]
        %v1055 = vld [vmem:[%s1052 + $0x10] sm:$0x3]
        %v1057 = vsel %vm418, %v1053, 0
        %v1060 = vsel %vm418, %v1054, 0
        %v1063 = vsel %vm418, %v1055, 0
        %1065 = vmatpush.msra.mxu0 0.0
        %1066 = vmatpush.msra.mxu0 0.0
        %1067 = vmatpush.msra.mxu0 0.0
        %1068 = vmatpush.msra.mxu0 0.0
        %1069 = vmatpush.msra.mxu0 0.0
        %1070 = vmatpush.msra.mxu0 0.0
        %1071 = vmatpush.msra.mxu0 0.0
        %1072 = vmatpush.msra.mxu0 0.0
        %1073 = vmatpush.msra.mxu0 0.0
        %1074 = vmatpush.msra.mxu0 0.0
        %1075 = vmatpush.msra.mxu0 0.0
        %1076 = vmatpush.msra.mxu0 0.0
        %1077 = vmatpush.msra.mxu0 0.0
        %1078 = vmatpush.msra.mxu0 0.0
        %1079 = vmatpush.msra.mxu0 0.0
        %1080 = vmatpush.msra.mxu0 %v385
        %1081 = vmatmul.f32.gmra.mxu0 %v1057
        %v1082 = vpop.f32.mrf.mxu0
        %v1083 = vadd.f32 %v416, %v1082
        %1084 = vmatmul.f32.gmra.mxu0 %v1060
        %v1085 = vpop.f32.mrf.mxu0
        %v1086 = vadd.f32 %v416, %v1085
        %1087 = vmatmul.f32.gmra.mxu0 %v1063
        %v1088 = vpop.f32.mrf.mxu0
        %v1089 = vadd.f32 %v416, %v1088
        %1090 = vdwg.mxu0
        %v1091 = vmax.f32 %v1083, 0.0
        %v1092 = vmax.f32 %v1086, 0.0
        %v1093 = vmax.f32 %v1089, 0.0
        %v1094 = vmul.f32 %v1091, %v403
        %v1095 = vmul.f32 %v1092, %v404
        %v1096 = vmul.f32 %v1093, %v405
        %s1097 = scalar_lea.vmem [#allocation2], 336
        %1098 = vst.msk [vmem:[%s1097] sm:$0xff] %vm406, %v1094
        %1099 = vst.msk [vmem:[%s1097 + $0x8] sm:$0xff] %vm406, %v1095
        %1100 = vst.msk [vmem:[%s1097 + $0x10] sm:$0x3] %vm409, %v1096
        %s1101 = scalar_lea.vmem %s384, 360
        %v1102 = vld [vmem:[%s1101] sm:$0xff]
        %v1103 = vld [vmem:[%s1101 + $0x8] sm:$0xff]
        %v1104 = vld [vmem:[%s1101 + $0x10] sm:$0x3]
        %v1106 = vsel %vm418, %v1102, 0
        %v1109 = vsel %vm418, %v1103, 0
        %v1112 = vsel %vm418, %v1104, 0
        %1114 = vmatpush.msra.mxu0 0.0
        %1115 = vmatpush.msra.mxu0 0.0
        %1116 = vmatpush.msra.mxu0 0.0
        %1117 = vmatpush.msra.mxu0 0.0
        %1118 = vmatpush.msra.mxu0 0.0
        %1119 = vmatpush.msra.mxu0 0.0
        %1120 = vmatpush.msra.mxu0 0.0
        %1121 = vmatpush.msra.mxu0 0.0
        %1122 = vmatpush.msra.mxu0 0.0
        %1123 = vmatpush.msra.mxu0 0.0
        %1124 = vmatpush.msra.mxu0 0.0
        %1125 = vmatpush.msra.mxu0 0.0
        %1126 = vmatpush.msra.mxu0 0.0
        %1127 = vmatpush.msra.mxu0 0.0
        %1128 = vmatpush.msra.mxu0 0.0
        %1129 = vmatpush.msra.mxu0 %v385
        %1130 = vmatmul.f32.gmra.mxu0 %v1106
        %v1131 = vpop.f32.mrf.mxu0
        %v1132 = vadd.f32 %v416, %v1131
        %1133 = vmatmul.f32.gmra.mxu0 %v1109
        %v1134 = vpop.f32.mrf.mxu0
        %v1135 = vadd.f32 %v416, %v1134
        %1136 = vmatmul.f32.gmra.mxu0 %v1112
        %v1137 = vpop.f32.mrf.mxu0
        %v1138 = vadd.f32 %v416, %v1137
        %1139 = vdwg.mxu0
        %v1140 = vmax.f32 %v1132, 0.0
        %v1141 = vmax.f32 %v1135, 0.0
        %v1142 = vmax.f32 %v1138, 0.0
        %v1143 = vmul.f32 %v1140, %v403
        %v1144 = vmul.f32 %v1141, %v404
        %v1145 = vmul.f32 %v1142, %v405
        %s1146 = scalar_lea.vmem [#allocation2], 360
        %1147 = vst.msk [vmem:[%s1146] sm:$0xff] %vm406, %v1143
        %1148 = vst.msk [vmem:[%s1146 + $0x8] sm:$0xff] %vm406, %v1144
        %1149 = vst.msk [vmem:[%s1146 + $0x10] sm:$0x3] %vm409, %v1145
        %s1150 = scalar_lea.vmem %s384, 384
        %v1151 = vld [vmem:[%s1150] sm:$0xff]
        %v1152 = vld [vmem:[%s1150 + $0x8] sm:$0xff]
        %v1153 = vld [vmem:[%s1150 + $0x10] sm:$0x3]
        %v1155 = vsel %vm418, %v1151, 0
        %v1158 = vsel %vm418, %v1152, 0
        %v1161 = vsel %vm418, %v1153, 0
        %1163 = vmatpush.msra.mxu0 0.0
        %1164 = vmatpush.msra.mxu0 0.0
        %1165 = vmatpush.msra.mxu0 0.0
        %1166 = vmatpush.msra.mxu0 0.0
        %1167 = vmatpush.msra.mxu0 0.0
        %1168 = vmatpush.msra.mxu0 0.0
        %1169 = vmatpush.msra.mxu0 0.0
        %1170 = vmatpush.msra.mxu0 0.0
        %1171 = vmatpush.msra.mxu0 0.0
        %1172 = vmatpush.msra.mxu0 0.0
        %1173 = vmatpush.msra.mxu0 0.0
        %1174 = vmatpush.msra.mxu0 0.0
        %1175 = vmatpush.msra.mxu0 0.0
        %1176 = vmatpush.msra.mxu0 0.0
        %1177 = vmatpush.msra.mxu0 0.0
        %1178 = vmatpush.msra.mxu0 %v385
        %1179 = vmatmul.f32.gmra.mxu0 %v1155
        %v1180 = vpop.f32.mrf.mxu0
        %v1181 = vadd.f32 %v416, %v1180
        %1182 = vmatmul.f32.gmra.mxu0 %v1158
        %v1183 = vpop.f32.mrf.mxu0
        %v1184 = vadd.f32 %v416, %v1183
        %1185 = vmatmul.f32.gmra.mxu0 %v1161
        %v1186 = vpop.f32.mrf.mxu0
        %v1187 = vadd.f32 %v416, %v1186
        %1188 = vdwg.mxu0
        %v1189 = vmax.f32 %v1181, 0.0
        %v1190 = vmax.f32 %v1184, 0.0
        %v1191 = vmax.f32 %v1187, 0.0
        %v1192 = vmul.f32 %v1189, %v403
        %v1193 = vmul.f32 %v1190, %v404
        %v1194 = vmul.f32 %v1191, %v405
        %s1195 = scalar_lea.vmem [#allocation2], 384
        %1196 = vst.msk [vmem:[%s1195] sm:$0xff] %vm406, %v1192
        %1197 = vst.msk [vmem:[%s1195 + $0x8] sm:$0xff] %vm406, %v1193
        %1198 = vst.msk [vmem:[%s1195 + $0x10] sm:$0x3] %vm409, %v1194
        %s1199 = scalar_lea.vmem [#allocation2], 408
        %1200 = vst.msk [vmem:[%s1199] sm:$0xff] %vm406, 0.0
        %1201 = vst.msk [vmem:[%s1199 + $0x8] sm:$0xff] %vm406, 0.0
        %1202 = vst.msk [vmem:[%s1199 + $0x10] sm:$0x3] %vm409, 0.0
        %v1203 = vld [vmem:[#allocation2] sm:$0xff]
        %v1204 = vld [vmem:[#allocation2 + $0x8] sm:$0xff]
        %v1205 = vld [vmem:[#allocation2 + $0x10] sm:$0x3]
        %v1206 = vld [vmem:[#allocation2 + $0x18] sm:$0xff]
        %v1207 = vld [vmem:[#allocation2 + $0x20] sm:$0xff]
        %v1208 = vld [vmem:[#allocation2 + $0x28] sm:$0x3]
        %v1209 = vld [vmem:[#allocation2 + $0x30] sm:$0xff]
        %v1210 = vld [vmem:[#allocation2 + $0x38] sm:$0xff]
        %v1211 = vld [vmem:[#allocation2 + $0x40] sm:$0x3]
        %v1212 = vld [vmem:[#allocation2 + $0x48] sm:$0xff]
        %v1213 = vld [vmem:[#allocation2 + $0x50] sm:$0xff]
        %v1214 = vld [vmem:[#allocation2 + $0x58] sm:$0x3]
        %v1215 = vld [vmem:[#allocation2 + $0x60] sm:$0xff]
        %v1216 = vld [vmem:[#allocation2 + $0x68] sm:$0xff]
        %v1217 = vld [vmem:[#allocation2 + $0x70] sm:$0x3]
        %v1218 = vld [vmem:[#allocation2 + $0x78] sm:$0xff]
        %v1219 = vld [vmem:[#allocation2 + $0x80] sm:$0xff]
        %v1220 = vld [vmem:[#allocation2 + $0x88] sm:$0x3]
        %v1221 = vld [vmem:[#allocation2 + $0x90] sm:$0xff]
        %v1222 = vld [vmem:[#allocation2 + $0x98] sm:$0xff]
        %v1223 = vld [vmem:[#allocation2 + $0xa0] sm:$0x3]
        %v1224 = vld [vmem:[#allocation2 + $0xa8] sm:$0xff]
        %v1225 = vld [vmem:[#allocation2 + $0xb0] sm:$0xff]
        %v1226 = vld [vmem:[#allocation2 + $0xb8] sm:$0x3]
        %v1227 = vld [vmem:[#allocation2 + $0xc0] sm:$0xff]
        %v1228 = vld [vmem:[#allocation2 + $0xc8] sm:$0xff]
        %v1229 = vld [vmem:[#allocation2 + $0xd0] sm:$0x3]
        %v1230 = vld [vmem:[#allocation2 + $0xd8] sm:$0xff]
        %v1231 = vld [vmem:[#allocation2 + $0xe0] sm:$0xff]
        %v1232 = vld [vmem:[#allocation2 + $0xe8] sm:$0x3]
        %v1233 = vld [vmem:[#allocation2 + $0xf0] sm:$0xff]
        %v1234 = vld [vmem:[#allocation2 + $0xf8] sm:$0xff]
        %v1235 = vld [vmem:[#allocation2 + $0x100] sm:$0x3]
        %v1236 = vld [vmem:[#allocation2 + $0x108] sm:$0xff]
        %v1237 = vld [vmem:[#allocation2 + $0x110] sm:$0xff]
        %v1238 = vld [vmem:[#allocation2 + $0x118] sm:$0x3]
        %v1239 = vld [vmem:[#allocation2 + $0x120] sm:$0xff]
        %v1240 = vld [vmem:[#allocation2 + $0x128] sm:$0xff]
        %v1241 = vld [vmem:[#allocation2 + $0x130] sm:$0x3]
        %v1242 = vld [vmem:[#allocation2 + $0x138] sm:$0xff]
        %v1243 = vld [vmem:[#allocation2 + $0x140] sm:$0xff]
        %v1244 = vld [vmem:[#allocation2 + $0x148] sm:$0x3]
        %v1245 = vld [vmem:[#allocation2 + $0x150] sm:$0xff]
        %v1246 = vld [vmem:[#allocation2 + $0x158] sm:$0xff]
        %v1247 = vld [vmem:[#allocation2 + $0x160] sm:$0x3]
        %v1248 = vld [vmem:[#allocation2 + $0x168] sm:$0xff]
        %v1249 = vld [vmem:[#allocation2 + $0x170] sm:$0xff]
        %v1250 = vld [vmem:[#allocation2 + $0x178] sm:$0x3]
        %v1251 = vld [vmem:[#allocation2 + $0x180] sm:$0xff]
        %v1252 = vld [vmem:[#allocation2 + $0x188] sm:$0xff]
        %v1253 = vld [vmem:[#allocation2 + $0x190] sm:$0x3]
        %v1254 = vld [vmem:[#allocation2 + $0x198] sm:$0xff]
        %v1255 = vld [vmem:[#allocation2 + $0x1a0] sm:$0xff]
        %v1256 = vld [vmem:[#allocation2 + $0x1a8] sm:$0x3]
        %v1257 = vld [vmem:[%s3] sm:$0x7]
        %v1258 = vld [vmem:[%s3 + $0x4] sm:$0x7]
        %v1259 = vld [vmem:[%s3 + $0x8] sm:$0x7]
        %v1260 = vld [vmem:[%s4] sm:$0x1]
        %v1261 = vperm.slane %v1257, 0
        %v1262 = vmul.f32 %v1203, %v1261
        %v1263 = vmul.f32 %v1204, %v1261
        %v1264 = vmul.f32 %v1206, %v1261
        %v1265 = vmul.f32 %v1207, %v1261
        %v1266 = vmul.f32 %v1209, %v1261
        %v1267 = vmul.f32 %v1210, %v1261
        %v1268 = vmul.f32 %v1212, %v1261
        %v1269 = vmul.f32 %v1213, %v1261
        %v1270 = vmul.f32 %v1215, %v1261
        %v1271 = vmul.f32 %v1216, %v1261
        %v1272 = vmul.f32 %v1218, %v1261
        %v1273 = vmul.f32 %v1219, %v1261
        %v1274 = vmul.f32 %v1221, %v1261
        %v1275 = vmul.f32 %v1222, %v1261
        %v1276 = vmul.f32 %v1224, %v1261
        %v1277 = vmul.f32 %v1225, %v1261
        %v1278 = vmul.f32 %v1227, %v1261
        %v1279 = vmul.f32 %v1228, %v1261
        %v1280 = vmul.f32 %v1230, %v1261
        %v1281 = vmul.f32 %v1231, %v1261
        %v1282 = vmul.f32 %v1233, %v1261
        %v1283 = vmul.f32 %v1234, %v1261
        %v1284 = vmul.f32 %v1236, %v1261
        %v1285 = vmul.f32 %v1237, %v1261
        %v1286 = vmul.f32 %v1239, %v1261
        %v1287 = vmul.f32 %v1240, %v1261
        %v1288 = vmul.f32 %v1242, %v1261
        %v1289 = vmul.f32 %v1243, %v1261
        %v1290 = vmul.f32 %v1245, %v1261
        %v1291 = vmul.f32 %v1246, %v1261
        %v1292 = vmul.f32 %v1248, %v1261
        %v1293 = vmul.f32 %v1249, %v1261
        %v1294 = vadd.f32 %v1262, 0.0
        %v1295 = vadd.f32 %v1263, 0.0
        %v1296 = vadd.f32 %v1264, 0.0
        %v1297 = vadd.f32 %v1265, 0.0
        %v1298 = vadd.f32 %v1266, 0.0
        %v1299 = vadd.f32 %v1267, 0.0
        %v1300 = vadd.f32 %v1268, 0.0
        %v1301 = vadd.f32 %v1269, 0.0
        %v1302 = vadd.f32 %v1270, 0.0
        %v1303 = vadd.f32 %v1271, 0.0
        %v1304 = vadd.f32 %v1272, 0.0
        %v1305 = vadd.f32 %v1273, 0.0
        %v1306 = vadd.f32 %v1274, 0.0
        %v1307 = vadd.f32 %v1275, 0.0
        %v1308 = vadd.f32 %v1276, 0.0
        %v1309 = vadd.f32 %v1277, 0.0
        %v1310 = vadd.f32 %v1278, 0.0
        %v1311 = vadd.f32 %v1279, 0.0
        %v1312 = vadd.f32 %v1280, 0.0
        %v1313 = vadd.f32 %v1281, 0.0
        %v1314 = vadd.f32 %v1282, 0.0
        %v1315 = vadd.f32 %v1283, 0.0
        %v1316 = vadd.f32 %v1284, 0.0
        %v1317 = vadd.f32 %v1285, 0.0
        %v1318 = vadd.f32 %v1286, 0.0
        %v1319 = vadd.f32 %v1287, 0.0
        %v1320 = vadd.f32 %v1288, 0.0
        %v1321 = vadd.f32 %v1289, 0.0
        %v1322 = vadd.f32 %v1290, 0.0
        %v1323 = vadd.f32 %v1291, 0.0
        %v1324 = vadd.f32 %v1292, 0.0
        %v1325 = vadd.f32 %v1293, 0.0
        %v1326 = vperm.slane %v1257, 1
        %v1327 = vmul.f32 %v1203, %v1326
        %v1328 = vmul.f32 %v1204, %v1326
        %v1329 = vmul.f32 %v1205, %v1326
        %v1330 = vmul.f32 %v1206, %v1326
        %v1331 = vmul.f32 %v1207, %v1326
        %v1332 = vmul.f32 %v1208, %v1326
        %v1333 = vmul.f32 %v1209, %v1326
        %v1334 = vmul.f32 %v1210, %v1326
        %v1335 = vmul.f32 %v1211, %v1326
        %v1336 = vmul.f32 %v1212, %v1326
        %v1337 = vmul.f32 %v1213, %v1326
        %v1338 = vmul.f32 %v1214, %v1326
        %v1339 = vmul.f32 %v1215, %v1326
        %v1340 = vmul.f32 %v1216, %v1326
        %v1341 = vmul.f32 %v1217, %v1326
        %v1342 = vmul.f32 %v1218, %v1326
        %v1343 = vmul.f32 %v1219, %v1326
        %v1344 = vmul.f32 %v1220, %v1326
        %v1345 = vmul.f32 %v1221, %v1326
        %v1346 = vmul.f32 %v1222, %v1326
        %v1347 = vmul.f32 %v1223, %v1326
        %v1348 = vmul.f32 %v1224, %v1326
        %v1349 = vmul.f32 %v1225, %v1326
        %v1350 = vmul.f32 %v1226, %v1326
        %v1351 = vmul.f32 %v1227, %v1326
        %v1352 = vmul.f32 %v1228, %v1326
        %v1353 = vmul.f32 %v1229, %v1326
        %v1354 = vmul.f32 %v1230, %v1326
        %v1355 = vmul.f32 %v1231, %v1326
        %v1356 = vmul.f32 %v1232, %v1326
        %v1357 = vmul.f32 %v1233, %v1326
        %v1358 = vmul.f32 %v1234, %v1326
        %v1359 = vmul.f32 %v1235, %v1326
        %v1360 = vmul.f32 %v1236, %v1326
        %v1361 = vmul.f32 %v1237, %v1326
        %v1362 = vmul.f32 %v1238, %v1326
        %v1363 = vmul.f32 %v1239, %v1326
        %v1364 = vmul.f32 %v1240, %v1326
        %v1365 = vmul.f32 %v1241, %v1326
        %v1366 = vmul.f32 %v1242, %v1326
        %v1367 = vmul.f32 %v1243, %v1326
        %v1368 = vmul.f32 %v1244, %v1326
        %v1369 = vmul.f32 %v1245, %v1326
        %v1370 = vmul.f32 %v1246, %v1326
        %v1371 = vmul.f32 %v1247, %v1326
        %v1372 = vmul.f32 %v1248, %v1326
        %v1373 = vmul.f32 %v1249, %v1326
        %v1374 = vmul.f32 %v1250, %v1326
        %vm1423 = vcmask 1046528
        %v1424 = vrot.slane %v1327, 1
        %v1425 = vrot.slane %v1328, 1
        %v1426 = vsel %vm1423, %v1424, %v1425
        %v1427 = vrot.slane %v1329, 1
        %v1428 = vsel %vm1423, %v1425, %v1427
        %v1429 = vrot.slane %v1330, 1
        %v1430 = vrot.slane %v1331, 1
        %v1431 = vsel %vm1423, %v1429, %v1430
        %v1432 = vrot.slane %v1332, 1
        %v1433 = vsel %vm1423, %v1430, %v1432
        %v1434 = vrot.slane %v1333, 1
        %v1435 = vrot.slane %v1334, 1
        %v1436 = vsel %vm1423, %v1434, %v1435
        %v1437 = vrot.slane %v1335, 1
        %v1438 = vsel %vm1423, %v1435, %v1437
        %v1439 = vrot.slane %v1336, 1
        %v1440 = vrot.slane %v1337, 1
        %v1441 = vsel %vm1423, %v1439, %v1440
        %v1442 = vrot.slane %v1338, 1
        %v1443 = vsel %vm1423, %v1440, %v1442
        %v1444 = vrot.slane %v1339, 1
        %v1445 = vrot.slane %v1340, 1
        %v1446 = vsel %vm1423, %v1444, %v1445
        %v1447 = vrot.slane %v1341, 1
        %v1448 = vsel %vm1423, %v1445, %v1447
        %v1449 = vrot.slane %v1342, 1
        %v1450 = vrot.slane %v1343, 1
        %v1451 = vsel %vm1423, %v1449, %v1450
        %v1452 = vrot.slane %v1344, 1
        %v1453 = vsel %vm1423, %v1450, %v1452
        %v1454 = vrot.slane %v1345, 1
        %v1455 = vrot.slane %v1346, 1
        %v1456 = vsel %vm1423, %v1454, %v1455
        %v1457 = vrot.slane %v1347, 1
        %v1458 = vsel %vm1423, %v1455, %v1457
        %v1459 = vrot.slane %v1348, 1
        %v1460 = vrot.slane %v1349, 1
        %v1461 = vsel %vm1423, %v1459, %v1460
        %v1462 = vrot.slane %v1350, 1
        %v1463 = vsel %vm1423, %v1460, %v1462
        %v1464 = vrot.slane %v1351, 1
        %v1465 = vrot.slane %v1352, 1
        %v1466 = vsel %vm1423, %v1464, %v1465
        %v1467 = vrot.slane %v1353, 1
        %v1468 = vsel %vm1423, %v1465, %v1467
        %v1469 = vrot.slane %v1354, 1
        %v1470 = vrot.slane %v1355, 1
        %v1471 = vsel %vm1423, %v1469, %v1470
        %v1472 = vrot.slane %v1356, 1
        %v1473 = vsel %vm1423, %v1470, %v1472
        %v1474 = vrot.slane %v1357, 1
        %v1475 = vrot.slane %v1358, 1
        %v1476 = vsel %vm1423, %v1474, %v1475
        %v1477 = vrot.slane %v1359, 1
        %v1478 = vsel %vm1423, %v1475, %v1477
        %v1479 = vrot.slane %v1360, 1
        %v1480 = vrot.slane %v1361, 1
        %v1481 = vsel %vm1423, %v1479, %v1480
        %v1482 = vrot.slane %v1362, 1
        %v1483 = vsel %vm1423, %v1480, %v1482
        %v1484 = vrot.slane %v1363, 1
        %v1485 = vrot.slane %v1364, 1
        %v1486 = vsel %vm1423, %v1484, %v1485
        %v1487 = vrot.slane %v1365, 1
        %v1488 = vsel %vm1423, %v1485, %v1487
        %v1489 = vrot.slane %v1366, 1
        %v1490 = vrot.slane %v1367, 1
        %v1491 = vsel %vm1423, %v1489, %v1490
        %v1492 = vrot.slane %v1368, 1
        %v1493 = vsel %vm1423, %v1490, %v1492
        %v1494 = vrot.slane %v1369, 1
        %v1495 = vrot.slane %v1370, 1
        %v1496 = vsel %vm1423, %v1494, %v1495
        %v1497 = vrot.slane %v1371, 1
        %v1498 = vsel %vm1423, %v1495, %v1497
        %v1499 = vrot.slane %v1372, 1
        %v1500 = vrot.slane %v1373, 1
        %v1501 = vsel %vm1423, %v1499, %v1500
        %v1502 = vrot.slane %v1374, 1
        %v1503 = vsel %vm1423, %v1500, %v1502
        %v1536 = vadd.f32 %v1294, %v1426
        %v1537 = vadd.f32 %v1295, %v1428
        %v1538 = vadd.f32 %v1296, %v1431
        %v1539 = vadd.f32 %v1297, %v1433
        %v1540 = vadd.f32 %v1298, %v1436
        %v1541 = vadd.f32 %v1299, %v1438
        %v1542 = vadd.f32 %v1300, %v1441
        %v1543 = vadd.f32 %v1301, %v1443
        %v1544 = vadd.f32 %v1302, %v1446
        %v1545 = vadd.f32 %v1303, %v1448
        %v1546 = vadd.f32 %v1304, %v1451
        %v1547 = vadd.f32 %v1305, %v1453
        %v1548 = vadd.f32 %v1306, %v1456
        %v1549 = vadd.f32 %v1307, %v1458
        %v1550 = vadd.f32 %v1308, %v1461
        %v1551 = vadd.f32 %v1309, %v1463
        %v1552 = vadd.f32 %v1310, %v1466
        %v1553 = vadd.f32 %v1311, %v1468
        %v1554 = vadd.f32 %v1312, %v1471
        %v1555 = vadd.f32 %v1313, %v1473
        %v1556 = vadd.f32 %v1314, %v1476
        %v1557 = vadd.f32 %v1315, %v1478
        %v1558 = vadd.f32 %v1316, %v1481
        %v1559 = vadd.f32 %v1317, %v1483
        %v1560 = vadd.f32 %v1318, %v1486
        %v1561 = vadd.f32 %v1319, %v1488
        %v1562 = vadd.f32 %v1320, %v1491
        %v1563 = vadd.f32 %v1321, %v1493
        %v1564 = vadd.f32 %v1322, %v1496
        %v1565 = vadd.f32 %v1323, %v1498
        %v1566 = vadd.f32 %v1324, %v1501
        %v1567 = vadd.f32 %v1325, %v1503
        %v1568 = vperm.slane %v1257, 2
        %v1569 = vmul.f32 %v1203, %v1568
        %v1570 = vmul.f32 %v1204, %v1568
        %v1571 = vmul.f32 %v1205, %v1568
        %v1572 = vmul.f32 %v1206, %v1568
        %v1573 = vmul.f32 %v1207, %v1568
        %v1574 = vmul.f32 %v1208, %v1568
        %v1575 = vmul.f32 %v1209, %v1568
        %v1576 = vmul.f32 %v1210, %v1568
        %v1577 = vmul.f32 %v1211, %v1568
        %v1578 = vmul.f32 %v1212, %v1568
        %v1579 = vmul.f32 %v1213, %v1568
        %v1580 = vmul.f32 %v1214, %v1568
        %v1581 = vmul.f32 %v1215, %v1568
        %v1582 = vmul.f32 %v1216, %v1568
        %v1583 = vmul.f32 %v1217, %v1568
        %v1584 = vmul.f32 %v1218, %v1568
        %v1585 = vmul.f32 %v1219, %v1568
        %v1586 = vmul.f32 %v1220, %v1568
        %v1587 = vmul.f32 %v1221, %v1568
        %v1588 = vmul.f32 %v1222, %v1568
        %v1589 = vmul.f32 %v1223, %v1568
        %v1590 = vmul.f32 %v1224, %v1568
        %v1591 = vmul.f32 %v1225, %v1568
        %v1592 = vmul.f32 %v1226, %v1568
        %v1593 = vmul.f32 %v1227, %v1568
        %v1594 = vmul.f32 %v1228, %v1568
        %v1595 = vmul.f32 %v1229, %v1568
        %v1596 = vmul.f32 %v1230, %v1568
        %v1597 = vmul.f32 %v1231, %v1568
        %v1598 = vmul.f32 %v1232, %v1568
        %v1599 = vmul.f32 %v1233, %v1568
        %v1600 = vmul.f32 %v1234, %v1568
        %v1601 = vmul.f32 %v1235, %v1568
        %v1602 = vmul.f32 %v1236, %v1568
        %v1603 = vmul.f32 %v1237, %v1568
        %v1604 = vmul.f32 %v1238, %v1568
        %v1605 = vmul.f32 %v1239, %v1568
        %v1606 = vmul.f32 %v1240, %v1568
        %v1607 = vmul.f32 %v1241, %v1568
        %v1608 = vmul.f32 %v1242, %v1568
        %v1609 = vmul.f32 %v1243, %v1568
        %v1610 = vmul.f32 %v1244, %v1568
        %v1611 = vmul.f32 %v1245, %v1568
        %v1612 = vmul.f32 %v1246, %v1568
        %v1613 = vmul.f32 %v1247, %v1568
        %v1614 = vmul.f32 %v1248, %v1568
        %v1615 = vmul.f32 %v1249, %v1568
        %v1616 = vmul.f32 %v1250, %v1568
        %vm1665 = vcmask 1045504
        %v1666 = vrot.slane %v1569, 2
        %v1667 = vrot.slane %v1570, 2
        %v1668 = vsel %vm1665, %v1666, %v1667
        %v1669 = vrot.slane %v1571, 2
        %v1670 = vsel %vm1665, %v1667, %v1669
        %v1671 = vrot.slane %v1572, 2
        %v1672 = vrot.slane %v1573, 2
        %v1673 = vsel %vm1665, %v1671, %v1672
        %v1674 = vrot.slane %v1574, 2
        %v1675 = vsel %vm1665, %v1672, %v1674
        %v1676 = vrot.slane %v1575, 2
        %v1677 = vrot.slane %v1576, 2
        %v1678 = vsel %vm1665, %v1676, %v1677
        %v1679 = vrot.slane %v1577, 2
        %v1680 = vsel %vm1665, %v1677, %v1679
        %v1681 = vrot.slane %v1578, 2
        %v1682 = vrot.slane %v1579, 2
        %v1683 = vsel %vm1665, %v1681, %v1682
        %v1684 = vrot.slane %v1580, 2
        %v1685 = vsel %vm1665, %v1682, %v1684
        %v1686 = vrot.slane %v1581, 2
        %v1687 = vrot.slane %v1582, 2
        %v1688 = vsel %vm1665, %v1686, %v1687
        %v1689 = vrot.slane %v1583, 2
        %v1690 = vsel %vm1665, %v1687, %v1689
        %v1691 = vrot.slane %v1584, 2
        %v1692 = vrot.slane %v1585, 2
        %v1693 = vsel %vm1665, %v1691, %v1692
        %v1694 = vrot.slane %v1586, 2
        %v1695 = vsel %vm1665, %v1692, %v1694
        %v1696 = vrot.slane %v1587, 2
        %v1697 = vrot.slane %v1588, 2
        %v1698 = vsel %vm1665, %v1696, %v1697
        %v1699 = vrot.slane %v1589, 2
        %v1700 = vsel %vm1665, %v1697, %v1699
        %v1701 = vrot.slane %v1590, 2
        %v1702 = vrot.slane %v1591, 2
        %v1703 = vsel %vm1665, %v1701, %v1702
        %v1704 = vrot.slane %v1592, 2
        %v1705 = vsel %vm1665, %v1702, %v1704
        %v1706 = vrot.slane %v1593, 2
        %v1707 = vrot.slane %v1594, 2
        %v1708 = vsel %vm1665, %v1706, %v1707
        %v1709 = vrot.slane %v1595, 2
        %v1710 = vsel %vm1665, %v1707, %v1709
        %v1711 = vrot.slane %v1596, 2
        %v1712 = vrot.slane %v1597, 2
        %v1713 = vsel %vm1665, %v1711, %v1712
        %v1714 = vrot.slane %v1598, 2
        %v1715 = vsel %vm1665, %v1712, %v1714
        %v1716 = vrot.slane %v1599, 2
        %v1717 = vrot.slane %v1600, 2
        %v1718 = vsel %vm1665, %v1716, %v1717
        %v1719 = vrot.slane %v1601, 2
        %v1720 = vsel %vm1665, %v1717, %v1719
        %v1721 = vrot.slane %v1602, 2
        %v1722 = vrot.slane %v1603, 2
        %v1723 = vsel %vm1665, %v1721, %v1722
        %v1724 = vrot.slane %v1604, 2
        %v1725 = vsel %vm1665, %v1722, %v1724
        %v1726 = vrot.slane %v1605, 2
        %v1727 = vrot.slane %v1606, 2
        %v1728 = vsel %vm1665, %v1726, %v1727
        %v1729 = vrot.slane %v1607, 2
        %v1730 = vsel %vm1665, %v1727, %v1729
        %v1731 = vrot.slane %v1608, 2
        %v1732 = vrot.slane %v1609, 2
        %v1733 = vsel %vm1665, %v1731, %v1732
        %v1734 = vrot.slane %v1610, 2
        %v1735 = vsel %vm1665, %v1732, %v1734
        %v1736 = vrot.slane %v1611, 2
        %v1737 = vrot.slane %v1612, 2
        %v1738 = vsel %vm1665, %v1736, %v1737
        %v1739 = vrot.slane %v1613, 2
        %v1740 = vsel %vm1665, %v1737, %v1739
        %v1741 = vrot.slane %v1614, 2
        %v1742 = vrot.slane %v1615, 2
        %v1743 = vsel %vm1665, %v1741, %v1742
        %v1744 = vrot.slane %v1616, 2
        %v1745 = vsel %vm1665, %v1742, %v1744
        %v1778 = vadd.f32 %v1536, %v1668
        %v1779 = vadd.f32 %v1537, %v1670
        %v1780 = vadd.f32 %v1538, %v1673
        %v1781 = vadd.f32 %v1539, %v1675
        %v1782 = vadd.f32 %v1540, %v1678
        %v1783 = vadd.f32 %v1541, %v1680
        %v1784 = vadd.f32 %v1542, %v1683
        %v1785 = vadd.f32 %v1543, %v1685
        %v1786 = vadd.f32 %v1544, %v1688
        %v1787 = vadd.f32 %v1545, %v1690
        %v1788 = vadd.f32 %v1546, %v1693
        %v1789 = vadd.f32 %v1547, %v1695
        %v1790 = vadd.f32 %v1548, %v1698
        %v1791 = vadd.f32 %v1549, %v1700
        %v1792 = vadd.f32 %v1550, %v1703
        %v1793 = vadd.f32 %v1551, %v1705
        %v1794 = vadd.f32 %v1552, %v1708
        %v1795 = vadd.f32 %v1553, %v1710
        %v1796 = vadd.f32 %v1554, %v1713
        %v1797 = vadd.f32 %v1555, %v1715
        %v1798 = vadd.f32 %v1556, %v1718
        %v1799 = vadd.f32 %v1557, %v1720
        %v1800 = vadd.f32 %v1558, %v1723
        %v1801 = vadd.f32 %v1559, %v1725
        %v1802 = vadd.f32 %v1560, %v1728
        %v1803 = vadd.f32 %v1561, %v1730
        %v1804 = vadd.f32 %v1562, %v1733
        %v1805 = vadd.f32 %v1563, %v1735
        %v1806 = vadd.f32 %v1564, %v1738
        %v1807 = vadd.f32 %v1565, %v1740
        %v1808 = vadd.f32 %v1566, %v1743
        %v1809 = vadd.f32 %v1567, %v1745
        %v1810 = vperm.slane %v1258, 0
        %v1811 = vmul.f32 %v1206, %v1810
        %v1812 = vmul.f32 %v1207, %v1810
        %v1813 = vmul.f32 %v1209, %v1810
        %v1814 = vmul.f32 %v1210, %v1810
        %v1815 = vmul.f32 %v1212, %v1810
        %v1816 = vmul.f32 %v1213, %v1810
        %v1817 = vmul.f32 %v1215, %v1810
        %v1818 = vmul.f32 %v1216, %v1810
        %v1819 = vmul.f32 %v1218, %v1810
        %v1820 = vmul.f32 %v1219, %v1810
        %v1821 = vmul.f32 %v1221, %v1810
        %v1822 = vmul.f32 %v1222, %v1810
        %v1823 = vmul.f32 %v1224, %v1810
        %v1824 = vmul.f32 %v1225, %v1810
        %v1825 = vmul.f32 %v1227, %v1810
        %v1826 = vmul.f32 %v1228, %v1810
        %v1827 = vmul.f32 %v1230, %v1810
        %v1828 = vmul.f32 %v1231, %v1810
        %v1829 = vmul.f32 %v1233, %v1810
        %v1830 = vmul.f32 %v1234, %v1810
        %v1831 = vmul.f32 %v1236, %v1810
        %v1832 = vmul.f32 %v1237, %v1810
        %v1833 = vmul.f32 %v1239, %v1810
        %v1834 = vmul.f32 %v1240, %v1810
        %v1835 = vmul.f32 %v1242, %v1810
        %v1836 = vmul.f32 %v1243, %v1810
        %v1837 = vmul.f32 %v1245, %v1810
        %v1838 = vmul.f32 %v1246, %v1810
        %v1839 = vmul.f32 %v1248, %v1810
        %v1840 = vmul.f32 %v1249, %v1810
        %v1841 = vmul.f32 %v1251, %v1810
        %v1842 = vmul.f32 %v1252, %v1810
        %v1843 = vadd.f32 %v1778, %v1811
        %v1844 = vadd.f32 %v1779, %v1812
        %v1845 = vadd.f32 %v1780, %v1813
        %v1846 = vadd.f32 %v1781, %v1814
        %v1847 = vadd.f32 %v1782, %v1815
        %v1848 = vadd.f32 %v1783, %v1816
        %v1849 = vadd.f32 %v1784, %v1817
        %v1850 = vadd.f32 %v1785, %v1818
        %v1851 = vadd.f32 %v1786, %v1819
        %v1852 = vadd.f32 %v1787, %v1820
        %v1853 = vadd.f32 %v1788, %v1821
        %v1854 = vadd.f32 %v1789, %v1822
        %v1855 = vadd.f32 %v1790, %v1823
        %v1856 = vadd.f32 %v1791, %v1824
        %v1857 = vadd.f32 %v1792, %v1825
        %v1858 = vadd.f32 %v1793, %v1826
        %v1859 = vadd.f32 %v1794, %v1827
        %v1860 = vadd.f32 %v1795, %v1828
        %v1861 = vadd.f32 %v1796, %v1829
        %v1862 = vadd.f32 %v1797, %v1830
        %v1863 = vadd.f32 %v1798, %v1831
        %v1864 = vadd.f32 %v1799, %v1832
        %v1865 = vadd.f32 %v1800, %v1833
        %v1866 = vadd.f32 %v1801, %v1834
        %v1867 = vadd.f32 %v1802, %v1835
        %v1868 = vadd.f32 %v1803, %v1836
        %v1869 = vadd.f32 %v1804, %v1837
        %v1870 = vadd.f32 %v1805, %v1838
        %v1871 = vadd.f32 %v1806, %v1839
        %v1872 = vadd.f32 %v1807, %v1840
        %v1873 = vadd.f32 %v1808, %v1841
        %v1874 = vadd.f32 %v1809, %v1842
        %v1875 = vperm.slane %v1258, 1
        %v1876 = vmul.f32 %v1206, %v1875
        %v1877 = vmul.f32 %v1207, %v1875
        %v1878 = vmul.f32 %v1208, %v1875
        %v1879 = vmul.f32 %v1209, %v1875
        %v1880 = vmul.f32 %v1210, %v1875
        %v1881 = vmul.f32 %v1211, %v1875
        %v1882 = vmul.f32 %v1212, %v1875
        %v1883 = vmul.f32 %v1213, %v1875
        %v1884 = vmul.f32 %v1214, %v1875
        %v1885 = vmul.f32 %v1215, %v1875
        %v1886 = vmul.f32 %v1216, %v1875
        %v1887 = vmul.f32 %v1217, %v1875
        %v1888 = vmul.f32 %v1218, %v1875
        %v1889 = vmul.f32 %v1219, %v1875
        %v1890 = vmul.f32 %v1220, %v1875
        %v1891 = vmul.f32 %v1221, %v1875
        %v1892 = vmul.f32 %v1222, %v1875
        %v1893 = vmul.f32 %v1223, %v1875
        %v1894 = vmul.f32 %v1224, %v1875
        %v1895 = vmul.f32 %v1225, %v1875
        %v1896 = vmul.f32 %v1226, %v1875
        %v1897 = vmul.f32 %v1227, %v1875
        %v1898 = vmul.f32 %v1228, %v1875
        %v1899 = vmul.f32 %v1229, %v1875
        %v1900 = vmul.f32 %v1230, %v1875
        %v1901 = vmul.f32 %v1231, %v1875
        %v1902 = vmul.f32 %v1232, %v1875
        %v1903 = vmul.f32 %v1233, %v1875
        %v1904 = vmul.f32 %v1234, %v1875
        %v1905 = vmul.f32 %v1235, %v1875
        %v1906 = vmul.f32 %v1236, %v1875
        %v1907 = vmul.f32 %v1237, %v1875
        %v1908 = vmul.f32 %v1238, %v1875
        %v1909 = vmul.f32 %v1239, %v1875
        %v1910 = vmul.f32 %v1240, %v1875
        %v1911 = vmul.f32 %v1241, %v1875
        %v1912 = vmul.f32 %v1242, %v1875
        %v1913 = vmul.f32 %v1243, %v1875
        %v1914 = vmul.f32 %v1244, %v1875
        %v1915 = vmul.f32 %v1245, %v1875
        %v1916 = vmul.f32 %v1246, %v1875
        %v1917 = vmul.f32 %v1247, %v1875
        %v1918 = vmul.f32 %v1248, %v1875
        %v1919 = vmul.f32 %v1249, %v1875
        %v1920 = vmul.f32 %v1250, %v1875
        %v1921 = vmul.f32 %v1251, %v1875
        %v1922 = vmul.f32 %v1252, %v1875
        %v1923 = vmul.f32 %v1253, %v1875
        %v1972 = vrot.slane %v1876, 1
        %v1973 = vrot.slane %v1877, 1
        %v1974 = vsel %vm1423, %v1972, %v1973
        %v1975 = vrot.slane %v1878, 1
        %v1976 = vsel %vm1423, %v1973, %v1975
        %v1977 = vrot.slane %v1879, 1
        %v1978 = vrot.slane %v1880, 1
        %v1979 = vsel %vm1423, %v1977, %v1978
        %v1980 = vrot.slane %v1881, 1
        %v1981 = vsel %vm1423, %v1978, %v1980
        %v1982 = vrot.slane %v1882, 1
        %v1983 = vrot.slane %v1883, 1
        %v1984 = vsel %vm1423, %v1982, %v1983
        %v1985 = vrot.slane %v1884, 1
        %v1986 = vsel %vm1423, %v1983, %v1985
        %v1987 = vrot.slane %v1885, 1
        %v1988 = vrot.slane %v1886, 1
        %v1989 = vsel %vm1423, %v1987, %v1988
        %v1990 = vrot.slane %v1887, 1
        %v1991 = vsel %vm1423, %v1988, %v1990
        %v1992 = vrot.slane %v1888, 1
        %v1993 = vrot.slane %v1889, 1
        %v1994 = vsel %vm1423, %v1992, %v1993
        %v1995 = vrot.slane %v1890, 1
        %v1996 = vsel %vm1423, %v1993, %v1995
        %v1997 = vrot.slane %v1891, 1
        %v1998 = vrot.slane %v1892, 1
        %v1999 = vsel %vm1423, %v1997, %v1998
        %v2000 = vrot.slane %v1893, 1
        %v2001 = vsel %vm1423, %v1998, %v2000
        %v2002 = vrot.slane %v1894, 1
        %v2003 = vrot.slane %v1895, 1
        %v2004 = vsel %vm1423, %v2002, %v2003
        %v2005 = vrot.slane %v1896, 1
        %v2006 = vsel %vm1423, %v2003, %v2005
        %v2007 = vrot.slane %v1897, 1
        %v2008 = vrot.slane %v1898, 1
        %v2009 = vsel %vm1423, %v2007, %v2008
        %v2010 = vrot.slane %v1899, 1
        %v2011 = vsel %vm1423, %v2008, %v2010
        %v2012 = vrot.slane %v1900, 1
        %v2013 = vrot.slane %v1901, 1
        %v2014 = vsel %vm1423, %v2012, %v2013
        %v2015 = vrot.slane %v1902, 1
        %v2016 = vsel %vm1423, %v2013, %v2015
        %v2017 = vrot.slane %v1903, 1
        %v2018 = vrot.slane %v1904, 1
        %v2019 = vsel %vm1423, %v2017, %v2018
        %v2020 = vrot.slane %v1905, 1
        %v2021 = vsel %vm1423, %v2018, %v2020
        %v2022 = vrot.slane %v1906, 1
        %v2023 = vrot.slane %v1907, 1
        %v2024 = vsel %vm1423, %v2022, %v2023
        %v2025 = vrot.slane %v1908, 1
        %v2026 = vsel %vm1423, %v2023, %v2025
        %v2027 = vrot.slane %v1909, 1
        %v2028 = vrot.slane %v1910, 1
        %v2029 = vsel %vm1423, %v2027, %v2028
        %v2030 = vrot.slane %v1911, 1
        %v2031 = vsel %vm1423, %v2028, %v2030
        %v2032 = vrot.slane %v1912, 1
        %v2033 = vrot.slane %v1913, 1
        %v2034 = vsel %vm1423, %v2032, %v2033
        %v2035 = vrot.slane %v1914, 1
        %v2036 = vsel %vm1423, %v2033, %v2035
        %v2037 = vrot.slane %v1915, 1
        %v2038 = vrot.slane %v1916, 1
        %v2039 = vsel %vm1423, %v2037, %v2038
        %v2040 = vrot.slane %v1917, 1
        %v2041 = vsel %vm1423, %v2038, %v2040
        %v2042 = vrot.slane %v1918, 1
        %v2043 = vrot.slane %v1919, 1
        %v2044 = vsel %vm1423, %v2042, %v2043
        %v2045 = vrot.slane %v1920, 1
        %v2046 = vsel %vm1423, %v2043, %v2045
        %v2047 = vrot.slane %v1921, 1
        %v2048 = vrot.slane %v1922, 1
        %v2049 = vsel %vm1423, %v2047, %v2048
        %v2050 = vrot.slane %v1923, 1
        %v2051 = vsel %vm1423, %v2048, %v2050
        %v2084 = vadd.f32 %v1843, %v1974
        %v2085 = vadd.f32 %v1844, %v1976
        %v2086 = vadd.f32 %v1845, %v1979
        %v2087 = vadd.f32 %v1846, %v1981
        %v2088 = vadd.f32 %v1847, %v1984
        %v2089 = vadd.f32 %v1848, %v1986
        %v2090 = vadd.f32 %v1849, %v1989
        %v2091 = vadd.f32 %v1850, %v1991
        %v2092 = vadd.f32 %v1851, %v1994
        %v2093 = vadd.f32 %v1852, %v1996
        %v2094 = vadd.f32 %v1853, %v1999
        %v2095 = vadd.f32 %v1854, %v2001
        %v2096 = vadd.f32 %v1855, %v2004
        %v2097 = vadd.f32 %v1856, %v2006
        %v2098 = vadd.f32 %v1857, %v2009
        %v2099 = vadd.f32 %v1858, %v2011
        %v2100 = vadd.f32 %v1859, %v2014
        %v2101 = vadd.f32 %v1860, %v2016
        %v2102 = vadd.f32 %v1861, %v2019
        %v2103 = vadd.f32 %v1862, %v2021
        %v2104 = vadd.f32 %v1863, %v2024
        %v2105 = vadd.f32 %v1864, %v2026
        %v2106 = vadd.f32 %v1865, %v2029
        %v2107 = vadd.f32 %v1866, %v2031
        %v2108 = vadd.f32 %v1867, %v2034
        %v2109 = vadd.f32 %v1868, %v2036
        %v2110 = vadd.f32 %v1869, %v2039
        %v2111 = vadd.f32 %v1870, %v2041
        %v2112 = vadd.f32 %v1871, %v2044
        %v2113 = vadd.f32 %v1872, %v2046
        %v2114 = vadd.f32 %v1873, %v2049
        %v2115 = vadd.f32 %v1874, %v2051
        %v2116 = vperm.slane %v1258, 2
        %v2117 = vmul.f32 %v1206, %v2116
        %v2118 = vmul.f32 %v1207, %v2116
        %v2119 = vmul.f32 %v1208, %v2116
        %v2120 = vmul.f32 %v1209, %v2116
        %v2121 = vmul.f32 %v1210, %v2116
        %v2122 = vmul.f32 %v1211, %v2116
        %v2123 = vmul.f32 %v1212, %v2116
        %v2124 = vmul.f32 %v1213, %v2116
        %v2125 = vmul.f32 %v1214, %v2116
        %v2126 = vmul.f32 %v1215, %v2116
        %v2127 = vmul.f32 %v1216, %v2116
        %v2128 = vmul.f32 %v1217, %v2116
        %v2129 = vmul.f32 %v1218, %v2116
        %v2130 = vmul.f32 %v1219, %v2116
        %v2131 = vmul.f32 %v1220, %v2116
        %v2132 = vmul.f32 %v1221, %v2116
        %v2133 = vmul.f32 %v1222, %v2116
        %v2134 = vmul.f32 %v1223, %v2116
        %v2135 = vmul.f32 %v1224, %v2116
        %v2136 = vmul.f32 %v1225, %v2116
        %v2137 = vmul.f32 %v1226, %v2116
        %v2138 = vmul.f32 %v1227, %v2116
        %v2139 = vmul.f32 %v1228, %v2116
        %v2140 = vmul.f32 %v1229, %v2116
        %v2141 = vmul.f32 %v1230, %v2116
        %v2142 = vmul.f32 %v1231, %v2116
        %v2143 = vmul.f32 %v1232, %v2116
        %v2144 = vmul.f32 %v1233, %v2116
        %v2145 = vmul.f32 %v1234, %v2116
        %v2146 = vmul.f32 %v1235, %v2116
        %v2147 = vmul.f32 %v1236, %v2116
        %v2148 = vmul.f32 %v1237, %v2116
        %v2149 = vmul.f32 %v1238, %v2116
        %v2150 = vmul.f32 %v1239, %v2116
        %v2151 = vmul.f32 %v1240, %v2116
        %v2152 = vmul.f32 %v1241, %v2116
        %v2153 = vmul.f32 %v1242, %v2116
        %v2154 = vmul.f32 %v1243, %v2116
        %v2155 = vmul.f32 %v1244, %v2116
        %v2156 = vmul.f32 %v1245, %v2116
        %v2157 = vmul.f32 %v1246, %v2116
        %v2158 = vmul.f32 %v1247, %v2116
        %v2159 = vmul.f32 %v1248, %v2116
        %v2160 = vmul.f32 %v1249, %v2116
        %v2161 = vmul.f32 %v1250, %v2116
        %v2162 = vmul.f32 %v1251, %v2116
        %v2163 = vmul.f32 %v1252, %v2116
        %v2164 = vmul.f32 %v1253, %v2116
        %v2213 = vrot.slane %v2117, 2
        %v2214 = vrot.slane %v2118, 2
        %v2215 = vsel %vm1665, %v2213, %v2214
        %v2216 = vrot.slane %v2119, 2
        %v2217 = vsel %vm1665, %v2214, %v2216
        %v2218 = vrot.slane %v2120, 2
        %v2219 = vrot.slane %v2121, 2
        %v2220 = vsel %vm1665, %v2218, %v2219
        %v2221 = vrot.slane %v2122, 2
        %v2222 = vsel %vm1665, %v2219, %v2221
        %v2223 = vrot.slane %v2123, 2
        %v2224 = vrot.slane %v2124, 2
        %v2225 = vsel %vm1665, %v2223, %v2224
        %v2226 = vrot.slane %v2125, 2
        %v2227 = vsel %vm1665, %v2224, %v2226
        %v2228 = vrot.slane %v2126, 2
        %v2229 = vrot.slane %v2127, 2
        %v2230 = vsel %vm1665, %v2228, %v2229
        %v2231 = vrot.slane %v2128, 2
        %v2232 = vsel %vm1665, %v2229, %v2231
        %v2233 = vrot.slane %v2129, 2
        %v2234 = vrot.slane %v2130, 2
        %v2235 = vsel %vm1665, %v2233, %v2234
        %v2236 = vrot.slane %v2131, 2
        %v2237 = vsel %vm1665, %v2234, %v2236
        %v2238 = vrot.slane %v2132, 2
        %v2239 = vrot.slane %v2133, 2
        %v2240 = vsel %vm1665, %v2238, %v2239
        %v2241 = vrot.slane %v2134, 2
        %v2242 = vsel %vm1665, %v2239, %v2241
        %v2243 = vrot.slane %v2135, 2
        %v2244 = vrot.slane %v2136, 2
        %v2245 = vsel %vm1665, %v2243, %v2244
        %v2246 = vrot.slane %v2137, 2
        %v2247 = vsel %vm1665, %v2244, %v2246
        %v2248 = vrot.slane %v2138, 2
        %v2249 = vrot.slane %v2139, 2
        %v2250 = vsel %vm1665, %v2248, %v2249
        %v2251 = vrot.slane %v2140, 2
        %v2252 = vsel %vm1665, %v2249, %v2251
        %v2253 = vrot.slane %v2141, 2
        %v2254 = vrot.slane %v2142, 2
        %v2255 = vsel %vm1665, %v2253, %v2254
        %v2256 = vrot.slane %v2143, 2
        %v2257 = vsel %vm1665, %v2254, %v2256
        %v2258 = vrot.slane %v2144, 2
        %v2259 = vrot.slane %v2145, 2
        %v2260 = vsel %vm1665, %v2258, %v2259
        %v2261 = vrot.slane %v2146, 2
        %v2262 = vsel %vm1665, %v2259, %v2261
        %v2263 = vrot.slane %v2147, 2
        %v2264 = vrot.slane %v2148, 2
        %v2265 = vsel %vm1665, %v2263, %v2264
        %v2266 = vrot.slane %v2149, 2
        %v2267 = vsel %vm1665, %v2264, %v2266
        %v2268 = vrot.slane %v2150, 2
        %v2269 = vrot.slane %v2151, 2
        %v2270 = vsel %vm1665, %v2268, %v2269
        %v2271 = vrot.slane %v2152, 2
        %v2272 = vsel %vm1665, %v2269, %v2271
        %v2273 = vrot.slane %v2153, 2
        %v2274 = vrot.slane %v2154, 2
        %v2275 = vsel %vm1665, %v2273, %v2274
        %v2276 = vrot.slane %v2155, 2
        %v2277 = vsel %vm1665, %v2274, %v2276
        %v2278 = vrot.slane %v2156, 2
        %v2279 = vrot.slane %v2157, 2
        %v2280 = vsel %vm1665, %v2278, %v2279
        %v2281 = vrot.slane %v2158, 2
        %v2282 = vsel %vm1665, %v2279, %v2281
        %v2283 = vrot.slane %v2159, 2
        %v2284 = vrot.slane %v2160, 2
        %v2285 = vsel %vm1665, %v2283, %v2284
        %v2286 = vrot.slane %v2161, 2
        %v2287 = vsel %vm1665, %v2284, %v2286
        %v2288 = vrot.slane %v2162, 2
        %v2289 = vrot.slane %v2163, 2
        %v2290 = vsel %vm1665, %v2288, %v2289
        %v2291 = vrot.slane %v2164, 2
        %v2292 = vsel %vm1665, %v2289, %v2291
        %v2325 = vadd.f32 %v2084, %v2215
        %v2326 = vadd.f32 %v2085, %v2217
        %v2327 = vadd.f32 %v2086, %v2220
        %v2328 = vadd.f32 %v2087, %v2222
        %v2329 = vadd.f32 %v2088, %v2225
        %v2330 = vadd.f32 %v2089, %v2227
        %v2331 = vadd.f32 %v2090, %v2230
        %v2332 = vadd.f32 %v2091, %v2232
        %v2333 = vadd.f32 %v2092, %v2235
        %v2334 = vadd.f32 %v2093, %v2237
        %v2335 = vadd.f32 %v2094, %v2240
        %v2336 = vadd.f32 %v2095, %v2242
        %v2337 = vadd.f32 %v2096, %v2245
        %v2338 = vadd.f32 %v2097, %v2247
        %v2339 = vadd.f32 %v2098, %v2250
        %v2340 = vadd.f32 %v2099, %v2252
        %v2341 = vadd.f32 %v2100, %v2255
        %v2342 = vadd.f32 %v2101, %v2257
        %v2343 = vadd.f32 %v2102, %v2260
        %v2344 = vadd.f32 %v2103, %v2262
        %v2345 = vadd.f32 %v2104, %v2265
        %v2346 = vadd.f32 %v2105, %v2267
        %v2347 = vadd.f32 %v2106, %v2270
        %v2348 = vadd.f32 %v2107, %v2272
        %v2349 = vadd.f32 %v2108, %v2275
        %v2350 = vadd.f32 %v2109, %v2277
        %v2351 = vadd.f32 %v2110, %v2280
        %v2352 = vadd.f32 %v2111, %v2282
        %v2353 = vadd.f32 %v2112, %v2285
        %v2354 = vadd.f32 %v2113, %v2287
        %v2355 = vadd.f32 %v2114, %v2290
        %v2356 = vadd.f32 %v2115, %v2292
        %v2357 = vperm.slane %v1259, 0
        %v2358 = vmul.f32 %v1209, %v2357
        %v2359 = vmul.f32 %v1210, %v2357
        %v2360 = vmul.f32 %v1212, %v2357
        %v2361 = vmul.f32 %v1213, %v2357
        %v2362 = vmul.f32 %v1215, %v2357
        %v2363 = vmul.f32 %v1216, %v2357
        %v2364 = vmul.f32 %v1218, %v2357
        %v2365 = vmul.f32 %v1219, %v2357
        %v2366 = vmul.f32 %v1221, %v2357
        %v2367 = vmul.f32 %v1222, %v2357
        %v2368 = vmul.f32 %v1224, %v2357
        %v2369 = vmul.f32 %v1225, %v2357
        %v2370 = vmul.f32 %v1227, %v2357
        %v2371 = vmul.f32 %v1228, %v2357
        %v2372 = vmul.f32 %v1230, %v2357
        %v2373 = vmul.f32 %v1231, %v2357
        %v2374 = vmul.f32 %v1233, %v2357
        %v2375 = vmul.f32 %v1234, %v2357
        %v2376 = vmul.f32 %v1236, %v2357
        %v2377 = vmul.f32 %v1237, %v2357
        %v2378 = vmul.f32 %v1239, %v2357
        %v2379 = vmul.f32 %v1240, %v2357
        %v2380 = vmul.f32 %v1242, %v2357
        %v2381 = vmul.f32 %v1243, %v2357
        %v2382 = vmul.f32 %v1245, %v2357
        %v2383 = vmul.f32 %v1246, %v2357
        %v2384 = vmul.f32 %v1248, %v2357
        %v2385 = vmul.f32 %v1249, %v2357
        %v2386 = vmul.f32 %v1251, %v2357
        %v2387 = vmul.f32 %v1252, %v2357
        %v2388 = vmul.f32 %v1254, %v2357
        %v2389 = vmul.f32 %v1255, %v2357
        %v2390 = vadd.f32 %v2325, %v2358
        %v2391 = vadd.f32 %v2326, %v2359
        %v2392 = vadd.f32 %v2327, %v2360
        %v2393 = vadd.f32 %v2328, %v2361
        %v2394 = vadd.f32 %v2329, %v2362
        %v2395 = vadd.f32 %v2330, %v2363
        %v2396 = vadd.f32 %v2331, %v2364
        %v2397 = vadd.f32 %v2332, %v2365
        %v2398 = vadd.f32 %v2333, %v2366
        %v2399 = vadd.f32 %v2334, %v2367
        %v2400 = vadd.f32 %v2335, %v2368
        %v2401 = vadd.f32 %v2336, %v2369
        %v2402 = vadd.f32 %v2337, %v2370
        %v2403 = vadd.f32 %v2338, %v2371
        %v2404 = vadd.f32 %v2339, %v2372
        %v2405 = vadd.f32 %v2340, %v2373
        %v2406 = vadd.f32 %v2341, %v2374
        %v2407 = vadd.f32 %v2342, %v2375
        %v2408 = vadd.f32 %v2343, %v2376
        %v2409 = vadd.f32 %v2344, %v2377
        %v2410 = vadd.f32 %v2345, %v2378
        %v2411 = vadd.f32 %v2346, %v2379
        %v2412 = vadd.f32 %v2347, %v2380
        %v2413 = vadd.f32 %v2348, %v2381
        %v2414 = vadd.f32 %v2349, %v2382
        %v2415 = vadd.f32 %v2350, %v2383
        %v2416 = vadd.f32 %v2351, %v2384
        %v2417 = vadd.f32 %v2352, %v2385
        %v2418 = vadd.f32 %v2353, %v2386
        %v2419 = vadd.f32 %v2354, %v2387
        %v2420 = vadd.f32 %v2355, %v2388
        %v2421 = vadd.f32 %v2356, %v2389
        %v2422 = vperm.slane %v1259, 1
        %v2423 = vmul.f32 %v1209, %v2422
        %v2424 = vmul.f32 %v1210, %v2422
        %v2425 = vmul.f32 %v1211, %v2422
        %v2426 = vmul.f32 %v1212, %v2422
        %v2427 = vmul.f32 %v1213, %v2422
        %v2428 = vmul.f32 %v1214, %v2422
        %v2429 = vmul.f32 %v1215, %v2422
        %v2430 = vmul.f32 %v1216, %v2422
        %v2431 = vmul.f32 %v1217, %v2422
        %v2432 = vmul.f32 %v1218, %v2422
        %v2433 = vmul.f32 %v1219, %v2422
        %v2434 = vmul.f32 %v1220, %v2422
        %v2435 = vmul.f32 %v1221, %v2422
        %v2436 = vmul.f32 %v1222, %v2422
        %v2437 = vmul.f32 %v1223, %v2422
        %v2438 = vmul.f32 %v1224, %v2422
        %v2439 = vmul.f32 %v1225, %v2422
        %v2440 = vmul.f32 %v1226, %v2422
        %v2441 = vmul.f32 %v1227, %v2422
        %v2442 = vmul.f32 %v1228, %v2422
        %v2443 = vmul.f32 %v1229, %v2422
        %v2444 = vmul.f32 %v1230, %v2422
        %v2445 = vmul.f32 %v1231, %v2422
        %v2446 = vmul.f32 %v1232, %v2422
        %v2447 = vmul.f32 %v1233, %v2422
        %v2448 = vmul.f32 %v1234, %v2422
        %v2449 = vmul.f32 %v1235, %v2422
        %v2450 = vmul.f32 %v1236, %v2422
        %v2451 = vmul.f32 %v1237, %v2422
        %v2452 = vmul.f32 %v1238, %v2422
        %v2453 = vmul.f32 %v1239, %v2422
        %v2454 = vmul.f32 %v1240, %v2422
        %v2455 = vmul.f32 %v1241, %v2422
        %v2456 = vmul.f32 %v1242, %v2422
        %v2457 = vmul.f32 %v1243, %v2422
        %v2458 = vmul.f32 %v1244, %v2422
        %v2459 = vmul.f32 %v1245, %v2422
        %v2460 = vmul.f32 %v1246, %v2422
        %v2461 = vmul.f32 %v1247, %v2422
        %v2462 = vmul.f32 %v1248, %v2422
        %v2463 = vmul.f32 %v1249, %v2422
        %v2464 = vmul.f32 %v1250, %v2422
        %v2465 = vmul.f32 %v1251, %v2422
        %v2466 = vmul.f32 %v1252, %v2422
        %v2467 = vmul.f32 %v1253, %v2422
        %v2468 = vmul.f32 %v1254, %v2422
        %v2469 = vmul.f32 %v1255, %v2422
        %v2470 = vmul.f32 %v1256, %v2422
        %v2519 = vrot.slane %v2423, 1
        %v2520 = vrot.slane %v2424, 1
        %v2521 = vsel %vm1423, %v2519, %v2520
        %v2522 = vrot.slane %v2425, 1
        %v2523 = vsel %vm1423, %v2520, %v2522
        %v2524 = vrot.slane %v2426, 1
        %v2525 = vrot.slane %v2427, 1
        %v2526 = vsel %vm1423, %v2524, %v2525
        %v2527 = vrot.slane %v2428, 1
        %v2528 = vsel %vm1423, %v2525, %v2527
        %v2529 = vrot.slane %v2429, 1
        %v2530 = vrot.slane %v2430, 1
        %v2531 = vsel %vm1423, %v2529, %v2530
        %v2532 = vrot.slane %v2431, 1
        %v2533 = vsel %vm1423, %v2530, %v2532
        %v2534 = vrot.slane %v2432, 1
        %v2535 = vrot.slane %v2433, 1
        %v2536 = vsel %vm1423, %v2534, %v2535
        %v2537 = vrot.slane %v2434, 1
        %v2538 = vsel %vm1423, %v2535, %v2537
        %v2539 = vrot.slane %v2435, 1
        %v2540 = vrot.slane %v2436, 1
        %v2541 = vsel %vm1423, %v2539, %v2540
        %v2542 = vrot.slane %v2437, 1
        %v2543 = vsel %vm1423, %v2540, %v2542
        %v2544 = vrot.slane %v2438, 1
        %v2545 = vrot.slane %v2439, 1
        %v2546 = vsel %vm1423, %v2544, %v2545
        %v2547 = vrot.slane %v2440, 1
        %v2548 = vsel %vm1423, %v2545, %v2547
        %v2549 = vrot.slane %v2441, 1
        %v2550 = vrot.slane %v2442, 1
        %v2551 = vsel %vm1423, %v2549, %v2550
        %v2552 = vrot.slane %v2443, 1
        %v2553 = vsel %vm1423, %v2550, %v2552
        %v2554 = vrot.slane %v2444, 1
        %v2555 = vrot.slane %v2445, 1
        %v2556 = vsel %vm1423, %v2554, %v2555
        %v2557 = vrot.slane %v2446, 1
        %v2558 = vsel %vm1423, %v2555, %v2557
        %v2559 = vrot.slane %v2447, 1
        %v2560 = vrot.slane %v2448, 1
        %v2561 = vsel %vm1423, %v2559, %v2560
        %v2562 = vrot.slane %v2449, 1
        %v2563 = vsel %vm1423, %v2560, %v2562
        %v2564 = vrot.slane %v2450, 1
        %v2565 = vrot.slane %v2451, 1
        %v2566 = vsel %vm1423, %v2564, %v2565
        %v2567 = vrot.slane %v2452, 1
        %v2568 = vsel %vm1423, %v2565, %v2567
        %v2569 = vrot.slane %v2453, 1
        %v2570 = vrot.slane %v2454, 1
        %v2571 = vsel %vm1423, %v2569, %v2570
        %v2572 = vrot.slane %v2455, 1
        %v2573 = vsel %vm1423, %v2570, %v2572
        %v2574 = vrot.slane %v2456, 1
        %v2575 = vrot.slane %v2457, 1
        %v2576 = vsel %vm1423, %v2574, %v2575
        %v2577 = vrot.slane %v2458, 1
        %v2578 = vsel %vm1423, %v2575, %v2577
        %v2579 = vrot.slane %v2459, 1
        %v2580 = vrot.slane %v2460, 1
        %v2581 = vsel %vm1423, %v2579, %v2580
        %v2582 = vrot.slane %v2461, 1
        %v2583 = vsel %vm1423, %v2580, %v2582
        %v2584 = vrot.slane %v2462, 1
        %v2585 = vrot.slane %v2463, 1
        %v2586 = vsel %vm1423, %v2584, %v2585
        %v2587 = vrot.slane %v2464, 1
        %v2588 = vsel %vm1423, %v2585, %v2587
        %v2589 = vrot.slane %v2465, 1
        %v2590 = vrot.slane %v2466, 1
        %v2591 = vsel %vm1423, %v2589, %v2590
        %v2592 = vrot.slane %v2467, 1
        %v2593 = vsel %vm1423, %v2590, %v2592
        %v2594 = vrot.slane %v2468, 1
        %v2595 = vrot.slane %v2469, 1
        %v2596 = vsel %vm1423, %v2594, %v2595
        %v2597 = vrot.slane %v2470, 1
        %v2598 = vsel %vm1423, %v2595, %v2597
        %v2631 = vadd.f32 %v2390, %v2521
        %v2632 = vadd.f32 %v2391, %v2523
        %v2633 = vadd.f32 %v2392, %v2526
        %v2634 = vadd.f32 %v2393, %v2528
        %v2635 = vadd.f32 %v2394, %v2531
        %v2636 = vadd.f32 %v2395, %v2533
        %v2637 = vadd.f32 %v2396, %v2536
        %v2638 = vadd.f32 %v2397, %v2538
        %v2639 = vadd.f32 %v2398, %v2541
        %v2640 = vadd.f32 %v2399, %v2543
        %v2641 = vadd.f32 %v2400, %v2546
        %v2642 = vadd.f32 %v2401, %v2548
        %v2643 = vadd.f32 %v2402, %v2551
        %v2644 = vadd.f32 %v2403, %v2553
        %v2645 = vadd.f32 %v2404, %v2556
        %v2646 = vadd.f32 %v2405, %v2558
        %v2647 = vadd.f32 %v2406, %v2561
        %v2648 = vadd.f32 %v2407, %v2563
        %v2649 = vadd.f32 %v2408, %v2566
        %v2650 = vadd.f32 %v2409, %v2568
        %v2651 = vadd.f32 %v2410, %v2571
        %v2652 = vadd.f32 %v2411, %v2573
        %v2653 = vadd.f32 %v2412, %v2576
        %v2654 = vadd.f32 %v2413, %v2578
        %v2655 = vadd.f32 %v2414, %v2581
        %v2656 = vadd.f32 %v2415, %v2583
        %v2657 = vadd.f32 %v2416, %v2586
        %v2658 = vadd.f32 %v2417, %v2588
        %v2659 = vadd.f32 %v2418, %v2591
        %v2660 = vadd.f32 %v2419, %v2593
        %v2661 = vadd.f32 %v2420, %v2596
        %v2662 = vadd.f32 %v2421, %v2598
        %v2663 = vperm.slane %v1259, 2
        %v2664 = vmul.f32 %v1209, %v2663
        %v2665 = vmul.f32 %v1210, %v2663
        %v2666 = vmul.f32 %v1211, %v2663
        %v2667 = vmul.f32 %v1212, %v2663
        %v2668 = vmul.f32 %v1213, %v2663
        %v2669 = vmul.f32 %v1214, %v2663
        %v2670 = vmul.f32 %v1215, %v2663
        %v2671 = vmul.f32 %v1216, %v2663
        %v2672 = vmul.f32 %v1217, %v2663
        %v2673 = vmul.f32 %v1218, %v2663
        %v2674 = vmul.f32 %v1219, %v2663
        %v2675 = vmul.f32 %v1220, %v2663
        %v2676 = vmul.f32 %v1221, %v2663
        %v2677 = vmul.f32 %v1222, %v2663
        %v2678 = vmul.f32 %v1223, %v2663
        %v2679 = vmul.f32 %v1224, %v2663
        %v2680 = vmul.f32 %v1225, %v2663
        %v2681 = vmul.f32 %v1226, %v2663
        %v2682 = vmul.f32 %v1227, %v2663
        %v2683 = vmul.f32 %v1228, %v2663
        %v2684 = vmul.f32 %v1229, %v2663
        %v2685 = vmul.f32 %v1230, %v2663
        %v2686 = vmul.f32 %v1231, %v2663
        %v2687 = vmul.f32 %v1232, %v2663
        %v2688 = vmul.f32 %v1233, %v2663
        %v2689 = vmul.f32 %v1234, %v2663
        %v2690 = vmul.f32 %v1235, %v2663
        %v2691 = vmul.f32 %v1236, %v2663
        %v2692 = vmul.f32 %v1237, %v2663
        %v2693 = vmul.f32 %v1238, %v2663
        %v2694 = vmul.f32 %v1239, %v2663
        %v2695 = vmul.f32 %v1240, %v2663
        %v2696 = vmul.f32 %v1241, %v2663
        %v2697 = vmul.f32 %v1242, %v2663
        %v2698 = vmul.f32 %v1243, %v2663
        %v2699 = vmul.f32 %v1244, %v2663
        %v2700 = vmul.f32 %v1245, %v2663
        %v2701 = vmul.f32 %v1246, %v2663
        %v2702 = vmul.f32 %v1247, %v2663
        %v2703 = vmul.f32 %v1248, %v2663
        %v2704 = vmul.f32 %v1249, %v2663
        %v2705 = vmul.f32 %v1250, %v2663
        %v2706 = vmul.f32 %v1251, %v2663
        %v2707 = vmul.f32 %v1252, %v2663
        %v2708 = vmul.f32 %v1253, %v2663
        %v2709 = vmul.f32 %v1254, %v2663
        %v2710 = vmul.f32 %v1255, %v2663
        %v2711 = vmul.f32 %v1256, %v2663
        %v2760 = vrot.slane %v2664, 2
        %v2761 = vrot.slane %v2665, 2
        %v2762 = vsel %vm1665, %v2760, %v2761
        %v2763 = vrot.slane %v2666, 2
        %v2764 = vsel %vm1665, %v2761, %v2763
        %v2765 = vrot.slane %v2667, 2
        %v2766 = vrot.slane %v2668, 2
        %v2767 = vsel %vm1665, %v2765, %v2766
        %v2768 = vrot.slane %v2669, 2
        %v2769 = vsel %vm1665, %v2766, %v2768
        %v2770 = vrot.slane %v2670, 2
        %v2771 = vrot.slane %v2671, 2
        %v2772 = vsel %vm1665, %v2770, %v2771
        %v2773 = vrot.slane %v2672, 2
        %v2774 = vsel %vm1665, %v2771, %v2773
        %v2775 = vrot.slane %v2673, 2
        %v2776 = vrot.slane %v2674, 2
        %v2777 = vsel %vm1665, %v2775, %v2776
        %v2778 = vrot.slane %v2675, 2
        %v2779 = vsel %vm1665, %v2776, %v2778
        %v2780 = vrot.slane %v2676, 2
        %v2781 = vrot.slane %v2677, 2
        %v2782 = vsel %vm1665, %v2780, %v2781
        %v2783 = vrot.slane %v2678, 2
        %v2784 = vsel %vm1665, %v2781, %v2783
        %v2785 = vrot.slane %v2679, 2
        %v2786 = vrot.slane %v2680, 2
        %v2787 = vsel %vm1665, %v2785, %v2786
        %v2788 = vrot.slane %v2681, 2
        %v2789 = vsel %vm1665, %v2786, %v2788
        %v2790 = vrot.slane %v2682, 2
        %v2791 = vrot.slane %v2683, 2
        %v2792 = vsel %vm1665, %v2790, %v2791
        %v2793 = vrot.slane %v2684, 2
        %v2794 = vsel %vm1665, %v2791, %v2793
        %v2795 = vrot.slane %v2685, 2
        %v2796 = vrot.slane %v2686, 2
        %v2797 = vsel %vm1665, %v2795, %v2796
        %v2798 = vrot.slane %v2687, 2
        %v2799 = vsel %vm1665, %v2796, %v2798
        %v2800 = vrot.slane %v2688, 2
        %v2801 = vrot.slane %v2689, 2
        %v2802 = vsel %vm1665, %v2800, %v2801
        %v2803 = vrot.slane %v2690, 2
        %v2804 = vsel %vm1665, %v2801, %v2803
        %v2805 = vrot.slane %v2691, 2
        %v2806 = vrot.slane %v2692, 2
        %v2807 = vsel %vm1665, %v2805, %v2806
        %v2808 = vrot.slane %v2693, 2
        %v2809 = vsel %vm1665, %v2806, %v2808
        %v2810 = vrot.slane %v2694, 2
        %v2811 = vrot.slane %v2695, 2
        %v2812 = vsel %vm1665, %v2810, %v2811
        %v2813 = vrot.slane %v2696, 2
        %v2814 = vsel %vm1665, %v2811, %v2813
        %v2815 = vrot.slane %v2697, 2
        %v2816 = vrot.slane %v2698, 2
        %v2817 = vsel %vm1665, %v2815, %v2816
        %v2818 = vrot.slane %v2699, 2
        %v2819 = vsel %vm1665, %v2816, %v2818
        %v2820 = vrot.slane %v2700, 2
        %v2821 = vrot.slane %v2701, 2
        %v2822 = vsel %vm1665, %v2820, %v2821
        %v2823 = vrot.slane %v2702, 2
        %v2824 = vsel %vm1665, %v2821, %v2823
        %v2825 = vrot.slane %v2703, 2
        %v2826 = vrot.slane %v2704, 2
        %v2827 = vsel %vm1665, %v2825, %v2826
        %v2828 = vrot.slane %v2705, 2
        %v2829 = vsel %vm1665, %v2826, %v2828
        %v2830 = vrot.slane %v2706, 2
        %v2831 = vrot.slane %v2707, 2
        %v2832 = vsel %vm1665, %v2830, %v2831
        %v2833 = vrot.slane %v2708, 2
        %v2834 = vsel %vm1665, %v2831, %v2833
        %v2835 = vrot.slane %v2709, 2
        %v2836 = vrot.slane %v2710, 2
        %v2837 = vsel %vm1665, %v2835, %v2836
        %v2838 = vrot.slane %v2711, 2
        %v2839 = vsel %vm1665, %v2836, %v2838
        %v2872 = vadd.f32 %v2631, %v2762
        %v2873 = vadd.f32 %v2632, %v2764
        %v2874 = vadd.f32 %v2633, %v2767
        %v2875 = vadd.f32 %v2634, %v2769
        %v2876 = vadd.f32 %v2635, %v2772
        %v2877 = vadd.f32 %v2636, %v2774
        %v2878 = vadd.f32 %v2637, %v2777
        %v2879 = vadd.f32 %v2638, %v2779
        %v2880 = vadd.f32 %v2639, %v2782
        %v2881 = vadd.f32 %v2640, %v2784
        %v2882 = vadd.f32 %v2641, %v2787
        %v2883 = vadd.f32 %v2642, %v2789
        %v2884 = vadd.f32 %v2643, %v2792
        %v2885 = vadd.f32 %v2644, %v2794
        %v2886 = vadd.f32 %v2645, %v2797
        %v2887 = vadd.f32 %v2646, %v2799
        %v2888 = vadd.f32 %v2647, %v2802
        %v2889 = vadd.f32 %v2648, %v2804
        %v2890 = vadd.f32 %v2649, %v2807
        %v2891 = vadd.f32 %v2650, %v2809
        %v2892 = vadd.f32 %v2651, %v2812
        %v2893 = vadd.f32 %v2652, %v2814
        %v2894 = vadd.f32 %v2653, %v2817
        %v2895 = vadd.f32 %v2654, %v2819
        %v2896 = vadd.f32 %v2655, %v2822
        %v2897 = vadd.f32 %v2656, %v2824
        %v2898 = vadd.f32 %v2657, %v2827
        %v2899 = vadd.f32 %v2658, %v2829
        %v2900 = vadd.f32 %v2659, %v2832
        %v2901 = vadd.f32 %v2660, %v2834
        %v2902 = vadd.f32 %v2661, %v2837
        %v2903 = vadd.f32 %v2662, %v2839
        %v2905 = vperm.slane %v1260, 0
        %v2907 = vadd.f32 %v2872, %v2905
        %v2908 = vadd.f32 %v2873, %v2905
        %v2909 = vadd.f32 %v2874, %v2905
        %v2910 = vadd.f32 %v2875, %v2905
        %v2911 = vadd.f32 %v2876, %v2905
        %v2912 = vadd.f32 %v2877, %v2905
        %v2913 = vadd.f32 %v2878, %v2905
        %v2914 = vadd.f32 %v2879, %v2905
        %v2915 = vadd.f32 %v2880, %v2905
        %v2916 = vadd.f32 %v2881, %v2905
        %v2917 = vadd.f32 %v2882, %v2905
        %v2918 = vadd.f32 %v2883, %v2905
        %v2919 = vadd.f32 %v2884, %v2905
        %v2920 = vadd.f32 %v2885, %v2905
        %v2921 = vadd.f32 %v2886, %v2905
        %v2922 = vadd.f32 %v2887, %v2905
        %v2923 = vadd.f32 %v2888, %v2905
        %v2924 = vadd.f32 %v2889, %v2905
        %v2925 = vadd.f32 %v2890, %v2905
        %v2926 = vadd.f32 %v2891, %v2905
        %v2927 = vadd.f32 %v2892, %v2905
        %v2928 = vadd.f32 %v2893, %v2905
        %v2929 = vadd.f32 %v2894, %v2905
        %v2930 = vadd.f32 %v2895, %v2905
        %v2931 = vadd.f32 %v2896, %v2905
        %v2932 = vadd.f32 %v2897, %v2905
        %v2933 = vadd.f32 %v2898, %v2905
        %v2934 = vadd.f32 %v2899, %v2905
        %v2935 = vadd.f32 %v2900, %v2905
        %v2936 = vadd.f32 %v2901, %v2905
        %v2937 = vadd.f32 %v2902, %v2905
        %v2938 = vadd.f32 %v2903, %v2905
        %v2939 = vmax.f32 %v2907, 0.0
        %v2940 = vmax.f32 %v2908, 0.0
        %v2941 = vmax.f32 %v2909, 0.0
        %v2942 = vmax.f32 %v2910, 0.0
        %v2943 = vmax.f32 %v2911, 0.0
        %v2944 = vmax.f32 %v2912, 0.0
        %v2945 = vmax.f32 %v2913, 0.0
        %v2946 = vmax.f32 %v2914, 0.0
        %v2947 = vmax.f32 %v2915, 0.0
        %v2948 = vmax.f32 %v2916, 0.0
        %v2949 = vmax.f32 %v2917, 0.0
        %v2950 = vmax.f32 %v2918, 0.0
        %v2951 = vmax.f32 %v2919, 0.0
        %v2952 = vmax.f32 %v2920, 0.0
        %v2953 = vmax.f32 %v2921, 0.0
        %v2954 = vmax.f32 %v2922, 0.0
        %v2955 = vmax.f32 %v2923, 0.0
        %v2956 = vmax.f32 %v2924, 0.0
        %v2957 = vmax.f32 %v2925, 0.0
        %v2958 = vmax.f32 %v2926, 0.0
        %v2959 = vmax.f32 %v2927, 0.0
        %v2960 = vmax.f32 %v2928, 0.0
        %v2961 = vmax.f32 %v2929, 0.0
        %v2962 = vmax.f32 %v2930, 0.0
        %v2963 = vmax.f32 %v2931, 0.0
        %v2964 = vmax.f32 %v2932, 0.0
        %v2965 = vmax.f32 %v2933, 0.0
        %v2966 = vmax.f32 %v2934, 0.0
        %v2967 = vmax.f32 %v2935, 0.0
        %v2968 = vmax.f32 %v2936, 0.0
        %v2969 = vmax.f32 %v2937, 0.0
        %v2970 = vmax.f32 %v2938, 0.0
        %v2971 = vsel %vm406, %v2939, 0.0
        %v2972 = vsel %vm406, %v2941, 0.0
        %v2973 = vadd.f32 %v2971, %v2972
        %v2974 = vsel %vm406, %v2943, 0.0
        %v2975 = vadd.f32 %v2973, %v2974
        %v2976 = vsel %vm406, %v2945, 0.0
        %v2977 = vadd.f32 %v2975, %v2976
        %v2978 = vsel %vm406, %v2947, 0.0
        %v2979 = vadd.f32 %v2977, %v2978
        %v2980 = vsel %vm406, %v2949, 0.0
        %v2981 = vadd.f32 %v2979, %v2980
        %v2982 = vsel %vm406, %v2951, 0.0
        %v2983 = vadd.f32 %v2981, %v2982
        %v2984 = vsel %vm406, %v2953, 0.0
        %v2985 = vadd.f32 %v2983, %v2984
        %v2986 = vsel %vm406, %v2955, 0.0
        %v2987 = vadd.f32 %v2985, %v2986
        %v2988 = vsel %vm406, %v2957, 0.0
        %v2989 = vadd.f32 %v2987, %v2988
        %v2990 = vsel %vm406, %v2959, 0.0
        %v2991 = vadd.f32 %v2989, %v2990
        %v2992 = vsel %vm406, %v2961, 0.0
        %v2993 = vadd.f32 %v2991, %v2992
        %v2994 = vsel %vm406, %v2963, 0.0
        %v2995 = vadd.f32 %v2993, %v2994
        %v2996 = vsel %vm406, %v2965, 0.0
        %v2997 = vadd.f32 %v2995, %v2996
        %v2998 = vsel %vm406, %v2967, 0.0
        %v2999 = vadd.f32 %v2997, %v2998
        %v3000 = vsel %vm406, %v2969, 0.0
        %v3001 = vadd.f32 %v2999, %v3000
        %v3002 = vsel %vm406, %v2940, 0.0
        %v3003 = vsel %vm406, %v2942, 0.0
        %v3004 = vadd.f32 %v3002, %v3003
        %v3005 = vsel %vm406, %v2944, 0.0
        %v3006 = vadd.f32 %v3004, %v3005
        %v3007 = vsel %vm406, %v2946, 0.0
        %v3008 = vadd.f32 %v3006, %v3007
        %v3009 = vsel %vm406, %v2948, 0.0
        %v3010 = vadd.f32 %v3008, %v3009
        %v3011 = vsel %vm406, %v2950, 0.0
        %v3012 = vadd.f32 %v3010, %v3011
        %v3013 = vsel %vm406, %v2952, 0.0
        %v3014 = vadd.f32 %v3012, %v3013
        %v3015 = vsel %vm406, %v2954, 0.0
        %v3016 = vadd.f32 %v3014, %v3015
        %v3017 = vsel %vm406, %v2956, 0.0
        %v3018 = vadd.f32 %v3016, %v3017
        %v3019 = vsel %vm406, %v2958, 0.0
        %v3020 = vadd.f32 %v3018, %v3019
        %v3021 = vsel %vm406, %v2960, 0.0
        %v3022 = vadd.f32 %v3020, %v3021
        %v3023 = vsel %vm406, %v2962, 0.0
        %v3024 = vadd.f32 %v3022, %v3023
        %v3025 = vsel %vm406, %v2964, 0.0
        %v3026 = vadd.f32 %v3024, %v3025
        %v3027 = vsel %vm406, %v2966, 0.0
        %v3028 = vadd.f32 %v3026, %v3027
        %v3029 = vsel %vm406, %v2968, 0.0
        %v3030 = vadd.f32 %v3028, %v3029
        %v3031 = vsel %vm406, %v2970, 0.0
        %v3032 = vadd.f32 %v3030, %v3031
        %v3033 = vrcp.pop 16.0
        %v3034 = vmul.f32 16.0, %v3033
        %v3035 = vsub.f32 1.0, %v3034
        %v3036 = vmul.f32 %v3033, %v3035
        %v3037 = vadd.f32 %v3033, %v3036
        %vm3038 = vweird.f32 %v3033
        %v3039 = vsel %vm3038, %v3033, %v3037
        %v3040 = vmul.f32 %v3001, %v3039
        %v3041 = vmul.f32 %v3032, %v3039
        %v3042 = vsel %vm406, %v3040, 0.0
        %v3043 = vsel %vm406, %v3041, 0.0
        %v3044 = vadd.f32 %v3042, %v3043
        %v3045 = vrot.slane %v3044, 4
        %v3046 = vadd.f32 %v3044, %v3045
        %v3047 = vrot.slane %v3046, 2
        %v3048 = vadd.f32 %v3046, %v3047
        %v3049 = vrot.slane %v3048, 1
        %v3050 = vadd.f32 %v3048, %v3049
        %v3051 = vmul.f32 %v3050, %v3039
        %v3052 = vld [vmem:[%s5] sm:$0xff]
        %v3053 = vld [vmem:[%s5 + $0x8] sm:$0xff]
        %v3054 = vld [vmem:[%s5 + $0x10] sm:$0xff]
        %v3055 = vld [vmem:[%s5 + $0x18] sm:$0xff]
        %v3056 = vld [vmem:[%s5 + $0x20] sm:$0xff]
        %v3057 = vld [vmem:[%s5 + $0x28] sm:$0xff]
        %v3058 = vld [vmem:[%s6] sm:$0x1]
        %v3060 = vsel %vm406, %v3051, 0
        %3062 = vmatpush.msra.mxu0 0.0
        %3063 = vmatpush.msra.mxu0 0.0
        %3064 = vmatpush.msra.mxu0 0.0
        %3065 = vmatpush.msra.mxu0 0.0
        %3066 = vmatpush.msra.mxu0 0.0
        %3067 = vmatpush.msra.mxu0 0.0
        %3068 = vmatpush.msra.mxu0 0.0
        %3069 = vmatpush.msra.mxu0 0.0
        %3070 = vmatpush.msra.mxu0 0.0
        %3071 = vmatpush.msra.mxu0 0.0
        %3072 = vmatpush.msra.mxu0 %v3057
        %3073 = vmatpush.msra.mxu0 %v3056
        %3074 = vmatpush.msra.mxu0 %v3055
        %3075 = vmatpush.msra.mxu0 %v3054
        %3076 = vmatpush.msra.mxu0 %v3053
        %3077 = vmatpush.msra.mxu0 %v3052
        %3078 = vmatmul.f32.gmra.mxu0 %v3060
        %v3079 = vpop.f32.mrf.mxu0
        %v3080 = vadd.f32 %v3058, %v3079
        %3081 = vdwg.mxu0
        %v3082 = vmax.f32 %v3080, 0.0
        %v3083 = vld [vmem:[%s7] sm:$0xff]
        %v3084 = vld [vmem:[%s7 + $0x8] sm:$0xff]
        %v3085 = vld [vmem:[%s8] sm:$0x1]
        %vm3086 = vcmask 130048
        %v3088 = vsel %vm3086, %v3082, 0
        %3090 = vmatpush.msra.mxu0 0.0
        %3091 = vmatpush.msra.mxu0 0.0
        %3092 = vmatpush.msra.mxu0 0.0
        %3093 = vmatpush.msra.mxu0 0.0
        %3094 = vmatpush.msra.mxu0 0.0
        %3095 = vmatpush.msra.mxu0 0.0
        %3096 = vmatpush.msra.mxu0 0.0
        %3097 = vmatpush.msra.mxu0 0.0
        %3098 = vmatpush.msra.mxu0 0.0
        %3099 = vmatpush.msra.mxu0 0.0
        %3100 = vmatpush.msra.mxu0 0.0
        %3101 = vmatpush.msra.mxu0 0.0
        %3102 = vmatpush.msra.mxu0 0.0
        %3103 = vmatpush.msra.mxu0 0.0
        %3104 = vmatpush.msra.mxu0 %v3084
        %3105 = vmatpush.msra.mxu0 %v3083
        %3106 = vmatmul.f32.gmra.mxu0 %v3088
        %v3107 = vpop.f32.mrf.mxu0
        %v3108 = vadd.f32 %v3085, %v3107
        %3109 = vdwg.mxu0
        %v3110 = vadd.f32 %v3108, 3.0
        %v3111 = vmax.f32 %v3110, 0.0
        %v3112 = vmin.f32 %v3111, 6.0
        %v3113 = vrcp.pop 6.0
        %v3114 = vmul.f32 6.0, %v3113
        %v3115 = vsub.f32 1.0, %v3114
        %v3116 = vmul.f32 %v3113, %v3115
        %v3117 = vadd.f32 %v3113, %v3116
        %vm3118 = vweird.f32 %v3113
        %v3119 = vsel %vm3118, %v3113, %v3117
        %v3120 = vmul.f32 %v3112, %v3119
        %v3121 = vperm.slane %v3120, 0
        %v3122 = vmul.f32 %v2939, %v3121
        %v3123 = vmul.f32 %v2940, %v3121
        %v3124 = vmul.f32 %v2941, %v3121
        %v3125 = vmul.f32 %v2942, %v3121
        %v3126 = vmul.f32 %v2943, %v3121
        %v3127 = vmul.f32 %v2944, %v3121
        %v3128 = vmul.f32 %v2945, %v3121
        %v3129 = vmul.f32 %v2946, %v3121
        %v3130 = vmul.f32 %v2947, %v3121
        %v3131 = vmul.f32 %v2948, %v3121
        %v3132 = vmul.f32 %v2949, %v3121
        %v3133 = vmul.f32 %v2950, %v3121
        %v3134 = vmul.f32 %v2951, %v3121
        %v3135 = vmul.f32 %v2952, %v3121
        %v3136 = vmul.f32 %v2953, %v3121
        %v3137 = vmul.f32 %v2954, %v3121
        %v3138 = vmul.f32 %v2955, %v3121
        %v3139 = vmul.f32 %v2956, %v3121
        %v3140 = vmul.f32 %v2957, %v3121
        %v3141 = vmul.f32 %v2958, %v3121
        %v3142 = vmul.f32 %v2959, %v3121
        %v3143 = vmul.f32 %v2960, %v3121
        %v3144 = vmul.f32 %v2961, %v3121
        %v3145 = vmul.f32 %v2962, %v3121
        %v3146 = vmul.f32 %v2963, %v3121
        %v3147 = vmul.f32 %v2964, %v3121
        %v3148 = vmul.f32 %v2965, %v3121
        %v3149 = vmul.f32 %v2966, %v3121
        %v3150 = vmul.f32 %v2967, %v3121
        %v3151 = vmul.f32 %v2968, %v3121
        %v3152 = vmul.f32 %v2969, %v3121
        %v3153 = vmul.f32 %v2970, %v3121
        %v3154 = vld [vmem:[%s9] sm:$0xff]
        %v3155 = vld [vmem:[%s9 + $0x8] sm:$0xff]
        %v3156 = vld [vmem:[%s9 + $0x10] sm:$0xff]
        %v3157 = vld [vmem:[%s9 + $0x18] sm:$0xff]
        %v3158 = vld [vmem:[%s9 + $0x20] sm:$0xff]
        %v3159 = vld [vmem:[%s9 + $0x28] sm:$0xff]
        %v3160 = vld [vmem:[%s10] sm:$0x1]
        %v3162 = vperm.slane %v3160, 0
        %v3165 = vsel %vm406, %v3122, 0
        %v3168 = vsel %vm406, %v3123, 0
        %3170 = vmatpush.msra.mxu0 0.0
        %3171 = vmatpush.msra.mxu0 0.0
        %3172 = vmatpush.msra.mxu0 0.0
        %3173 = vmatpush.msra.mxu0 0.0
        %3174 = vmatpush.msra.mxu0 0.0
        %3175 = vmatpush.msra.mxu0 0.0
        %3176 = vmatpush.msra.mxu0 0.0
        %3177 = vmatpush.msra.mxu0 0.0
        %3178 = vmatpush.msra.mxu0 0.0
        %3179 = vmatpush.msra.mxu0 0.0
        %3180 = vmatpush.msra.mxu0 %v3159
        %3181 = vmatpush.msra.mxu0 %v3158
        %3182 = vmatpush.msra.mxu0 %v3157
        %3183 = vmatpush.msra.mxu0 %v3156
        %3184 = vmatpush.msra.mxu0 %v3155
        %3185 = vmatpush.msra.mxu0 %v3154
        %3186 = vmatmul.f32.gmra.mxu0 %v3165
        %v3187 = vpop.f32.mrf.mxu0
        %v3188 = vadd.f32 %v3162, %v3187
        %3189 = vmatmul.f32.gmra.mxu0 %v3168
        %v3190 = vpop.f32.mrf.mxu0
        %v3191 = vadd.f32 %v3162, %v3190
        %3192 = vdwg.mxu0
        %3193 = vst.msk [vmem:[%s379] sm:$0xff] %vm3086, %v3188
        %3194 = vst.msk [vmem:[%s379 + $0x8] sm:$0xff] %vm3086, %v3191
        %v3196 = vsel %vm406, %v3124, 0
        %v3199 = vsel %vm406, %v3125, 0
        %3201 = vmatpush.msra.mxu0 0.0
        %3202 = vmatpush.msra.mxu0 0.0
        %3203 = vmatpush.msra.mxu0 0.0
        %3204 = vmatpush.msra.mxu0 0.0
        %3205 = vmatpush.msra.mxu0 0.0
        %3206 = vmatpush.msra.mxu0 0.0
        %3207 = vmatpush.msra.mxu0 0.0
        %3208 = vmatpush.msra.mxu0 0.0
        %3209 = vmatpush.msra.mxu0 0.0
        %3210 = vmatpush.msra.mxu0 0.0
        %3211 = vmatpush.msra.mxu0 %v3159
        %3212 = vmatpush.msra.mxu0 %v3158
        %3213 = vmatpush.msra.mxu0 %v3157
        %3214 = vmatpush.msra.mxu0 %v3156
        %3215 = vmatpush.msra.mxu0 %v3155
        %3216 = vmatpush.msra.mxu0 %v3154
        %3217 = vmatmul.f32.gmra.mxu0 %v3196
        %v3218 = vpop.f32.mrf.mxu0
        %v3219 = vadd.f32 %v3162, %v3218
        %3220 = vmatmul.f32.gmra.mxu0 %v3199
        %v3221 = vpop.f32.mrf.mxu0
        %v3222 = vadd.f32 %v3162, %v3221
        %3223 = vdwg.mxu0
        %s3224 = scalar_lea.vmem %s379, 16 [#allocation3]
        %3225 = vst.msk [vmem:[%s3224] sm:$0xff] %vm3086, %v3219
        %3226 = vst.msk [vmem:[%s3224 + $0x8] sm:$0xff] %vm3086, %v3222
        %v3228 = vsel %vm406, %v3126, 0
        %v3231 = vsel %vm406, %v3127, 0
        %3233 = vmatpush.msra.mxu0 0.0
        %3234 = vmatpush.msra.mxu0 0.0
        %3235 = vmatpush.msra.mxu0 0.0
        %3236 = vmatpush.msra.mxu0 0.0
        %3237 = vmatpush.msra.mxu0 0.0
        %3238 = vmatpush.msra.mxu0 0.0
        %3239 = vmatpush.msra.mxu0 0.0
        %3240 = vmatpush.msra.mxu0 0.0
        %3241 = vmatpush.msra.mxu0 0.0
        %3242 = vmatpush.msra.mxu0 0.0
        %3243 = vmatpush.msra.mxu0 %v3159
        %3244 = vmatpush.msra.mxu0 %v3158
        %3245 = vmatpush.msra.mxu0 %v3157
        %3246 = vmatpush.msra.mxu0 %v3156
        %3247 = vmatpush.msra.mxu0 %v3155
        %3248 = vmatpush.msra.mxu0 %v3154
        %3249 = vmatmul.f32.gmra.mxu0 %v3228
        %v3250 = vpop.f32.mrf.mxu0
        %v3251 = vadd.f32 %v3162, %v3250
        %3252 = vmatmul.f32.gmra.mxu0 %v3231
        %v3253 = vpop.f32.mrf.mxu0
        %v3254 = vadd.f32 %v3162, %v3253
        %3255 = vdwg.mxu0
        %s3256 = scalar_lea.vmem %s379, 32 [#allocation3]
        %3257 = vst.msk [vmem:[%s3256] sm:$0xff] %vm3086, %v3251
        %3258 = vst.msk [vmem:[%s3256 + $0x8] sm:$0xff] %vm3086, %v3254
        %v3260 = vsel %vm406, %v3128, 0
        %v3263 = vsel %vm406, %v3129, 0
        %3265 = vmatpush.msra.mxu0 0.0
        %3266 = vmatpush.msra.mxu0 0.0
        %3267 = vmatpush.msra.mxu0 0.0
        %3268 = vmatpush.msra.mxu0 0.0
        %3269 = vmatpush.msra.mxu0 0.0
        %3270 = vmatpush.msra.mxu0 0.0
        %3271 = vmatpush.msra.mxu0 0.0
        %3272 = vmatpush.msra.mxu0 0.0
        %3273 = vmatpush.msra.mxu0 0.0
        %3274 = vmatpush.msra.mxu0 0.0
        %3275 = vmatpush.msra.mxu0 %v3159
        %3276 = vmatpush.msra.mxu0 %v3158
        %3277 = vmatpush.msra.mxu0 %v3157
        %3278 = vmatpush.msra.mxu0 %v3156
        %3279 = vmatpush.msra.mxu0 %v3155
        %3280 = vmatpush.msra.mxu0 %v3154
        %3281 = vmatmul.f32.gmra.mxu0 %v3260
        %v3282 = vpop.f32.mrf.mxu0
        %v3283 = vadd.f32 %v3162, %v3282
        %3284 = vmatmul.f32.gmra.mxu0 %v3263
        %v3285 = vpop.f32.mrf.mxu0
        %v3286 = vadd.f32 %v3162, %v3285
        %3287 = vdwg.mxu0
        %s3288 = scalar_lea.vmem %s379, 48 [#allocation3]
        %3289 = vst.msk [vmem:[%s3288] sm:$0xff] %vm3086, %v3283
        %3290 = vst.msk [vmem:[%s3288 + $0x8] sm:$0xff] %vm3086, %v3286
        %v3292 = vsel %vm406, %v3130, 0
        %v3295 = vsel %vm406, %v3131, 0
        %3297 = vmatpush.msra.mxu0 0.0
        %3298 = vmatpush.msra.mxu0 0.0
        %3299 = vmatpush.msra.mxu0 0.0
        %3300 = vmatpush.msra.mxu0 0.0
        %3301 = vmatpush.msra.mxu0 0.0
        %3302 = vmatpush.msra.mxu0 0.0
        %3303 = vmatpush.msra.mxu0 0.0
        %3304 = vmatpush.msra.mxu0 0.0
        %3305 = vmatpush.msra.mxu0 0.0
        %3306 = vmatpush.msra.mxu0 0.0
        %3307 = vmatpush.msra.mxu0 %v3159
        %3308 = vmatpush.msra.mxu0 %v3158
        %3309 = vmatpush.msra.mxu0 %v3157
        %3310 = vmatpush.msra.mxu0 %v3156
        %3311 = vmatpush.msra.mxu0 %v3155
        %3312 = vmatpush.msra.mxu0 %v3154
        %3313 = vmatmul.f32.gmra.mxu0 %v3292
        %v3314 = vpop.f32.mrf.mxu0
        %v3315 = vadd.f32 %v3162, %v3314
        %3316 = vmatmul.f32.gmra.mxu0 %v3295
        %v3317 = vpop.f32.mrf.mxu0
        %v3318 = vadd.f32 %v3162, %v3317
        %3319 = vdwg.mxu0
        %s3320 = scalar_lea.vmem %s379, 64 [#allocation3]
        %3321 = vst.msk [vmem:[%s3320] sm:$0xff] %vm3086, %v3315
        %3322 = vst.msk [vmem:[%s3320 + $0x8] sm:$0xff] %vm3086, %v3318
        %v3324 = vsel %vm406, %v3132, 0
        %v3327 = vsel %vm406, %v3133, 0
        %3329 = vmatpush.msra.mxu0 0.0
        %3330 = vmatpush.msra.mxu0 0.0
        %3331 = vmatpush.msra.mxu0 0.0
        %3332 = vmatpush.msra.mxu0 0.0
        %3333 = vmatpush.msra.mxu0 0.0
        %3334 = vmatpush.msra.mxu0 0.0
        %3335 = vmatpush.msra.mxu0 0.0
        %3336 = vmatpush.msra.mxu0 0.0
        %3337 = vmatpush.msra.mxu0 0.0
        %3338 = vmatpush.msra.mxu0 0.0
        %3339 = vmatpush.msra.mxu0 %v3159
        %3340 = vmatpush.msra.mxu0 %v3158
        %3341 = vmatpush.msra.mxu0 %v3157
        %3342 = vmatpush.msra.mxu0 %v3156
        %3343 = vmatpush.msra.mxu0 %v3155
        %3344 = vmatpush.msra.mxu0 %v3154
        %3345 = vmatmul.f32.gmra.mxu0 %v3324
        %v3346 = vpop.f32.mrf.mxu0
        %v3347 = vadd.f32 %v3162, %v3346
        %3348 = vmatmul.f32.gmra.mxu0 %v3327
        %v3349 = vpop.f32.mrf.mxu0
        %v3350 = vadd.f32 %v3162, %v3349
        %3351 = vdwg.mxu0
        %s3352 = scalar_lea.vmem %s379, 80 [#allocation3]
        %3353 = vst.msk [vmem:[%s3352] sm:$0xff] %vm3086, %v3347
        %3354 = vst.msk [vmem:[%s3352 + $0x8] sm:$0xff] %vm3086, %v3350
        %v3356 = vsel %vm406, %v3134, 0
        %v3359 = vsel %vm406, %v3135, 0
        %3361 = vmatpush.msra.mxu0 0.0
        %3362 = vmatpush.msra.mxu0 0.0
        %3363 = vmatpush.msra.mxu0 0.0
        %3364 = vmatpush.msra.mxu0 0.0
        %3365 = vmatpush.msra.mxu0 0.0
        %3366 = vmatpush.msra.mxu0 0.0
        %3367 = vmatpush.msra.mxu0 0.0
        %3368 = vmatpush.msra.mxu0 0.0
        %3369 = vmatpush.msra.mxu0 0.0
        %3370 = vmatpush.msra.mxu0 0.0
        %3371 = vmatpush.msra.mxu0 %v3159
        %3372 = vmatpush.msra.mxu0 %v3158
        %3373 = vmatpush.msra.mxu0 %v3157
        %3374 = vmatpush.msra.mxu0 %v3156
        %3375 = vmatpush.msra.mxu0 %v3155
        %3376 = vmatpush.msra.mxu0 %v3154
        %3377 = vmatmul.f32.gmra.mxu0 %v3356
        %v3378 = vpop.f32.mrf.mxu0
        %v3379 = vadd.f32 %v3162, %v3378
        %3380 = vmatmul.f32.gmra.mxu0 %v3359
        %v3381 = vpop.f32.mrf.mxu0
        %v3382 = vadd.f32 %v3162, %v3381
        %3383 = vdwg.mxu0
        %s3384 = scalar_lea.vmem %s379, 96 [#allocation3]
        %3385 = vst.msk [vmem:[%s3384] sm:$0xff] %vm3086, %v3379
        %3386 = vst.msk [vmem:[%s3384 + $0x8] sm:$0xff] %vm3086, %v3382
        %v3388 = vsel %vm406, %v3136, 0
        %v3391 = vsel %vm406, %v3137, 0
        %3393 = vmatpush.msra.mxu0 0.0
        %3394 = vmatpush.msra.mxu0 0.0
        %3395 = vmatpush.msra.mxu0 0.0
        %3396 = vmatpush.msra.mxu0 0.0
        %3397 = vmatpush.msra.mxu0 0.0
        %3398 = vmatpush.msra.mxu0 0.0
        %3399 = vmatpush.msra.mxu0 0.0
        %3400 = vmatpush.msra.mxu0 0.0
        %3401 = vmatpush.msra.mxu0 0.0
        %3402 = vmatpush.msra.mxu0 0.0
        %3403 = vmatpush.msra.mxu0 %v3159
        %3404 = vmatpush.msra.mxu0 %v3158
        %3405 = vmatpush.msra.mxu0 %v3157
        %3406 = vmatpush.msra.mxu0 %v3156
        %3407 = vmatpush.msra.mxu0 %v3155
        %3408 = vmatpush.msra.mxu0 %v3154
        %3409 = vmatmul.f32.gmra.mxu0 %v3388
        %v3410 = vpop.f32.mrf.mxu0
        %v3411 = vadd.f32 %v3162, %v3410
        %3412 = vmatmul.f32.gmra.mxu0 %v3391
        %v3413 = vpop.f32.mrf.mxu0
        %v3414 = vadd.f32 %v3162, %v3413
        %3415 = vdwg.mxu0
        %s3416 = scalar_lea.vmem %s379, 112 [#allocation3]
        %3417 = vst.msk [vmem:[%s3416] sm:$0xff] %vm3086, %v3411
        %3418 = vst.msk [vmem:[%s3416 + $0x8] sm:$0xff] %vm3086, %v3414
        %v3420 = vsel %vm406, %v3138, 0
        %v3423 = vsel %vm406, %v3139, 0
        %3425 = vmatpush.msra.mxu0 0.0
        %3426 = vmatpush.msra.mxu0 0.0
        %3427 = vmatpush.msra.mxu0 0.0
        %3428 = vmatpush.msra.mxu0 0.0
        %3429 = vmatpush.msra.mxu0 0.0
        %3430 = vmatpush.msra.mxu0 0.0
        %3431 = vmatpush.msra.mxu0 0.0
        %3432 = vmatpush.msra.mxu0 0.0
        %3433 = vmatpush.msra.mxu0 0.0
        %3434 = vmatpush.msra.mxu0 0.0
        %3435 = vmatpush.msra.mxu0 %v3159
        %3436 = vmatpush.msra.mxu0 %v3158
        %3437 = vmatpush.msra.mxu0 %v3157
        %3438 = vmatpush.msra.mxu0 %v3156
        %3439 = vmatpush.msra.mxu0 %v3155
        %3440 = vmatpush.msra.mxu0 %v3154
        %3441 = vmatmul.f32.gmra.mxu0 %v3420
        %v3442 = vpop.f32.mrf.mxu0
        %v3443 = vadd.f32 %v3162, %v3442
        %3444 = vmatmul.f32.gmra.mxu0 %v3423
        %v3445 = vpop.f32.mrf.mxu0
        %v3446 = vadd.f32 %v3162, %v3445
        %3447 = vdwg.mxu0
        %s3448 = scalar_lea.vmem %s379, 128 [#allocation3]
        %3449 = vst.msk [vmem:[%s3448] sm:$0xff] %vm3086, %v3443
        %3450 = vst.msk [vmem:[%s3448 + $0x8] sm:$0xff] %vm3086, %v3446
        %v3452 = vsel %vm406, %v3140, 0
        %v3455 = vsel %vm406, %v3141, 0
        %3457 = vmatpush.msra.mxu0 0.0
        %3458 = vmatpush.msra.mxu0 0.0
        %3459 = vmatpush.msra.mxu0 0.0
        %3460 = vmatpush.msra.mxu0 0.0
        %3461 = vmatpush.msra.mxu0 0.0
        %3462 = vmatpush.msra.mxu0 0.0
        %3463 = vmatpush.msra.mxu0 0.0
        %3464 = vmatpush.msra.mxu0 0.0
        %3465 = vmatpush.msra.mxu0 0.0
        %3466 = vmatpush.msra.mxu0 0.0
        %3467 = vmatpush.msra.mxu0 %v3159
        %3468 = vmatpush.msra.mxu0 %v3158
        %3469 = vmatpush.msra.mxu0 %v3157
        %3470 = vmatpush.msra.mxu0 %v3156
        %3471 = vmatpush.msra.mxu0 %v3155
        %3472 = vmatpush.msra.mxu0 %v3154
        %3473 = vmatmul.f32.gmra.mxu0 %v3452
        %v3474 = vpop.f32.mrf.mxu0
        %v3475 = vadd.f32 %v3162, %v3474
        %3476 = vmatmul.f32.gmra.mxu0 %v3455
        %v3477 = vpop.f32.mrf.mxu0
        %v3478 = vadd.f32 %v3162, %v3477
        %3479 = vdwg.mxu0
        %s3480 = scalar_lea.vmem %s379, 144 [#allocation3]
        %3481 = vst.msk [vmem:[%s3480] sm:$0xff] %vm3086, %v3475
        %3482 = vst.msk [vmem:[%s3480 + $0x8] sm:$0xff] %vm3086, %v3478
        %v3484 = vsel %vm406, %v3142, 0
        %v3487 = vsel %vm406, %v3143, 0
        %3489 = vmatpush.msra.mxu0 0.0
        %3490 = vmatpush.msra.mxu0 0.0
        %3491 = vmatpush.msra.mxu0 0.0
        %3492 = vmatpush.msra.mxu0 0.0
        %3493 = vmatpush.msra.mxu0 0.0
        %3494 = vmatpush.msra.mxu0 0.0
        %3495 = vmatpush.msra.mxu0 0.0
        %3496 = vmatpush.msra.mxu0 0.0
        %3497 = vmatpush.msra.mxu0 0.0
        %3498 = vmatpush.msra.mxu0 0.0
        %3499 = vmatpush.msra.mxu0 %v3159
        %3500 = vmatpush.msra.mxu0 %v3158
        %3501 = vmatpush.msra.mxu0 %v3157
        %3502 = vmatpush.msra.mxu0 %v3156
        %3503 = vmatpush.msra.mxu0 %v3155
        %3504 = vmatpush.msra.mxu0 %v3154
        %3505 = vmatmul.f32.gmra.mxu0 %v3484
        %v3506 = vpop.f32.mrf.mxu0
        %v3507 = vadd.f32 %v3162, %v3506
        %3508 = vmatmul.f32.gmra.mxu0 %v3487
        %v3509 = vpop.f32.mrf.mxu0
        %v3510 = vadd.f32 %v3162, %v3509
        %3511 = vdwg.mxu0
        %s3512 = scalar_lea.vmem %s379, 160 [#allocation3]
        %3513 = vst.msk [vmem:[%s3512] sm:$0xff] %vm3086, %v3507
        %3514 = vst.msk [vmem:[%s3512 + $0x8] sm:$0xff] %vm3086, %v3510
        %v3516 = vsel %vm406, %v3144, 0
        %v3519 = vsel %vm406, %v3145, 0
        %3521 = vmatpush.msra.mxu0 0.0
        %3522 = vmatpush.msra.mxu0 0.0
        %3523 = vmatpush.msra.mxu0 0.0
        %3524 = vmatpush.msra.mxu0 0.0
        %3525 = vmatpush.msra.mxu0 0.0
        %3526 = vmatpush.msra.mxu0 0.0
        %3527 = vmatpush.msra.mxu0 0.0
        %3528 = vmatpush.msra.mxu0 0.0
        %3529 = vmatpush.msra.mxu0 0.0
        %3530 = vmatpush.msra.mxu0 0.0
        %3531 = vmatpush.msra.mxu0 %v3159
        %3532 = vmatpush.msra.mxu0 %v3158
        %3533 = vmatpush.msra.mxu0 %v3157
        %3534 = vmatpush.msra.mxu0 %v3156
        %3535 = vmatpush.msra.mxu0 %v3155
        %3536 = vmatpush.msra.mxu0 %v3154
        %3537 = vmatmul.f32.gmra.mxu0 %v3516
        %v3538 = vpop.f32.mrf.mxu0
        %v3539 = vadd.f32 %v3162, %v3538
        %3540 = vmatmul.f32.gmra.mxu0 %v3519
        %v3541 = vpop.f32.mrf.mxu0
        %v3542 = vadd.f32 %v3162, %v3541
        %3543 = vdwg.mxu0
        %s3544 = scalar_lea.vmem %s379, 176 [#allocation3]
        %3545 = vst.msk [vmem:[%s3544] sm:$0xff] %vm3086, %v3539
        %3546 = vst.msk [vmem:[%s3544 + $0x8] sm:$0xff] %vm3086, %v3542
        %v3548 = vsel %vm406, %v3146, 0
        %v3551 = vsel %vm406, %v3147, 0
        %3553 = vmatpush.msra.mxu0 0.0
        %3554 = vmatpush.msra.mxu0 0.0
        %3555 = vmatpush.msra.mxu0 0.0
        %3556 = vmatpush.msra.mxu0 0.0
        %3557 = vmatpush.msra.mxu0 0.0
        %3558 = vmatpush.msra.mxu0 0.0
        %3559 = vmatpush.msra.mxu0 0.0
        %3560 = vmatpush.msra.mxu0 0.0
        %3561 = vmatpush.msra.mxu0 0.0
        %3562 = vmatpush.msra.mxu0 0.0
        %3563 = vmatpush.msra.mxu0 %v3159
        %3564 = vmatpush.msra.mxu0 %v3158
        %3565 = vmatpush.msra.mxu0 %v3157
        %3566 = vmatpush.msra.mxu0 %v3156
        %3567 = vmatpush.msra.mxu0 %v3155
        %3568 = vmatpush.msra.mxu0 %v3154
        %3569 = vmatmul.f32.gmra.mxu0 %v3548
        %v3570 = vpop.f32.mrf.mxu0
        %v3571 = vadd.f32 %v3162, %v3570
        %3572 = vmatmul.f32.gmra.mxu0 %v3551
        %v3573 = vpop.f32.mrf.mxu0
        %v3574 = vadd.f32 %v3162, %v3573
        %3575 = vdwg.mxu0
        %s3576 = scalar_lea.vmem %s379, 192 [#allocation3]
        %3577 = vst.msk [vmem:[%s3576] sm:$0xff] %vm3086, %v3571
        %3578 = vst.msk [vmem:[%s3576 + $0x8] sm:$0xff] %vm3086, %v3574
        %v3580 = vsel %vm406, %v3148, 0
        %v3583 = vsel %vm406, %v3149, 0
        %3585 = vmatpush.msra.mxu0 0.0
        %3586 = vmatpush.msra.mxu0 0.0
        %3587 = vmatpush.msra.mxu0 0.0
        %3588 = vmatpush.msra.mxu0 0.0
        %3589 = vmatpush.msra.mxu0 0.0
        %3590 = vmatpush.msra.mxu0 0.0
        %3591 = vmatpush.msra.mxu0 0.0
        %3592 = vmatpush.msra.mxu0 0.0
        %3593 = vmatpush.msra.mxu0 0.0
        %3594 = vmatpush.msra.mxu0 0.0
        %3595 = vmatpush.msra.mxu0 %v3159
        %3596 = vmatpush.msra.mxu0 %v3158
        %3597 = vmatpush.msra.mxu0 %v3157
        %3598 = vmatpush.msra.mxu0 %v3156
        %3599 = vmatpush.msra.mxu0 %v3155
        %3600 = vmatpush.msra.mxu0 %v3154
        %3601 = vmatmul.f32.gmra.mxu0 %v3580
        %v3602 = vpop.f32.mrf.mxu0
        %v3603 = vadd.f32 %v3162, %v3602
        %3604 = vmatmul.f32.gmra.mxu0 %v3583
        %v3605 = vpop.f32.mrf.mxu0
        %v3606 = vadd.f32 %v3162, %v3605
        %3607 = vdwg.mxu0
        %s3608 = scalar_lea.vmem %s379, 208 [#allocation3]
        %3609 = vst.msk [vmem:[%s3608] sm:$0xff] %vm3086, %v3603
        %3610 = vst.msk [vmem:[%s3608 + $0x8] sm:$0xff] %vm3086, %v3606
        %v3612 = vsel %vm406, %v3150, 0
        %v3615 = vsel %vm406, %v3151, 0
        %3617 = vmatpush.msra.mxu0 0.0
        %3618 = vmatpush.msra.mxu0 0.0
        %3619 = vmatpush.msra.mxu0 0.0
        %3620 = vmatpush.msra.mxu0 0.0
        %3621 = vmatpush.msra.mxu0 0.0
        %3622 = vmatpush.msra.mxu0 0.0
        %3623 = vmatpush.msra.mxu0 0.0
        %3624 = vmatpush.msra.mxu0 0.0
        %3625 = vmatpush.msra.mxu0 0.0
        %3626 = vmatpush.msra.mxu0 0.0
        %3627 = vmatpush.msra.mxu0 %v3159
        %3628 = vmatpush.msra.mxu0 %v3158
        %3629 = vmatpush.msra.mxu0 %v3157
        %3630 = vmatpush.msra.mxu0 %v3156
        %3631 = vmatpush.msra.mxu0 %v3155
        %3632 = vmatpush.msra.mxu0 %v3154
        %3633 = vmatmul.f32.gmra.mxu0 %v3612
        %v3634 = vpop.f32.mrf.mxu0
        %v3635 = vadd.f32 %v3162, %v3634
        %3636 = vmatmul.f32.gmra.mxu0 %v3615
        %v3637 = vpop.f32.mrf.mxu0
        %v3638 = vadd.f32 %v3162, %v3637
        %3639 = vdwg.mxu0
        %s3640 = scalar_lea.vmem %s379, 224 [#allocation3]
        %3641 = vst.msk [vmem:[%s3640] sm:$0xff] %vm3086, %v3635
        %3642 = vst.msk [vmem:[%s3640 + $0x8] sm:$0xff] %vm3086, %v3638
        %v3644 = vsel %vm406, %v3152, 0
        %v3647 = vsel %vm406, %v3153, 0
        %3649 = vmatpush.msra.mxu0 0.0
        %3650 = vmatpush.msra.mxu0 0.0
        %3651 = vmatpush.msra.mxu0 0.0
        %3652 = vmatpush.msra.mxu0 0.0
        %3653 = vmatpush.msra.mxu0 0.0
        %3654 = vmatpush.msra.mxu0 0.0
        %3655 = vmatpush.msra.mxu0 0.0
        %3656 = vmatpush.msra.mxu0 0.0
        %3657 = vmatpush.msra.mxu0 0.0
        %3658 = vmatpush.msra.mxu0 0.0
        %3659 = vmatpush.msra.mxu0 %v3159
        %3660 = vmatpush.msra.mxu0 %v3158
        %3661 = vmatpush.msra.mxu0 %v3157
        %3662 = vmatpush.msra.mxu0 %v3156
        %3663 = vmatpush.msra.mxu0 %v3155
        %3664 = vmatpush.msra.mxu0 %v3154
        %3665 = vmatmul.f32.gmra.mxu0 %v3644
        %v3666 = vpop.f32.mrf.mxu0
        %v3667 = vadd.f32 %v3162, %v3666
        %3668 = vmatmul.f32.gmra.mxu0 %v3647
        %v3669 = vpop.f32.mrf.mxu0
        %v3670 = vadd.f32 %v3162, %v3669
        %3671 = vdwg.mxu0
        %s3672 = scalar_lea.vmem %s379, 240 [#allocation3]
        %3673 = vst.msk [vmem:[%s3672] sm:$0xff] %vm3086, %v3667
        %3674 = vst.msk [vmem:[%s3672 + $0x8] sm:$0xff] %vm3086, %v3670
        %s3675 = sand.u32 %s269, 1
        %s3676 = scalar_lea.sflag [#allocation4], %s3675
        %s3677 = sand.u32 %s269, 1
        %s3678 = smul.addr %s3677, 256
        %s3679 = scalar_lea.vmem [#allocation3], %s3678
        // Predicated region
        $region65: #{tpu_custom_call.1} parent=63 // pred_check
          %p3680 = pneg %p279
        $region66: #{tpu_custom_call.1} parent=63 // pred_check_branch
          %3682 = sbr.rel (%p3680) target = $region68
        $region67: #{tpu_custom_call.1} parent=63 // pred_region
          %3684 = vsyncadd %s3676, 0
          %s3685 = smul.addr %s25, 32
          %s3686 = smul.addr %s3685, 8
          %s3687 = scalar_lea.hbm %s11, %s3686
          %s3688 = sshll.u32 %s3679, 4
          %s3689 = int_to_ptr.vmem [resolvable:$true] %s3688
          %s3690 = sshll.u32 %s3687, 4
          %s3691 = int_to_ptr.hbm [resolvable:$true] %s3690
          %3696 = dma.vmem_to_hbm [thread:$0]  %s3689, 4096, %s3691, %s3676, 128, 128, 8
        $region68: #{tpu_custom_call.1} parent=63 // pred_fallthru
          _
      $region64: #{tpu_custom_call.1} parent=5 // pred_fallthru
        _
      %p3697 = scmp.le.s32.totalorder 2, %s20
      // Predicated region
      $region69: #{tpu_custom_call.1} parent=5 // pred_check
        %p3698 = pneg %p3697
      $region70: #{tpu_custom_call.1} parent=5 // pred_check_branch
        %3700 = sbr.rel (%p3698) target = $region72
      $region71: #{tpu_custom_call.1} parent=5 // pred_region
        %s3701 = ssub.s32 %s20, 2
        // Predicated region
        $region73: #{tpu_custom_call.1} parent=71 // pred_check
          %p3702 = pneg %p285
        $region74: #{tpu_custom_call.1} parent=71 // pred_check_branch
          %3704 = sbr.rel (%p3702) target = $region76
        $region75: #{tpu_custom_call.1} parent=71 // pred_region
          %s3705 = sand.u32 %s270, 1
          %s3706 = scalar_lea.sflag [#allocation4], %s3705
          %s3707 = sand.u32 %s270, 1
          %s3708 = smul.addr %s3707, 256
          %s3709 = scalar_lea.vmem [#allocation3], %s3708
          %3711 = dma.done %s3706, 4096
        $region76: #{tpu_custom_call.1} parent=71 // pred_fallthru
          _
      $region72: #{tpu_custom_call.1} parent=5 // pred_fallthru
        _
    $region6: #{tpu_custom_call.1} parent=1 // loop_footer
      %s24 = sadd.s32 1, %s20
    $region7: #{tpu_custom_call.1} parent=1 // loop_footer_branch
      %19 = sbr.rel target = $region3
    $region8: #{tpu_custom_call.1} parent=1 // loop_exit
      _
    %3712 = vsyncpa [#allocation4], 1
    %s3713 = scalar_lea.sflag [#allocation4], 1
    %3714 = vsyncpa %s3713, 1

</llo_original>
